<compile_context>
chip_gen: v6e
topology: v6e:2x2x1
jax: 0.10.0
libtpu: 0.0.40
codegen_flags: <defaults>
</compile_context>

<pallas_src>
import jax
import jax.numpy as jnp
from jax.experimental import pallas as pl
from jax.experimental.pallas import tpu as pltpu

LANE = 128


def _round_up(n, m):
    return ((n + m - 1) // m) * m


def _pad2(a, rows, cols, dtype):
    r, c = a.shape
    return jnp.pad(a, ((0, rows - r), (0, cols - c))).astype(dtype)


def _target_model_kernel(x_ref,
                         ew1_ref, eb1_ref, ew2_ref, eb2_ref,
                         pw1_ref, pb1_ref, pw2_ref, pb2_ref,
                         o_ref, acc_ref):
    """One (tm, tk) x-slab: accumulate layer-1 into the f32 scratch; on the
    last K step run layers 2-4 + sigmoid and store a lane-dense bf16 tile."""
    k = pl.program_id(1)

    @pl.when(k == 0)
    def _():
        acc_ref[...] = jnp.zeros_like(acc_ref)

    # Layer-1 partial product for this K slab (bf16 operands, f32 MXU accum).
    acc_ref[...] += jnp.dot(x_ref[...], ew1_ref[...],
                            preferred_element_type=jnp.float32)

    @pl.when(k == pl.num_programs(1) - 1)
    def _():
        # ---- target_encoder.encode: Linear -> ReLU -> Linear -> ReLU ----
        h = jnp.maximum(acc_ref[...] + eb1_ref[...], 0.0)
        h = jnp.maximum(
            jnp.dot(h.astype(jnp.bfloat16), ew2_ref[...],
                    preferred_element_type=jnp.float32) + eb2_ref[...], 0.0)
        # ---- source_predictor.predictor: Linear -> ReLU -> Linear -> Sigmoid ----
        h = jnp.maximum(
            jnp.dot(h.astype(jnp.bfloat16), pw1_ref[...],
                    preferred_element_type=jnp.float32) + pb1_ref[...], 0.0)
        logits = jnp.dot(h.astype(jnp.bfloat16), pw2_ref[...],
                         preferred_element_type=jnp.float32) + pb2_ref[...]
        # exp/recip of sigmoid land on the otherwise-idle EUP slot.
        o_ref[...] = jax.nn.sigmoid(logits).astype(o_ref.dtype)


def target_model_forward(x, params, *, tm=None, tk=None):
    """Fused TargetModel forward (C_target=None path).

    tm: batch rows per grid step (None -> derived from VMEM capacity).
    tk: input-feature (K) slab size for the first matmul (None -> derived).
    """
    B, d_in = x.shape
    ew1, eb1, ew2, eb2, pw1, pb1, pw2, pb2 = params
    enc_h, bott = ew1.shape[1], ew2.shape[1]
    pred_h, d_out = pw1.shape[1], pw2.shape[1]

    # ---- chip-aware tile sizes (v5e/v6e: 128 MiB VMEM; v7x: 64 MiB per TC) ----
    vmem_cap = 64 << 20
    try:
        vmem_cap = int(pltpu.get_tpu_info().vmem_capacity_bytes)
    except Exception:
        pass
    if tm is None:
        tm = 512 if vmem_cap >= (96 << 20) else (256 if vmem_cap >= (48 << 20) else 128)
    tm = min(tm, _round_up(B, LANE))           # don't over-pad tiny batches
    tm = max(8, _round_up(tm, 8))

    d_in_p = _round_up(d_in, LANE)
    if tk is None:
        tk = 2048 if vmem_cap >= (48 << 20) else 1024
    tk = min(_round_up(tk, LANE), d_in_p)
    num_k = -(-d_in_p // tk)
    tk = _round_up(-(-d_in_p // num_k), LANE)  # rebalance K slabs -> minimal padding
    d_in_p = tk * num_k

    enc_h_p = _round_up(enc_h, LANE)
    bott_p = _round_up(bott, LANE)
    pred_h_p = _round_up(pred_h, LANE)
    d_out_p = _round_up(d_out, LANE)

    # ---- zero-pad params; weights bf16 (MXU operands), biases f32 ----
    ew1p = _pad2(ew1, d_in_p, enc_h_p, jnp.bfloat16)
    eb1p = _pad2(eb1, 1, enc_h_p, jnp.float32)
    ew2p = _pad2(ew2, enc_h_p, bott_p, jnp.bfloat16)
    eb2p = _pad2(eb2, 1, bott_p, jnp.float32)
    pw1p = _pad2(pw1, bott_p, pred_h_p, jnp.bfloat16)
    pb1p = _pad2(pb1, 1, pred_h_p, jnp.float32)
    pw2p = _pad2(pw2, pred_h_p, d_out_p, jnp.bfloat16)
    pb2p = _pad2(pb2, 1, d_out_p, jnp.float32)

    # ---- x: cast to bf16 first (halves any pad writeback), pad only if needed ----
    b_p = _round_up(B, tm)
    x_bf = x if x.dtype == jnp.bfloat16 else x.astype(jnp.bfloat16)
    if b_p != B or d_in_p != d_in:
        x_bf = jnp.pad(x_bf, ((0, b_p - B), (0, d_in_p - d_in)))

    grid = (b_p // tm, num_k)

    # ---- explicit VMEM budget (leave headroom vs. physical capacity) ----
    resident = sum(int(a.size) * a.dtype.itemsize
                   for a in (eb1p, ew2p, eb2p, pw1p, pb1p, pw2p, pb2p))
    est = (2 * tm * tk * 2            # streamed x tile (bf16, double-buffered)
           + 2 * tk * enc_h_p * 2     # streamed ew1 K-slab (bf16, double-buffered)
           + tm * enc_h_p * 4         # f32 layer-1 accumulator scratch
           + 2 * tm * d_out_p * 2     # output tile (bf16, double-buffered)
           + 2 * resident)            # resident weights/biases (upper bound)
    vmem_limit = min(max(int(est * 1.5) + (8 << 20), 32 << 20),
                     int(vmem_cap * 0.9))

    out_shape = jax.ShapeDtypeStruct((b_p, d_out_p), jnp.bfloat16)
    out_spec = pl.BlockSpec((tm, d_out_p), lambda i, k: (i, 0))
    cparams = pltpu.CompilerParams(
        dimension_semantics=("parallel", "arbitrary"),  # batch sharded across v7x TCs
        vmem_limit_bytes=vmem_limit)

    def build(single_buffer_weights):
        def _resident(arr):
            if single_buffer_weights:
                # Constant-index weights don't need the default double buffer.
                return pl.BlockSpec(arr.shape, lambda i, k: (0, 0),
                                    pipeline_mode=pl.Buffered(1))
            return pl.BlockSpec(arr.shape, lambda i, k: (0, 0))

        return pl.pallas_call(
            _target_model_kernel,
            out_shape=out_shape,
            grid=grid,
            in_specs=[
                pl.BlockSpec((tm, tk), lambda i, k: (i, k)),       # x batch/K slab
                pl.BlockSpec((tk, enc_h_p), lambda i, k: (k, 0)),  # ew1 K-slab
                _resident(eb1p), _resident(ew2p), _resident(eb2p),
                _resident(pw1p), _resident(pb1p),
                _resident(pw2p), _resident(pb2p),
            ],
            out_specs=out_spec,
            scratch_shapes=[pltpu.VMEM((tm, enc_h_p), jnp.float32)],
            compiler_params=cparams,
        )

    args = (x_bf, ew1p, eb1p, ew2p, eb2p, pw1p, pb1p, pw2p, pb2p)
    try:
        out_p = build(True)(*args)
    except Exception:
        # TODO(synk): pipeline_mode=pl.Buffered(1) unsupported on this jax
        # version -> fall back to default double-buffered resident weights.
        out_p = build(False)(*args)

    return out_p[:B, :d_out].astype(jnp.float32)


def init_params(key, d_in, enc_h, bottleneck, pred_h, d_out):
    """Deterministic synthetic weights (no checkpoint load), stored f32."""
    ks = jax.random.split(key, 8)
    scale = 0.1
    ew1 = scale * jax.random.normal(ks[0], (d_in, enc_h), jnp.float32)
    eb1 = scale * jax.random.normal(ks[1], (1, enc_h), jnp.float32)
    ew2 = scale * jax.random.normal(ks[2], (enc_h, bottleneck), jnp.float32)
    eb2 = scale * jax.random.normal(ks[3], (1, bottleneck), jnp.float32)
    pw1 = scale * jax.random.normal(ks[4], (bottleneck, pred_h), jnp.float32)
    pb1 = scale * jax.random.normal(ks[5], (1, pred_h), jnp.float32)
    pw2 = scale * jax.random.normal(ks[6], (pred_h, d_out), jnp.float32)
    pb2 = scale * jax.random.normal(ks[7], (1, d_out), jnp.float32)
    return (ew1, eb1, ew2, eb2, pw1, pb1, pw2, pb2)


def reference_forward_f32(x, params):
    """Pure-JAX f32 reference reproducing the PyTorch forward semantics."""
    ew1, eb1, ew2, eb2, pw1, pb1, pw2, pb2 = params
    h = jnp.maximum(x @ ew1 + eb1, 0.0)
    h = jnp.maximum(h @ ew2 + eb2, 0.0)
    h = jnp.maximum(h @ pw1 + pb1, 0.0)
    return jax.nn.sigmoid(h @ pw2 + pb2)


def reference_forward_bf16(x, params):
    """Pure-JAX reference matching the kernel's bf16-operand / f32-accum math."""
    ew1, eb1, ew2, eb2, pw1, pb1, pw2, pb2 = params

    def dot(a, b):
        return jnp.dot(a.astype(jnp.bfloat16), b.astype(jnp.bfloat16),
                       preferred_element_type=jnp.float32)

    h = jnp.maximum(dot(x, ew1) + eb1, 0.0)
    h = jnp.maximum(dot(h, ew2) + eb2, 0.0)
    h = jnp.maximum(dot(h, pw1) + pb1, 0.0)
    return jax.nn.sigmoid(dot(h, pw2) + pb2)


if __name__ == "__main__":
    key = jax.random.PRNGKey(0)
    k_x, k_p = jax.random.split(key)

    # Small scDEAL-like shapes: gene-expression matrix [cells, genes].
    # Chosen so both grid axes are exercised: batch 512 / tm 256 -> 2 batch
    # steps, d_in 384 / tk 128 -> 3 K-accumulation steps.
    B, D_IN = 512, 384
    ENC_H, BOTTLENECK = 64, 32
    PRED_H, D_OUT = 32, 2    # binary drug-response head

    x = jax.random.normal(k_x, (B, D_IN), jnp.float32)
    params = init_params(k_p, D_IN, ENC_H, BOTTLENECK, PRED_H, D_OUT)

    # TODO(synk): C_target (conditional encode path) not exercised — forward uses C_target=None.
    y = target_model_forward(x, params, tm=256, tk=128)
    y = jax.block_until_ready(y)
    assert y.shape == (B, D_OUT)

    # Check vs a reference using the same bf16-operand / f32-accum math
    # (kernel output is additionally bf16-rounded -> ~2e-3 sigmoid quantization).
    y_ref_bf16 = reference_forward_bf16(x, params)
    assert jnp.allclose(y, y_ref_bf16, atol=8e-3, rtol=1e-2)

    # Looser sanity check vs the full-f32 PyTorch-equivalent math.
    y_ref_f32 = reference_forward_f32(x, params)
    assert jnp.allclose(y, y_ref_f32, atol=5e-2, rtol=5e-2)

    print("KERNEL_OK")
</pallas_src>

<mosaic_0001>
module attributes {stable_mosaic.version = 11 : i64} {
  func.func @_target_model_kernel(%arg0: i32, %arg1: i32, %arg2: memref<256x128xbf16, #tpu.memory_space<vmem>>, %arg3: memref<128x128xbf16, #tpu.memory_space<vmem>>, %arg4: memref<1x128xf32, #tpu.memory_space<vmem>>, %arg5: memref<128x128xbf16, #tpu.memory_space<vmem>>, %arg6: memref<1x128xf32, #tpu.memory_space<vmem>>, %arg7: memref<128x128xbf16, #tpu.memory_space<vmem>>, %arg8: memref<1x128xf32, #tpu.memory_space<vmem>>, %arg9: memref<128x128xbf16, #tpu.memory_space<vmem>>, %arg10: memref<1x128xf32, #tpu.memory_space<vmem>>, %arg11: memref<256x128xbf16, #tpu.memory_space<vmem>>, %arg12: memref<256x128xf32, #tpu.memory_space<vmem>>) attributes {dimension_semantics = [#tpu.dimension_semantics<parallel>, #tpu.dimension_semantics<arbitrary>], iteration_bounds = array<i64: 2, 3>, scalar_prefetch = 0 : i64, scratch_operands = 1 : i64, tpu.core_type = #tpu.core_type<tc>, window_params = [{transform_indices = @transform_0, window_bounds = array<i64: 256, 128>}, {transform_indices = @transform_1, window_bounds = array<i64: 128, 128>}, {pipeline_mode = #tpu.pipeline_mode<synchronous>, transform_indices = @transform_2, window_bounds = array<i64: 1, 128>}, {pipeline_mode = #tpu.pipeline_mode<synchronous>, transform_indices = @transform_3, window_bounds = array<i64: 128, 128>}, {pipeline_mode = #tpu.pipeline_mode<synchronous>, transform_indices = @transform_4, window_bounds = array<i64: 1, 128>}, {pipeline_mode = #tpu.pipeline_mode<synchronous>, transform_indices = @transform_5, window_bounds = array<i64: 128, 128>}, {pipeline_mode = #tpu.pipeline_mode<synchronous>, transform_indices = @transform_6, window_bounds = array<i64: 1, 128>}, {pipeline_mode = #tpu.pipeline_mode<synchronous>, transform_indices = @transform_7, window_bounds = array<i64: 128, 128>}, {pipeline_mode = #tpu.pipeline_mode<synchronous>, transform_indices = @transform_8, window_bounds = array<i64: 1, 128>}, {transform_indices = @transform_9, window_bounds = array<i64: 256, 128>}]} {
    %c0_i32 = arith.constant 0 : i32
    %0 = arith.cmpi eq, %arg1, %c0_i32 : i32
    %1 = arith.extui %0 : i1 to i32
    %c0_i32_0 = arith.constant 0 : i32
    %2 = arith.cmpi ne, %1, %c0_i32_0 : i32
    scf.if %2 {
      %cst_9 = arith.constant 0.000000e+00 : f32
      %12 = vector.broadcast %cst_9 : f32 to vector<256x128xf32>
      %c0_10 = arith.constant 0 : index
      %c0_11 = arith.constant 0 : index
      %13 = vector.load %arg12[%c0_10, %c0_11] : memref<256x128xf32, #tpu.memory_space<vmem>>, vector<256x128xf32>
      tpu.vector_store %arg12[%c0_10, %c0_11], %12 {strides = array<i32>} : memref<256x128xf32, #tpu.memory_space<vmem>>, vector<256x128xf32>,
    } else {
    }
    %c0 = arith.constant 0 : index
    %c0_1 = arith.constant 0 : index
    %3 = vector.load %arg12[%c0, %c0_1] : memref<256x128xf32, #tpu.memory_space<vmem>>, vector<256x128xf32>
    %c0_2 = arith.constant 0 : index
    %c0_3 = arith.constant 0 : index
    %4 = vector.load %arg2[%c0_2, %c0_3] : memref<256x128xbf16, #tpu.memory_space<vmem>>, vector<256x128xbf16>
    %c0_4 = arith.constant 0 : index
    %c0_5 = arith.constant 0 : index
    %5 = vector.load %arg3[%c0_4, %c0_5] : memref<128x128xbf16, #tpu.memory_space<vmem>>, vector<128x128xbf16>
    %cst = arith.constant dense<0.000000e+00> : vector<256x128xf32>
    %6 = tpu.matmul %4, %5, %cst {dimension_numbers = #tpu.dot_dimension_numbers<[1], [0], [0], [1], [0, 0, 1, 1], [], []>} : vector<256x128xbf16>, vector<128x128xbf16>, vector<256x128xf32> -> vector<256x128xf32>
    %7 = arith.addf %3, %6 : vector<256x128xf32>
    %c0_6 = arith.constant 0 : index
    %c0_7 = arith.constant 0 : index
    %8 = vector.load %arg12[%c0_6, %c0_7] : memref<256x128xf32, #tpu.memory_space<vmem>>, vector<256x128xf32>
    tpu.vector_store %arg12[%c0_6, %c0_7], %7 {strides = array<i32>} : memref<256x128xf32, #tpu.memory_space<vmem>>, vector<256x128xf32>,
    %c2_i32 = arith.constant 2 : i32
    %9 = arith.cmpi eq, %arg1, %c2_i32 : i32
    %10 = arith.extui %9 : i1 to i32
    %c0_i32_8 = arith.constant 0 : i32
    %11 = arith.cmpi ne, %10, %c0_i32_8 : i32
    scf.if %11 {
      %c0_9 = arith.constant 0 : index
      %c0_10 = arith.constant 0 : index
      %12 = vector.load %arg12[%c0_9, %c0_10] : memref<256x128xf32, #tpu.memory_space<vmem>>, vector<256x128xf32>
      %c0_11 = arith.constant 0 : index
      %c0_12 = arith.constant 0 : index
      %13 = vector.load %arg4[%c0_11, %c0_12] : memref<1x128xf32, #tpu.memory_space<vmem>>, vector<1x128xf32>
      %14 = vector.broadcast %13 : vector<1x128xf32> to vector<256x128xf32>
      %15 = arith.addf %12, %14 : vector<256x128xf32>
      %cst_13 = arith.constant 0.000000e+00 : f32
      %16 = vector.broadcast %cst_13 : f32 to vector<256x128xf32>
      %17 = arith.maximumf %15, %16 : vector<256x128xf32>
      %18 = arith.truncf %17 : vector<256x128xf32> to vector<256x128xbf16>
      %c0_14 = arith.constant 0 : index
      %c0_15 = arith.constant 0 : index
      %19 = vector.load %arg5[%c0_14, %c0_15] : memref<128x128xbf16, #tpu.memory_space<vmem>>, vector<128x128xbf16>
      %cst_16 = arith.constant dense<0.000000e+00> : vector<256x128xf32>
      %20 = tpu.matmul %18, %19, %cst_16 {dimension_numbers = #tpu.dot_dimension_numbers<[1], [0], [0], [1], [0, 0, 1, 1], [], []>} : vector<256x128xbf16>, vector<128x128xbf16>, vector<256x128xf32> -> vector<256x128xf32>
      %c0_17 = arith.constant 0 : index
      %c0_18 = arith.constant 0 : index
      %21 = vector.load %arg6[%c0_17, %c0_18] : memref<1x128xf32, #tpu.memory_space<vmem>>, vector<1x128xf32>
      %22 = vector.broadcast %21 : vector<1x128xf32> to vector<256x128xf32>
      %23 = arith.addf %20, %22 : vector<256x128xf32>
      %cst_19 = arith.constant 0.000000e+00 : f32
      %24 = vector.broadcast %cst_19 : f32 to vector<256x128xf32>
      %25 = arith.maximumf %23, %24 : vector<256x128xf32>
      %26 = arith.truncf %25 : vector<256x128xf32> to vector<256x128xbf16>
      %c0_20 = arith.constant 0 : index
      %c0_21 = arith.constant 0 : index
      %27 = vector.load %arg7[%c0_20, %c0_21] : memref<128x128xbf16, #tpu.memory_space<vmem>>, vector<128x128xbf16>
      %cst_22 = arith.constant dense<0.000000e+00> : vector<256x128xf32>
      %28 = tpu.matmul %26, %27, %cst_22 {dimension_numbers = #tpu.dot_dimension_numbers<[1], [0], [0], [1], [0, 0, 1, 1], [], []>} : vector<256x128xbf16>, vector<128x128xbf16>, vector<256x128xf32> -> vector<256x128xf32>
      %c0_23 = arith.constant 0 : index
      %c0_24 = arith.constant 0 : index
      %29 = vector.load %arg8[%c0_23, %c0_24] : memref<1x128xf32, #tpu.memory_space<vmem>>, vector<1x128xf32>
      %30 = vector.broadcast %29 : vector<1x128xf32> to vector<256x128xf32>
      %31 = arith.addf %28, %30 : vector<256x128xf32>
      %cst_25 = arith.constant 0.000000e+00 : f32
      %32 = vector.broadcast %cst_25 : f32 to vector<256x128xf32>
      %33 = arith.maximumf %31, %32 : vector<256x128xf32>
      %34 = arith.truncf %33 : vector<256x128xf32> to vector<256x128xbf16>
      %c0_26 = arith.constant 0 : index
      %c0_27 = arith.constant 0 : index
      %35 = vector.load %arg9[%c0_26, %c0_27] : memref<128x128xbf16, #tpu.memory_space<vmem>>, vector<128x128xbf16>
      %cst_28 = arith.constant dense<0.000000e+00> : vector<256x128xf32>
      %36 = tpu.matmul %34, %35, %cst_28 {dimension_numbers = #tpu.dot_dimension_numbers<[1], [0], [0], [1], [0, 0, 1, 1], [], []>} : vector<256x128xbf16>, vector<128x128xbf16>, vector<256x128xf32> -> vector<256x128xf32>
      %c0_29 = arith.constant 0 : index
      %c0_30 = arith.constant 0 : index
      %37 = vector.load %arg10[%c0_29, %c0_30] : memref<1x128xf32, #tpu.memory_space<vmem>>, vector<1x128xf32>
      %38 = vector.broadcast %37 : vector<1x128xf32> to vector<256x128xf32>
      %39 = arith.addf %36, %38 : vector<256x128xf32>
      %40 = arith.negf %39 : vector<256x128xf32>
      %41 = math.exp %40 : vector<256x128xf32>
      %cst_31 = arith.constant 1.000000e+00 : f32
      %42 = vector.broadcast %cst_31 : f32 to vector<256x128xf32>
      %43 = arith.addf %42, %41 : vector<256x128xf32>
      %44 = arith.divf %42, %43 : vector<256x128xf32>
      %45 = arith.truncf %44 : vector<256x128xf32> to vector<256x128xbf16>
      %c0_32 = arith.constant 0 : index
      %c0_33 = arith.constant 0 : index
      %46 = vector.load %arg11[%c0_32, %c0_33] : memref<256x128xbf16, #tpu.memory_space<vmem>>, vector<256x128xbf16>
      tpu.vector_store %arg11[%c0_32, %c0_33], %45 {strides = array<i32>} : memref<256x128xbf16, #tpu.memory_space<vmem>>, vector<256x128xbf16>,
    } else {
    }
    return
  }
  func.func @transform_0(%arg0: i32, %arg1: i32) -> (i32, i32) {
    %c0_i32 = arith.constant 0 : i32
    return %arg0, %arg1 : i32, i32
  }
  func.func @transform_1(%arg0: i32, %arg1: i32) -> (i32, i32) {
    %c0_i32 = arith.constant 0 : i32
    %c0_i32_0 = arith.constant 0 : i32
    return %arg1, %c0_i32 : i32, i32
  }
  func.func @transform_2(%arg0: i32, %arg1: i32) -> (i32, i32) {
    %c0_i32 = arith.constant 0 : i32
    %c0_i32_0 = arith.constant 0 : i32
    %c0_i32_1 = arith.constant 0 : i32
    return %c0_i32, %c0_i32_0 : i32, i32
  }
  func.func @transform_3(%arg0: i32, %arg1: i32) -> (i32, i32) {
    %c0_i32 = arith.constant 0 : i32
    %c0_i32_0 = arith.constant 0 : i32
    %c0_i32_1 = arith.constant 0 : i32
    return %c0_i32, %c0_i32_0 : i32, i32
  }
  func.func @transform_4(%arg0: i32, %arg1: i32) -> (i32, i32) {
    %c0_i32 = arith.constant 0 : i32
    %c0_i32_0 = arith.constant 0 : i32
    %c0_i32_1 = arith.constant 0 : i32
    return %c0_i32, %c0_i32_0 : i32, i32
  }
  func.func @transform_5(%arg0: i32, %arg1: i32) -> (i32, i32) {
    %c0_i32 = arith.constant 0 : i32
    %c0_i32_0 = arith.constant 0 : i32
    %c0_i32_1 = arith.constant 0 : i32
    return %c0_i32, %c0_i32_0 : i32, i32
  }
  func.func @transform_6(%arg0: i32, %arg1: i32) -> (i32, i32) {
    %c0_i32 = arith.constant 0 : i32
    %c0_i32_0 = arith.constant 0 : i32
    %c0_i32_1 = arith.constant 0 : i32
    return %c0_i32, %c0_i32_0 : i32, i32
  }
  func.func @transform_7(%arg0: i32, %arg1: i32) -> (i32, i32) {
    %c0_i32 = arith.constant 0 : i32
    %c0_i32_0 = arith.constant 0 : i32
    %c0_i32_1 = arith.constant 0 : i32
    return %c0_i32, %c0_i32_0 : i32, i32
  }
  func.func @transform_8(%arg0: i32, %arg1: i32) -> (i32, i32) {
    %c0_i32 = arith.constant 0 : i32
    %c0_i32_0 = arith.constant 0 : i32
    %c0_i32_1 = arith.constant 0 : i32
    return %c0_i32, %c0_i32_0 : i32, i32
  }
  func.func @transform_9(%arg0: i32, %arg1: i32) -> (i32, i32) {
    %c0_i32 = arith.constant 0 : i32
    %c0_i32_0 = arith.constant 0 : i32
    return %arg0, %c0_i32 : i32, i32
  }
}

module attributes {stable_mosaic.version = 11 : i64} {
  func.func @_target_model_kernel(%arg0: i32, %arg1: i32, %arg2: memref<256x128xbf16, #tpu.memory_space<vmem>>, %arg3: memref<128x128xbf16, #tpu.memory_space<vmem>>, %arg4: memref<1x128xf32, #tpu.memory_space<vmem>>, %arg5: memref<128x128xbf16, #tpu.memory_space<vmem>>, %arg6: memref<1x128xf32, #tpu.memory_space<vmem>>, %arg7: memref<128x128xbf16, #tpu.memory_space<vmem>>, %arg8: memref<1x128xf32, #tpu.memory_space<vmem>>, %arg9: memref<128x128xbf16, #tpu.memory_space<vmem>>, %arg10: memref<1x128xf32, #tpu.memory_space<vmem>>, %arg11: memref<256x128xbf16, #tpu.memory_space<vmem>>, %arg12: memref<256x128xf32, #tpu.memory_space<vmem>>) attributes {dimension_semantics = [#tpu.dimension_semantics<parallel>, #tpu.dimension_semantics<arbitrary>], iteration_bounds = array<i64: 2, 3>, scalar_prefetch = 0 : i64, scratch_operands = 1 : i64, tpu.core_type = #tpu.core_type<tc>, window_params = [{transform_indices = @transform_0, window_bounds = array<i64: 256, 128>}, {transform_indices = @transform_1, window_bounds = array<i64: 128, 128>}, {pipeline_mode = #tpu.pipeline_mode<synchronous>, transform_indices = @transform_2, window_bounds = array<i64: 1, 128>}, {pipeline_mode = #tpu.pipeline_mode<synchronous>, transform_indices = @transform_3, window_bounds = array<i64: 128, 128>}, {pipeline_mode = #tpu.pipeline_mode<synchronous>, transform_indices = @transform_4, window_bounds = array<i64: 1, 128>}, {pipeline_mode = #tpu.pipeline_mode<synchronous>, transform_indices = @transform_5, window_bounds = array<i64: 128, 128>}, {pipeline_mode = #tpu.pipeline_mode<synchronous>, transform_indices = @transform_6, window_bounds = array<i64: 1, 128>}, {pipeline_mode = #tpu.pipeline_mode<synchronous>, transform_indices = @transform_7, window_bounds = array<i64: 128, 128>}, {pipeline_mode = #tpu.pipeline_mode<synchronous>, transform_indices = @transform_8, window_bounds = array<i64: 1, 128>}, {transform_indices = @transform_9, window_bounds = array<i64: 256, 128>}]} {
    %c0_i32 = arith.constant 0 : i32
    %0 = arith.cmpi eq, %arg1, %c0_i32 : i32
    %1 = arith.extui %0 : i1 to i32
    %c0_i32_0 = arith.constant 0 : i32
    %2 = arith.cmpi ne, %1, %c0_i32_0 : i32
    scf.if %2 {
      %cst_9 = arith.constant 0.000000e+00 : f32
      %12 = vector.broadcast %cst_9 : f32 to vector<256x128xf32>
      %c0_10 = arith.constant 0 : index
      %c0_11 = arith.constant 0 : index
      %13 = vector.load %arg12[%c0_10, %c0_11] : memref<256x128xf32, #tpu.memory_space<vmem>>, vector<256x128xf32>
      tpu.vector_store %arg12[%c0_10, %c0_11], %12 {strides = array<i32>} : memref<256x128xf32, #tpu.memory_space<vmem>>, vector<256x128xf32>,
    } else {
    }
    %c0 = arith.constant 0 : index
    %c0_1 = arith.constant 0 : index
    %3 = vector.load %arg12[%c0, %c0_1] : memref<256x128xf32, #tpu.memory_space<vmem>>, vector<256x128xf32>
    %c0_2 = arith.constant 0 : index
    %c0_3 = arith.constant 0 : index
    %4 = vector.load %arg2[%c0_2, %c0_3] : memref<256x128xbf16, #tpu.memory_space<vmem>>, vector<256x128xbf16>
    %c0_4 = arith.constant 0 : index
    %c0_5 = arith.constant 0 : index
    %5 = vector.load %arg3[%c0_4, %c0_5] : memref<128x128xbf16, #tpu.memory_space<vmem>>, vector<128x128xbf16>
    %cst = arith.constant dense<0.000000e+00> : vector<256x128xf32>
    %6 = tpu.matmul %4, %5, %cst {dimension_numbers = #tpu.dot_dimension_numbers<[1], [0], [0], [1], [0, 0, 1, 1], [], []>} : vector<256x128xbf16>, vector<128x128xbf16>, vector<256x128xf32> -> vector<256x128xf32>
    %7 = arith.addf %3, %6 : vector<256x128xf32>
    %c0_6 = arith.constant 0 : index
    %c0_7 = arith.constant 0 : index
    %8 = vector.load %arg12[%c0_6, %c0_7] : memref<256x128xf32, #tpu.memory_space<vmem>>, vector<256x128xf32>
    tpu.vector_store %arg12[%c0_6, %c0_7], %7 {strides = array<i32>} : memref<256x128xf32, #tpu.memory_space<vmem>>, vector<256x128xf32>,
    %c2_i32 = arith.constant 2 : i32
    %9 = arith.cmpi eq, %arg1, %c2_i32 : i32
    %10 = arith.extui %9 : i1 to i32
    %c0_i32_8 = arith.constant 0 : i32
    %11 = arith.cmpi ne, %10, %c0_i32_8 : i32
    scf.if %11 {
      %c0_9 = arith.constant 0 : index
      %c0_10 = arith.constant 0 : index
      %12 = vector.load %arg12[%c0_9, %c0_10] : memref<256x128xf32, #tpu.memory_space<vmem>>, vector<256x128xf32>
      %c0_11 = arith.constant 0 : index
      %c0_12 = arith.constant 0 : index
      %13 = vector.load %arg4[%c0_11, %c0_12] : memref<1x128xf32, #tpu.memory_space<vmem>>, vector<1x128xf32>
      %14 = vector.broadcast %13 : vector<1x128xf32> to vector<256x128xf32>
      %15 = arith.addf %12, %14 : vector<256x128xf32>
      %cst_13 = arith.constant 0.000000e+00 : f32
      %16 = vector.broadcast %cst_13 : f32 to vector<256x128xf32>
      %17 = arith.maximumf %15, %16 : vector<256x128xf32>
      %18 = arith.truncf %17 : vector<256x128xf32> to vector<256x128xbf16>
      %c0_14 = arith.constant 0 : index
      %c0_15 = arith.constant 0 : index
      %19 = vector.load %arg5[%c0_14, %c0_15] : memref<128x128xbf16, #tpu.memory_space<vmem>>, vector<128x128xbf16>
      %cst_16 = arith.constant dense<0.000000e+00> : vector<256x128xf32>
      %20 = tpu.matmul %18, %19, %cst_16 {dimension_numbers = #tpu.dot_dimension_numbers<[1], [0], [0], [1], [0, 0, 1, 1], [], []>} : vector<256x128xbf16>, vector<128x128xbf16>, vector<256x128xf32> -> vector<256x128xf32>
      %c0_17 = arith.constant 0 : index
      %c0_18 = arith.constant 0 : index
      %21 = vector.load %arg6[%c0_17, %c0_18] : memref<1x128xf32, #tpu.memory_space<vmem>>, vector<1x128xf32>
      %22 = vector.broadcast %21 : vector<1x128xf32> to vector<256x128xf32>
      %23 = arith.addf %20, %22 : vector<256x128xf32>
      %cst_19 = arith.constant 0.000000e+00 : f32
      %24 = vector.broadcast %cst_19 : f32 to vector<256x128xf32>
      %25 = arith.maximumf %23, %24 : vector<256x128xf32>
      %26 = arith.truncf %25 : vector<256x128xf32> to vector<256x128xbf16>
      %c0_20 = arith.constant 0 : index
      %c0_21 = arith.constant 0 : index
      %27 = vector.load %arg7[%c0_20, %c0_21] : memref<128x128xbf16, #tpu.memory_space<vmem>>, vector<128x128xbf16>
      %cst_22 = arith.constant dense<0.000000e+00> : vector<256x128xf32>
      %28 = tpu.matmul %26, %27, %cst_22 {dimension_numbers = #tpu.dot_dimension_numbers<[1], [0], [0], [1], [0, 0, 1, 1], [], []>} : vector<256x128xbf16>, vector<128x128xbf16>, vector<256x128xf32> -> vector<256x128xf32>
      %c0_23 = arith.constant 0 : index
      %c0_24 = arith.constant 0 : index
      %29 = vector.load %arg8[%c0_23, %c0_24] : memref<1x128xf32, #tpu.memory_space<vmem>>, vector<1x128xf32>
      %30 = vector.broadcast %29 : vector<1x128xf32> to vector<256x128xf32>
      %31 = arith.addf %28, %30 : vector<256x128xf32>
      %cst_25 = arith.constant 0.000000e+00 : f32
      %32 = vector.broadcast %cst_25 : f32 to vector<256x128xf32>
      %33 = arith.maximumf %31, %32 : vector<256x128xf32>
      %34 = arith.truncf %33 : vector<256x128xf32> to vector<256x128xbf16>
      %c0_26 = arith.constant 0 : index
      %c0_27 = arith.constant 0 : index
      %35 = vector.load %arg9[%c0_26, %c0_27] : memref<128x128xbf16, #tpu.memory_space<vmem>>, vector<128x128xbf16>
      %cst_28 = arith.constant dense<0.000000e+00> : vector<256x128xf32>
      %36 = tpu.matmul %34, %35, %cst_28 {dimension_numbers = #tpu.dot_dimension_numbers<[1], [0], [0], [1], [0, 0, 1, 1], [], []>} : vector<256x128xbf16>, vector<128x128xbf16>, vector<256x128xf32> -> vector<256x128xf32>
      %c0_29 = arith.constant 0 : index
      %c0_30 = arith.constant 0 : index
      %37 = vector.load %arg10[%c0_29, %c0_30] : memref<1x128xf32, #tpu.memory_space<vmem>>, vector<1x128xf32>
      %38 = vector.broadcast %37 : vector<1x128xf32> to vector<256x128xf32>
      %39 = arith.addf %36, %38 : vector<256x128xf32>
      %40 = arith.negf %39 : vector<256x128xf32>
      %41 = math.exp %40 : vector<256x128xf32>
      %cst_31 = arith.constant 1.000000e+00 : f32
      %42 = vector.broadcast %cst_31 : f32 to vector<256x128xf32>
      %43 = arith.addf %42, %41 : vector<256x128xf32>
      %44 = arith.divf %42, %43 : vector<256x128xf32>
      %45 = arith.truncf %44 : vector<256x128xf32> to vector<256x128xbf16>
      %c0_32 = arith.constant 0 : index
      %c0_33 = arith.constant 0 : index
      %46 = vector.load %arg11[%c0_32, %c0_33] : memref<256x128xbf16, #tpu.memory_space<vmem>>, vector<256x128xbf16>
      tpu.vector_store %arg11[%c0_32, %c0_33], %45 {strides = array<i32>} : memref<256x128xbf16, #tpu.memory_space<vmem>>, vector<256x128xbf16>,
    } else {
    }
    return
  }
  func.func @transform_0(%arg0: i32, %arg1: i32) -> (i32, i32) {
    %c0_i32 = arith.constant 0 : i32
    return %arg0, %arg1 : i32, i32
  }
  func.func @transform_1(%arg0: i32, %arg1: i32) -> (i32, i32) {
    %c0_i32 = arith.constant 0 : i32
    %c0_i32_0 = arith.constant 0 : i32
    return %arg1, %c0_i32 : i32, i32
  }
  func.func @transform_2(%arg0: i32, %arg1: i32) -> (i32, i32) {
    %c0_i32 = arith.constant 0 : i32
    %c0_i32_0 = arith.constant 0 : i32
    %c0_i32_1 = arith.constant 0 : i32
    return %c0_i32, %c0_i32_0 : i32, i32
  }
  func.func @transform_3(%arg0: i32, %arg1: i32) -> (i32, i32) {
    %c0_i32 = arith.constant 0 : i32
    %c0_i32_0 = arith.constant 0 : i32
    %c0_i32_1 = arith.constant 0 : i32
    return %c0_i32, %c0_i32_0 : i32, i32
  }
  func.func @transform_4(%arg0: i32, %arg1: i32) -> (i32, i32) {
    %c0_i32 = arith.constant 0 : i32
    %c0_i32_0 = arith.constant 0 : i32
    %c0_i32_1 = arith.constant 0 : i32
    return %c0_i32, %c0_i32_0 : i32, i32
  }
  func.func @transform_5(%arg0: i32, %arg1: i32) -> (i32, i32) {
    %c0_i32 = arith.constant 0 : i32
    %c0_i32_0 = arith.constant 0 : i32
    %c0_i32_1 = arith.constant 0 : i32
    return %c0_i32, %c0_i32_0 : i32, i32
  }
  func.func @transform_6(%arg0: i32, %arg1: i32) -> (i32, i32) {
    %c0_i32 = arith.constant 0 : i32
    %c0_i32_0 = arith.constant 0 : i32
    %c0_i32_1 = arith.constant 0 : i32
    return %c0_i32, %c0_i32_0 : i32, i32
  }
  func.func @transform_7(%arg0: i32, %arg1: i32) -> (i32, i32) {
    %c0_i32 = arith.constant 0 : i32
    %c0_i32_0 = arith.constant 0 : i32
    %c0_i32_1 = arith.constant 0 : i32
    return %c0_i32, %c0_i32_0 : i32, i32
  }
  func.func @transform_8(%arg0: i32, %arg1: i32) -> (i32, i32) {
    %c0_i32 = arith.constant 0 : i32
    %c0_i32_0 = arith.constant 0 : i32
    %c0_i32_1 = arith.constant 0 : i32
    return %c0_i32, %c0_i32_0 : i32, i32
  }
  func.func @transform_9(%arg0: i32, %arg1: i32) -> (i32, i32) {
    %c0_i32 = arith.constant 0 : i32
    %c0_i32_0 = arith.constant 0 : i32
    return %arg0, %c0_i32 : i32, i32
  }
}

</mosaic_0001>

<llo_original>
// kernel: tpu_custom_call.1
$region0: #{tpu_custom_call.1}
  #allocation0 [shape = 'u32[]', space=smem, size = 0x4, offset = 0x4, fixed_abs, tag = 'smem constant byte address 0x4 - core index']
  #allocation1 [shape = 'u32[144,128]{1,0:T(1,128)}', space=vmem, size = 0x12000, scoped, tag = 'internal scratch']
  #allocation2 [shape = 'f32[256,128]{1,0:T(8,128)}', space=vmem, size = 0x20000, scoped, tag = 'scratch operand']
  %s0 = inlined_call_operand.hbm [shape: bf16[512,384], index: 0, kind: input, shape index: {}]
  %s1 = inlined_call_operand.hbm [shape: bf16[384,128], index: 1, kind: input, shape index: {}]
  %s2 = inlined_call_operand.vmem [shape: f32[1,128], index: 2, kind: input, shape index: {}]
  %s3 = inlined_call_operand.hbm [shape: bf16[128,128], index: 3, kind: input, shape index: {}]
  %s4 = inlined_call_operand.vmem [shape: f32[1,128], index: 4, kind: input, shape index: {}]
  %s5 = inlined_call_operand.hbm [shape: bf16[128,128], index: 5, kind: input, shape index: {}]
  %s6 = inlined_call_operand.vmem [shape: f32[1,128], index: 6, kind: input, shape index: {}]
  %s7 = inlined_call_operand.hbm [shape: bf16[128,128], index: 7, kind: input, shape index: {}]
  %s8 = inlined_call_operand.vmem [shape: f32[1,128], index: 8, kind: input, shape index: {}]
  %s9 = inlined_call_operand.hbm [shape: bf16[512,128], index: 9, kind: output, shape index: {}]
  %s10 = sld [smem:[#allocation0]]
  $region97: #{tpu_custom_call.1} parent=0
    _
  %s12 = ssub.s32 1, %s10
  %s13 = scalar_select 0, %s12, %s10
  $region1: #{tpu_custom_call.1} parent=0
    #allocation3 [shape = 'u8[131072]{0}', space=vmem, size = 0x20000, scoped, tag = 'input window, operand 0']
    #allocation4 [shape = 's32[2]{0}', space=sflag, size = 0x8, scoped, tag = 'scoped memory for tpu_custom_call.1']
    #allocation5 [shape = 's32[2]{0}', space=sflag, size = 0x8, scoped, tag = 'scoped memory for tpu_custom_call.1']
    #allocation6 [shape = 'u8[65536]{0}', space=vmem, size = 0x10000, scoped, tag = 'input window, operand 1']
    #allocation7 [shape = 's32[2]{0}', space=sflag, size = 0x8, scoped, tag = 'scoped memory for tpu_custom_call.1']
    #allocation8 [shape = 'u8[32768]{0}', space=vmem, size = 0x8000, scoped, tag = 'input window, operand 3, single buffered']
    #allocation9 [shape = 'u8[32768]{0}', space=vmem, size = 0x8000, scoped, tag = 'input window, operand 5, single buffered']
    #allocation10 [shape = 's32[1]{0}', space=sflag, size = 0x4, scoped, tag = 'scoped memory for tpu_custom_call.1']
    #allocation11 [shape = 'u8[32768]{0}', space=vmem, size = 0x8000, scoped, tag = 'input window, operand 7, single buffered']
    #allocation12 [shape = 'u8[131072]{0}', space=vmem, size = 0x20000, scoped, tag = 'output window, operand 0']
    %14 = vsyncpa [#allocation4], 0
    %s15 = scalar_lea.sflag [#allocation4], 1
    %16 = vsyncpa %s15, 0
    %17 = vsyncpa [#allocation7], 0
    %s18 = scalar_lea.sflag [#allocation7], 1
    %19 = vsyncpa %s18, 0
    %20 = vsyncpa [#allocation10], 0
    %21 = vsyncpa [#allocation5], 0
    %s22 = scalar_lea.sflag [#allocation5], 1
    %23 = vsyncpa %s22, 0
    loop: start=0, step=1, limit=8
    $region2: #{tpu_custom_call.1} parent=1 // loop_pre_header
      _
    $region3: #{tpu_custom_call.1} parent=1 // loop_header
      %s25 = sphi 0, %s29
      %p26 = scmp.ge.s32.totalorder %s25, 8
      %s32 = sphi 0, %s44
      %s33 = sphi 0, %s40
      %s34 = sphi 0, %s32
      %s35 = sphi 0, %s33
      %s36 = sphi 0, %s34
      %s37 = sphi 0, %s35
      %s49 = sphi 0, %s51
      %s52 = sphi 0, %s49
      %s53 = sphi 0, %s52
      %s69 = sphi 0, %s53
      %s75 = sphi 0, %s77
      %s78 = sphi 0, %s75
      %s79 = sphi 0, %s78
      %s95 = sphi 0, %s79
      %s99 = sphi 0, %s99
      %s101 = sphi 0, %s99
      %s102 = sphi 0, %s101
      %s116 = sphi 0, %s102
      %s120 = sphi 0, %s120
      %s122 = sphi 0, %s120
      %s123 = sphi 0, %s122
      %s137 = sphi 0, %s123
      %s141 = sphi 0, %s141
      %s143 = sphi 0, %s141
      %s144 = sphi 0, %s143
      %s158 = sphi 0, %s144
      %s162 = sphi 0, %s162
      %s164 = sphi 0, %s162
      %s165 = sphi 0, %s164
      %s179 = sphi 0, %s165
      %s183 = sphi 0, %s183
      %s185 = sphi 0, %s183
      %s186 = sphi 0, %s185
      %s200 = sphi 0, %s186
      %s204 = sphi 0, %s204
      %s206 = sphi 0, %s204
      %s207 = sphi 0, %s206
      %s221 = sphi 0, %s207
      %s225 = sphi 0, %s225
      %s227 = sphi 0, %s225
      %s228 = sphi 0, %s227
      %s242 = sphi 0, %s228
      %s248 = sphi 0, %s250
      %s251 = sphi 0, %s248
      %s252 = sphi 0, %s251
      %s268 = sphi 0, %s252
    $region4: #{tpu_custom_call.1} parent=1 // loop_header_branch
      %28 = sbr.rel (%p26) target = $region8
    $region5: #{tpu_custom_call.1} parent=1 // loop_body
      %s30 = ssub.s32 %s25, 1
      %s31 = ssub.s32 %s25, 2
      %s38 = sadd.s32 1, %s33
      %p39 = scmp.ge.s32.totalorder %s38, 3
      %s40 = scalar_select %p39, 0, %s38
      %s41 = sadd.s32 1, %s32
      %s42 = scalar_select %p39, %s41, %s32
      %p43 = scmp.ge.s32.totalorder %s42, 2
      %s44 = scalar_select %p43, 0, %s42
      %s45 = ssub.s32 %s32, %s44
      %s46 = ssub.s32 %s33, %s40
      %s47 = sor.u32 %s45, %s46
      %p48 = scmp.eq.s32.totalorder %s47, 0
      %s50 = sadd.s32 %s49, 1
      %s51 = scalar_select %p48, %s49, %s50
      %p54 = pneg %p48
      %p55 = scmp.eq.s32.totalorder %s25, 5
      %p56 = por %p54, %p55
      %p57 = scmp.ne.s32.totalorder %s49, %s52
      %p58 = scmp.eq.s32.totalorder %s25, 0
      %p59 = por %p57, %p58
      %p60 = scmp.ne.s32.totalorder %s49, %s52
      %p61 = scmp.eq.s32.totalorder %s30, 5
      %p62 = por %p60, %p61
      %p63 = scmp.ne.s32.totalorder %s52, %s53
      %p64 = scmp.eq.s32.totalorder %s30, 0
      %p65 = por %p63, %p64
      %p66 = scmp.ne.s32.totalorder %s52, %s53
      %p67 = scmp.eq.s32.totalorder %s31, 5
      %p68 = por %p66, %p67
      %p70 = scmp.ne.s32.totalorder %s53, %s69
      %p71 = scmp.eq.s32.totalorder %s31, 0
      %p72 = por %p70, %p71
      %s73 = ssub.s32 %s33, %s40
      %p74 = scmp.eq.s32.totalorder %s73, 0
      %s76 = sadd.s32 %s75, 1
      %s77 = scalar_select %p74, %s75, %s76
      %p80 = pneg %p74
      %p81 = scmp.eq.s32.totalorder %s25, 5
      %p82 = por %p80, %p81
      %p83 = scmp.ne.s32.totalorder %s75, %s78
      %p84 = scmp.eq.s32.totalorder %s25, 0
      %p85 = por %p83, %p84
      %p86 = scmp.ne.s32.totalorder %s75, %s78
      %p87 = scmp.eq.s32.totalorder %s30, 5
      %p88 = por %p86, %p87
      %p89 = scmp.ne.s32.totalorder %s78, %s79
      %p90 = scmp.eq.s32.totalorder %s30, 0
      %p91 = por %p89, %p90
      %p92 = scmp.ne.s32.totalorder %s78, %s79
      %p93 = scmp.eq.s32.totalorder %s31, 5
      %p94 = por %p92, %p93
      %p96 = scmp.ne.s32.totalorder %s79, %s95
      %p97 = scmp.eq.s32.totalorder %s31, 0
      %p98 = por %p96, %p97
      %s100 = sadd.s32 %s99, 1
      %p103 = scmp.eq.s32.totalorder %s25, 5
      %p104 = scmp.ne.s32.totalorder %s99, %s101
      %p105 = scmp.eq.s32.totalorder %s25, 0
      %p106 = por %p104, %p105
      %p107 = scmp.ne.s32.totalorder %s99, %s101
      %p108 = scmp.eq.s32.totalorder %s30, 5
      %p109 = por %p107, %p108
      %p110 = scmp.ne.s32.totalorder %s101, %s102
      %p111 = scmp.eq.s32.totalorder %s30, 0
      %p112 = por %p110, %p111
      %p113 = scmp.ne.s32.totalorder %s101, %s102
      %p114 = scmp.eq.s32.totalorder %s31, 5
      %p115 = por %p113, %p114
      %p117 = scmp.ne.s32.totalorder %s102, %s116
      %p118 = scmp.eq.s32.totalorder %s31, 0
      %p119 = por %p117, %p118
      %s121 = sadd.s32 %s120, 1
      %p124 = scmp.eq.s32.totalorder %s25, 5
      %p125 = scmp.ne.s32.totalorder %s120, %s122
      %p126 = scmp.eq.s32.totalorder %s25, 0
      %p127 = por %p125, %p126
      %p128 = scmp.ne.s32.totalorder %s120, %s122
      %p129 = scmp.eq.s32.totalorder %s30, 5
      %p130 = por %p128, %p129
      %p131 = scmp.ne.s32.totalorder %s122, %s123
      %p132 = scmp.eq.s32.totalorder %s30, 0
      %p133 = por %p131, %p132
      %p134 = scmp.ne.s32.totalorder %s122, %s123
      %p135 = scmp.eq.s32.totalorder %s31, 5
      %p136 = por %p134, %p135
      %p138 = scmp.ne.s32.totalorder %s123, %s137
      %p139 = scmp.eq.s32.totalorder %s31, 0
      %p140 = por %p138, %p139
      %s142 = sadd.s32 %s141, 1
      %p145 = scmp.eq.s32.totalorder %s25, 5
      %p146 = scmp.ne.s32.totalorder %s141, %s143
      %p147 = scmp.eq.s32.totalorder %s25, 0
      %p148 = por %p146, %p147
      %p149 = scmp.ne.s32.totalorder %s141, %s143
      %p150 = scmp.eq.s32.totalorder %s30, 5
      %p151 = por %p149, %p150
      %p152 = scmp.ne.s32.totalorder %s143, %s144
      %p153 = scmp.eq.s32.totalorder %s30, 0
      %p154 = por %p152, %p153
      %p155 = scmp.ne.s32.totalorder %s143, %s144
      %p156 = scmp.eq.s32.totalorder %s31, 5
      %p157 = por %p155, %p156
      %p159 = scmp.ne.s32.totalorder %s144, %s158
      %p160 = scmp.eq.s32.totalorder %s31, 0
      %p161 = por %p159, %p160
      %s163 = sadd.s32 %s162, 1
      %p166 = scmp.eq.s32.totalorder %s25, 5
      %p167 = scmp.ne.s32.totalorder %s162, %s164
      %p168 = scmp.eq.s32.totalorder %s25, 0
      %p169 = por %p167, %p168
      %p170 = scmp.ne.s32.totalorder %s162, %s164
      %p171 = scmp.eq.s32.totalorder %s30, 5
      %p172 = por %p170, %p171
      %p173 = scmp.ne.s32.totalorder %s164, %s165
      %p174 = scmp.eq.s32.totalorder %s30, 0
      %p175 = por %p173, %p174
      %p176 = scmp.ne.s32.totalorder %s164, %s165
      %p177 = scmp.eq.s32.totalorder %s31, 5
      %p178 = por %p176, %p177
      %p180 = scmp.ne.s32.totalorder %s165, %s179
      %p181 = scmp.eq.s32.totalorder %s31, 0
      %p182 = por %p180, %p181
      %s184 = sadd.s32 %s183, 1
      %p187 = scmp.eq.s32.totalorder %s25, 5
      %p188 = scmp.ne.s32.totalorder %s183, %s185
      %p189 = scmp.eq.s32.totalorder %s25, 0
      %p190 = por %p188, %p189
      %p191 = scmp.ne.s32.totalorder %s183, %s185
      %p192 = scmp.eq.s32.totalorder %s30, 5
      %p193 = por %p191, %p192
      %p194 = scmp.ne.s32.totalorder %s185, %s186
      %p195 = scmp.eq.s32.totalorder %s30, 0
      %p196 = por %p194, %p195
      %p197 = scmp.ne.s32.totalorder %s185, %s186
      %p198 = scmp.eq.s32.totalorder %s31, 5
      %p199 = por %p197, %p198
      %p201 = scmp.ne.s32.totalorder %s186, %s200
      %p202 = scmp.eq.s32.totalorder %s31, 0
      %p203 = por %p201, %p202
      %s205 = sadd.s32 %s204, 1
      %p208 = scmp.eq.s32.totalorder %s25, 5
      %p209 = scmp.ne.s32.totalorder %s204, %s206
      %p210 = scmp.eq.s32.totalorder %s25, 0
      %p211 = por %p209, %p210
      %p212 = scmp.ne.s32.totalorder %s204, %s206
      %p213 = scmp.eq.s32.totalorder %s30, 5
      %p214 = por %p212, %p213
      %p215 = scmp.ne.s32.totalorder %s206, %s207
      %p216 = scmp.eq.s32.totalorder %s30, 0
      %p217 = por %p215, %p216
      %p218 = scmp.ne.s32.totalorder %s206, %s207
      %p219 = scmp.eq.s32.totalorder %s31, 5
      %p220 = por %p218, %p219
      %p222 = scmp.ne.s32.totalorder %s207, %s221
      %p223 = scmp.eq.s32.totalorder %s31, 0
      %p224 = por %p222, %p223
      %s226 = sadd.s32 %s225, 1
      %p229 = scmp.eq.s32.totalorder %s25, 5
      %p230 = scmp.ne.s32.totalorder %s225, %s227
      %p231 = scmp.eq.s32.totalorder %s25, 0
      %p232 = por %p230, %p231
      %p233 = scmp.ne.s32.totalorder %s225, %s227
      %p234 = scmp.eq.s32.totalorder %s30, 5
      %p235 = por %p233, %p234
      %p236 = scmp.ne.s32.totalorder %s227, %s228
      %p237 = scmp.eq.s32.totalorder %s30, 0
      %p238 = por %p236, %p237
      %p239 = scmp.ne.s32.totalorder %s227, %s228
      %p240 = scmp.eq.s32.totalorder %s31, 5
      %p241 = por %p239, %p240
      %p243 = scmp.ne.s32.totalorder %s228, %s242
      %p244 = scmp.eq.s32.totalorder %s31, 0
      %p245 = por %p243, %p244
      %s246 = ssub.s32 %s32, %s44
      %p247 = scmp.eq.s32.totalorder %s246, 0
      %s249 = sadd.s32 %s248, 1
      %s250 = scalar_select %p247, %s248, %s249
      %p253 = pneg %p247
      %p254 = scmp.eq.s32.totalorder %s25, 5
      %p255 = por %p253, %p254
      %p256 = scmp.ne.s32.totalorder %s248, %s251
      %p257 = scmp.eq.s32.totalorder %s25, 0
      %p258 = por %p256, %p257
      %p259 = scmp.ne.s32.totalorder %s248, %s251
      %p260 = scmp.eq.s32.totalorder %s30, 5
      %p261 = por %p259, %p260
      %p262 = scmp.ne.s32.totalorder %s251, %s252
      %p263 = scmp.eq.s32.totalorder %s30, 0
      %p264 = por %p262, %p263
      %p265 = scmp.ne.s32.totalorder %s251, %s252
      %p266 = scmp.eq.s32.totalorder %s31, 5
      %p267 = por %p265, %p266
      %p269 = scmp.ne.s32.totalorder %s252, %s268
      %p270 = scmp.eq.s32.totalorder %s31, 0
      %p271 = por %p269, %p270
      %p272 = scmp.le.s32.totalorder 1, %s25
      %p273 = scmp.lt.s32.totalorder %s25, 7
      %p274 = pnand %p272, %p273
      %p275 = pneg %p274
      // Predicated region
      $region9: #{tpu_custom_call.1} parent=5 // pred_check
        _
      $region10: #{tpu_custom_call.1} parent=5 // pred_check_branch
        %277 = sbr.rel (%p274) target = $region12
      $region11: #{tpu_custom_call.1} parent=5 // pred_region
        %s278 = ssub.s32 %s25, 1
        // Predicated region
        $region13: #{tpu_custom_call.1} parent=11 // pred_check
          %p279 = pneg %p112
        $region14: #{tpu_custom_call.1} parent=11 // pred_check_branch
          %281 = sbr.rel (%p279) target = $region16
        $region15: #{tpu_custom_call.1} parent=11 // pred_region
          _
        $region16: #{tpu_custom_call.1} parent=11 // pred_fallthru
          _
        // Predicated region
        $region17: #{tpu_custom_call.1} parent=11 // pred_check
          %p282 = pneg %p133
        $region18: #{tpu_custom_call.1} parent=11 // pred_check_branch
          %284 = sbr.rel (%p282) target = $region20
        $region19: #{tpu_custom_call.1} parent=11 // pred_region
          %s286 = ssub.s32 1024, 1024
          %287 = vsyncadd [#allocation7], %s286
          %s288 = sshll.u32 [#allocation8], 4
          %s289 = int_to_ptr.vmem [resolvable:$true] %s288
          %294 = dma.hbm_to_vmem [thread:$0]  %s3, 1024, %s289, [#allocation7], 64, 64, 4
        $region20: #{tpu_custom_call.1} parent=11 // pred_fallthru
          _
        // Predicated region
        $region21: #{tpu_custom_call.1} parent=11 // pred_check
          %p295 = pneg %p154
        $region22: #{tpu_custom_call.1} parent=11 // pred_check_branch
          %297 = sbr.rel (%p295) target = $region24
        $region23: #{tpu_custom_call.1} parent=11 // pred_region
          _
        $region24: #{tpu_custom_call.1} parent=11 // pred_fallthru
          _
        // Predicated region
        $region25: #{tpu_custom_call.1} parent=11 // pred_check
          %p298 = pneg %p175
        $region26: #{tpu_custom_call.1} parent=11 // pred_check_branch
          %300 = sbr.rel (%p298) target = $region28
        $region27: #{tpu_custom_call.1} parent=11 // pred_region
          %s302 = ssub.s32 1024, 1024
          %303 = vsyncadd [#allocation10], %s302
          %s304 = sshll.u32 [#allocation9], 4
          %s305 = int_to_ptr.vmem [resolvable:$true] %s304
          %310 = dma.hbm_to_vmem [thread:$0]  %s5, 1024, %s305, [#allocation10], 64, 64, 4
        $region28: #{tpu_custom_call.1} parent=11 // pred_fallthru
          _
        // Predicated region
        $region29: #{tpu_custom_call.1} parent=11 // pred_check
          %p311 = pneg %p196
        $region30: #{tpu_custom_call.1} parent=11 // pred_check_branch
          %313 = sbr.rel (%p311) target = $region32
        $region31: #{tpu_custom_call.1} parent=11 // pred_region
          _
        $region32: #{tpu_custom_call.1} parent=11 // pred_fallthru
          _
        // Predicated region
        $region33: #{tpu_custom_call.1} parent=11 // pred_check
          %p314 = pneg %p217
        $region34: #{tpu_custom_call.1} parent=11 // pred_check_branch
          %316 = sbr.rel (%p314) target = $region36
        $region35: #{tpu_custom_call.1} parent=11 // pred_region
          %s318 = ssub.s32 1024, 1024
          %319 = vsyncadd [#allocation10], %s318
          %s320 = sshll.u32 [#allocation11], 4
          %s321 = int_to_ptr.vmem [resolvable:$true] %s320
          %326 = dma.hbm_to_vmem [thread:$0]  %s7, 1024, %s321, [#allocation10], 64, 64, 4
        $region36: #{tpu_custom_call.1} parent=11 // pred_fallthru
          _
        // Predicated region
        $region37: #{tpu_custom_call.1} parent=11 // pred_check
          %p327 = pneg %p238
        $region38: #{tpu_custom_call.1} parent=11 // pred_check_branch
          %329 = sbr.rel (%p327) target = $region40
        $region39: #{tpu_custom_call.1} parent=11 // pred_region
          _
        $region40: #{tpu_custom_call.1} parent=11 // pred_fallthru
          _
      $region12: #{tpu_custom_call.1} parent=5 // pred_fallthru
        _
      %p330 = scmp.lt.s32.totalorder %s25, 6
      // Predicated region
      $region41: #{tpu_custom_call.1} parent=5 // pred_check
        %p331 = pneg %p330
      $region42: #{tpu_custom_call.1} parent=5 // pred_check_branch
        %333 = sbr.rel (%p331) target = $region44
      $region43: #{tpu_custom_call.1} parent=5 // pred_region
        // Predicated region
        $region45: #{tpu_custom_call.1} parent=43 // pred_check
          %p334 = pneg %p59
        $region46: #{tpu_custom_call.1} parent=43 // pred_check_branch
          %336 = sbr.rel (%p334) target = $region48
        $region47: #{tpu_custom_call.1} parent=43 // pred_region
          %s337 = sand.u32 %s49, 1
          %s338 = scalar_lea.sflag [#allocation4], %s337
          %s339 = sand.u32 %s49, 1
          %s340 = smul.addr %s339, 128
          %s341 = scalar_lea.vmem [#allocation3], %s340
          %s342 = smul.u32 32, %s32
          %s344 = ssub.s32 2048, 2048
          %345 = vsyncadd %s338, %s344
          %s346 = smul.addr %s342, 3
          %s347 = sadd.s32 %s33, %s346
          %s348 = smul.addr %s347, 64
          %s349 = scalar_lea.hbm %s0, %s348
          %s350 = sshll.u32 %s341, 4
          %s351 = int_to_ptr.vmem [resolvable:$true] %s350
          %356 = dma.hbm_to_vmem [thread:$0]  %s349, 2048, %s351, %s338, 192, 64, 4
        $region48: #{tpu_custom_call.1} parent=43 // pred_fallthru
          _
        // Predicated region
        $region49: #{tpu_custom_call.1} parent=43 // pred_check
          %p357 = pneg %p85
        $region50: #{tpu_custom_call.1} parent=43 // pred_check_branch
          %359 = sbr.rel (%p357) target = $region52
        $region51: #{tpu_custom_call.1} parent=43 // pred_region
          %s360 = sand.u32 %s25, 1
          %s361 = scalar_lea.sflag [#allocation7], %s360
          %s362 = sand.u32 %s75, 1
          %s363 = smul.addr %s362, 64
          %s364 = scalar_lea.vmem [#allocation6], %s363
          %s365 = smul.u32 16, %s33
          %s367 = ssub.s32 1024, 1024
          %368 = vsyncadd %s361, %s367
          %s369 = smul.addr %s365, 64
          %s370 = scalar_lea.hbm %s1, %s369
          %s371 = sshll.u32 %s364, 4
          %s372 = int_to_ptr.vmem [resolvable:$true] %s371
          %377 = dma.hbm_to_vmem [thread:$0]  %s370, 1024, %s372, %s361, 64, 64, 4
        $region52: #{tpu_custom_call.1} parent=43 // pred_fallthru
          _
      $region44: #{tpu_custom_call.1} parent=5 // pred_fallthru
        _
      %p378 = scmp.le.s32.totalorder 1, %s25
      %p379 = scmp.lt.s32.totalorder %s25, 7
      %p380 = pnand %p378, %p379
      %p381 = pneg %p380
      // Predicated region
      $region53: #{tpu_custom_call.1} parent=5 // pred_check
        _
      $region54: #{tpu_custom_call.1} parent=5 // pred_check_branch
        %383 = sbr.rel (%p380) target = $region56
      $region55: #{tpu_custom_call.1} parent=5 // pred_region
        %s384 = ssub.s32 %s25, 1
        %s385 = sand.u32 %s52, 1
        %s386 = scalar_lea.sflag [#allocation4], %s385
        %s387 = sand.u32 %s52, 1
        %s388 = smul.addr %s387, 128
        %s389 = scalar_lea.vmem [#allocation3], %s388
        // Predicated region
        $region57: #{tpu_custom_call.1} parent=55 // pred_check
          %p390 = pneg %p65
        $region58: #{tpu_custom_call.1} parent=55 // pred_check_branch
          %392 = sbr.rel (%p390) target = $region60
        $region59: #{tpu_custom_call.1} parent=55 // pred_region
          %393 = dma.done %s386, 2048
        $region60: #{tpu_custom_call.1} parent=55 // pred_fallthru
          _
        %s394 = sand.u32 %s30, 1
        %s395 = scalar_lea.sflag [#allocation7], %s394
        %s396 = sand.u32 %s78, 1
        %s397 = smul.addr %s396, 64
        %s398 = scalar_lea.vmem [#allocation6], %s397
        // Predicated region
        $region61: #{tpu_custom_call.1} parent=55 // pred_check
          %p399 = pneg %p91
        $region62: #{tpu_custom_call.1} parent=55 // pred_check_branch
          %401 = sbr.rel (%p399) target = $region64
        $region63: #{tpu_custom_call.1} parent=55 // pred_region
          %402 = dma.done %s395, 1024
        $region64: #{tpu_custom_call.1} parent=55 // pred_fallthru
          _
        // Predicated region
        $region65: #{tpu_custom_call.1} parent=55 // pred_check
          %p403 = pneg %p133
        $region66: #{tpu_custom_call.1} parent=55 // pred_check_branch
          %405 = sbr.rel (%p403) target = $region68
        $region67: #{tpu_custom_call.1} parent=55 // pred_region
          %406 = dma.done [#allocation7], 1024
        $region68: #{tpu_custom_call.1} parent=55 // pred_fallthru
          _
        // Predicated region
        $region69: #{tpu_custom_call.1} parent=55 // pred_check
          %p407 = pneg %p175
        $region70: #{tpu_custom_call.1} parent=55 // pred_check_branch
          %409 = sbr.rel (%p407) target = $region72
        $region71: #{tpu_custom_call.1} parent=55 // pred_region
          %410 = dma.done [#allocation10], 1024
        $region72: #{tpu_custom_call.1} parent=55 // pred_fallthru
          _
        // Predicated region
        $region73: #{tpu_custom_call.1} parent=55 // pred_check
          %p411 = pneg %p217
        $region74: #{tpu_custom_call.1} parent=55 // pred_check_branch
          %413 = sbr.rel (%p411) target = $region76
        $region75: #{tpu_custom_call.1} parent=55 // pred_region
          %414 = dma.done [#allocation10], 1024
        $region76: #{tpu_custom_call.1} parent=55 // pred_fallthru
          _
        %s415 = sand.u32 %s52, 1
        %s416 = scalar_lea.sflag [#allocation4], %s415
        %s417 = sand.u32 %s52, 1
        %s418 = smul.addr %s417, 128
        %s419 = scalar_lea.vmem [#allocation3], %s418
        %p420 = pneg %p65
        %p421 = pneg %p62
        %s422 = sand.u32 %s30, 1
        %s423 = scalar_lea.sflag [#allocation7], %s422
        %s424 = sand.u32 %s78, 1
        %s425 = smul.addr %s424, 64
        %s426 = scalar_lea.vmem [#allocation6], %s425
        %p427 = pneg %p91
        %p428 = pneg %p88
        %p429 = pneg %p112
        %p430 = pneg %p109
        %p431 = pneg %p133
        %p432 = pneg %p130
        %p433 = pneg %p154
        %p434 = pneg %p151
        %p435 = pneg %p175
        %p436 = pneg %p172
        %p437 = pneg %p196
        %p438 = pneg %p193
        %p439 = pneg %p217
        %p440 = pneg %p214
        %p441 = pneg %p238
        %p442 = pneg %p235
        %p443 = pneg %p264
        %p444 = pneg %p261
        %s445 = sand.u32 %s251, 1
        %s446 = scalar_lea.sflag [#allocation5], %s445
        %s447 = sand.u32 %s251, 1
        %s448 = smul.addr %s447, 128
        %s449 = scalar_lea.vmem [#allocation12], %s448
        %s450 = smul.u32 32, %s34
        %s451 = smul.u32 16, %s35
        %s452 = smul.u32 32, %s34
        %p454 = scmp.eq.s32.totalorder %s35, 0
        // Predicated region
        $region77: #{tpu_custom_call.1} parent=55 // pred_check
          %p455 = pneg %p454
        $region78: #{tpu_custom_call.1} parent=55 // pred_check_branch
          %457 = sbr.rel (%p455) target = $region80
        $region79: #{tpu_custom_call.1} parent=55 // pred_region
          %458 = vst [vmem:[#allocation2] sm:$0xff] 0.0
          %459 = vst [vmem:[#allocation2 + $0x8] sm:$0xff] 0.0
          %460 = vst [vmem:[#allocation2 + $0x10] sm:$0xff] 0.0
          %461 = vst [vmem:[#allocation2 + $0x18] sm:$0xff] 0.0
          %462 = vst [vmem:[#allocation2 + $0x20] sm:$0xff] 0.0
          %463 = vst [vmem:[#allocation2 + $0x28] sm:$0xff] 0.0
          %464 = vst [vmem:[#allocation2 + $0x30] sm:$0xff] 0.0
          %465 = vst [vmem:[#allocation2 + $0x38] sm:$0xff] 0.0
          %466 = vst [vmem:[#allocation2 + $0x40] sm:$0xff] 0.0
          %467 = vst [vmem:[#allocation2 + $0x48] sm:$0xff] 0.0
          %468 = vst [vmem:[#allocation2 + $0x50] sm:$0xff] 0.0
          %469 = vst [vmem:[#allocation2 + $0x58] sm:$0xff] 0.0
          %470 = vst [vmem:[#allocation2 + $0x60] sm:$0xff] 0.0
          %471 = vst [vmem:[#allocation2 + $0x68] sm:$0xff] 0.0
          %472 = vst [vmem:[#allocation2 + $0x70] sm:$0xff] 0.0
          %473 = vst [vmem:[#allocation2 + $0x78] sm:$0xff] 0.0
          %474 = vst [vmem:[#allocation2 + $0x80] sm:$0xff] 0.0
          %475 = vst [vmem:[#allocation2 + $0x88] sm:$0xff] 0.0
          %476 = vst [vmem:[#allocation2 + $0x90] sm:$0xff] 0.0
          %477 = vst [vmem:[#allocation2 + $0x98] sm:$0xff] 0.0
          %478 = vst [vmem:[#allocation2 + $0xa0] sm:$0xff] 0.0
          %479 = vst [vmem:[#allocation2 + $0xa8] sm:$0xff] 0.0
          %480 = vst [vmem:[#allocation2 + $0xb0] sm:$0xff] 0.0
          %481 = vst [vmem:[#allocation2 + $0xb8] sm:$0xff] 0.0
          %482 = vst [vmem:[#allocation2 + $0xc0] sm:$0xff] 0.0
          %483 = vst [vmem:[#allocation2 + $0xc8] sm:$0xff] 0.0
          %484 = vst [vmem:[#allocation2 + $0xd0] sm:$0xff] 0.0
          %485 = vst [vmem:[#allocation2 + $0xd8] sm:$0xff] 0.0
          %486 = vst [vmem:[#allocation2 + $0xe0] sm:$0xff] 0.0
          %487 = vst [vmem:[#allocation2 + $0xe8] sm:$0xff] 0.0
          %488 = vst [vmem:[#allocation2 + $0xf0] sm:$0xff] 0.0
          %489 = vst [vmem:[#allocation2 + $0xf8] sm:$0xff] 0.0
        $region80: #{tpu_custom_call.1} parent=55 // pred_fallthru
          _
        %v490 = vld [vmem:[#allocation2] sm:$0xff]
        %v491 = vld [vmem:[#allocation2 + $0x8] sm:$0xff]
        %v492 = vld [vmem:[#allocation2 + $0x10] sm:$0xff]
        %v493 = vld [vmem:[#allocation2 + $0x18] sm:$0xff]
        %v494 = vld [vmem:[#allocation2 + $0x20] sm:$0xff]
        %v495 = vld [vmem:[#allocation2 + $0x28] sm:$0xff]
        %v496 = vld [vmem:[#allocation2 + $0x30] sm:$0xff]
        %v497 = vld [vmem:[#allocation2 + $0x38] sm:$0xff]
        %v498 = vld [vmem:[#allocation2 + $0x40] sm:$0xff]
        %v499 = vld [vmem:[#allocation2 + $0x48] sm:$0xff]
        %v500 = vld [vmem:[#allocation2 + $0x50] sm:$0xff]
        %v501 = vld [vmem:[#allocation2 + $0x58] sm:$0xff]
        %v502 = vld [vmem:[#allocation2 + $0x60] sm:$0xff]
        %v503 = vld [vmem:[#allocation2 + $0x68] sm:$0xff]
        %v504 = vld [vmem:[#allocation2 + $0x70] sm:$0xff]
        %v505 = vld [vmem:[#allocation2 + $0x78] sm:$0xff]
        %v506 = vld [vmem:[#allocation2 + $0x80] sm:$0xff]
        %v507 = vld [vmem:[#allocation2 + $0x88] sm:$0xff]
        %v508 = vld [vmem:[#allocation2 + $0x90] sm:$0xff]
        %v509 = vld [vmem:[#allocation2 + $0x98] sm:$0xff]
        %v510 = vld [vmem:[#allocation2 + $0xa0] sm:$0xff]
        %v511 = vld [vmem:[#allocation2 + $0xa8] sm:$0xff]
        %v512 = vld [vmem:[#allocation2 + $0xb0] sm:$0xff]
        %v513 = vld [vmem:[#allocation2 + $0xb8] sm:$0xff]
        %v514 = vld [vmem:[#allocation2 + $0xc0] sm:$0xff]
        %v515 = vld [vmem:[#allocation2 + $0xc8] sm:$0xff]
        %v516 = vld [vmem:[#allocation2 + $0xd0] sm:$0xff]
        %v517 = vld [vmem:[#allocation2 + $0xd8] sm:$0xff]
        %v518 = vld [vmem:[#allocation2 + $0xe0] sm:$0xff]
        %v519 = vld [vmem:[#allocation2 + $0xe8] sm:$0xff]
        %v520 = vld [vmem:[#allocation2 + $0xf0] sm:$0xff]
        %v521 = vld [vmem:[#allocation2 + $0xf8] sm:$0xff]
        %v522 = vld [vmem:[%s389] sm:$0xf]
        %v523 = vld [vmem:[%s389 + $0x4] sm:$0xf]
        %v524 = vld [vmem:[%s389 + $0x8] sm:$0xf]
        %v525 = vld [vmem:[%s389 + $0xc] sm:$0xf]
        %v526 = vld [vmem:[%s389 + $0x10] sm:$0xf]
        %v527 = vld [vmem:[%s389 + $0x14] sm:$0xf]
        %v528 = vld [vmem:[%s389 + $0x18] sm:$0xf]
        %v529 = vld [vmem:[%s389 + $0x1c] sm:$0xf]
        %v530 = vld [vmem:[%s389 + $0x20] sm:$0xf]
        %v531 = vld [vmem:[%s389 + $0x24] sm:$0xf]
        %v532 = vld [vmem:[%s389 + $0x28] sm:$0xf]
        %v533 = vld [vmem:[%s389 + $0x2c] sm:$0xf]
        %v534 = vld [vmem:[%s389 + $0x30] sm:$0xf]
        %v535 = vld [vmem:[%s389 + $0x34] sm:$0xf]
        %v536 = vld [vmem:[%s389 + $0x38] sm:$0xf]
        %v537 = vld [vmem:[%s389 + $0x3c] sm:$0xf]
        %v538 = vld [vmem:[%s389 + $0x40] sm:$0xf]
        %v539 = vld [vmem:[%s389 + $0x44] sm:$0xf]
        %v540 = vld [vmem:[%s389 + $0x48] sm:$0xf]
        %v541 = vld [vmem:[%s389 + $0x4c] sm:$0xf]
        %v542 = vld [vmem:[%s389 + $0x50] sm:$0xf]
        %v543 = vld [vmem:[%s389 + $0x54] sm:$0xf]
        %v544 = vld [vmem:[%s389 + $0x58] sm:$0xf]
        %v545 = vld [vmem:[%s389 + $0x5c] sm:$0xf]
        %v546 = vld [vmem:[%s389 + $0x60] sm:$0xf]
        %v547 = vld [vmem:[%s389 + $0x64] sm:$0xf]
        %v548 = vld [vmem:[%s389 + $0x68] sm:$0xf]
        %v549 = vld [vmem:[%s389 + $0x6c] sm:$0xf]
        %v550 = vld [vmem:[%s389 + $0x70] sm:$0xf]
        %v551 = vld [vmem:[%s389 + $0x74] sm:$0xf]
        %v552 = vld [vmem:[%s389 + $0x78] sm:$0xf]
        %v553 = vld [vmem:[%s389 + $0x7c] sm:$0xf]
        %v554 = vld [vmem:[%s398] sm:$0xf]
        %v555 = vld [vmem:[%s398 + $0x4] sm:$0xf]
        %v556 = vld [vmem:[%s398 + $0x8] sm:$0xf]
        %v557 = vld [vmem:[%s398 + $0xc] sm:$0xf]
        %v558 = vld [vmem:[%s398 + $0x10] sm:$0xf]
        %v559 = vld [vmem:[%s398 + $0x14] sm:$0xf]
        %v560 = vld [vmem:[%s398 + $0x18] sm:$0xf]
        %v561 = vld [vmem:[%s398 + $0x1c] sm:$0xf]
        %v562 = vld [vmem:[%s398 + $0x20] sm:$0xf]
        %v563 = vld [vmem:[%s398 + $0x24] sm:$0xf]
        %v564 = vld [vmem:[%s398 + $0x28] sm:$0xf]
        %v565 = vld [vmem:[%s398 + $0x2c] sm:$0xf]
        %v566 = vld [vmem:[%s398 + $0x30] sm:$0xf]
        %v567 = vld [vmem:[%s398 + $0x34] sm:$0xf]
        %v568 = vld [vmem:[%s398 + $0x38] sm:$0xf]
        %v569 = vld [vmem:[%s398 + $0x3c] sm:$0xf]
        %v602 = vunpack.c.l.b16 %v522
        %v603 = vunpack.c.l.b16 %v523
        %v604 = vunpack.c.l.b16 %v524
        %v605 = vunpack.c.l.b16 %v525
        %v606 = vunpack.c.l.b16 %v526
        %v607 = vunpack.c.l.b16 %v527
        %v608 = vunpack.c.l.b16 %v528
        %v609 = vunpack.c.l.b16 %v529
        %v610 = vunpack.c.l.b16 %v530
        %v611 = vunpack.c.l.b16 %v531
        %v612 = vunpack.c.l.b16 %v532
        %v613 = vunpack.c.l.b16 %v533
        %v614 = vunpack.c.l.b16 %v534
        %v615 = vunpack.c.l.b16 %v535
        %v616 = vunpack.c.l.b16 %v536
        %v617 = vunpack.c.l.b16 %v537
        %v618 = vunpack.c.l.b16 %v538
        %v619 = vunpack.c.l.b16 %v539
        %v620 = vunpack.c.l.b16 %v540
        %v621 = vunpack.c.l.b16 %v541
        %v622 = vunpack.c.l.b16 %v542
        %v623 = vunpack.c.l.b16 %v543
        %v624 = vunpack.c.l.b16 %v544
        %v625 = vunpack.c.l.b16 %v545
        %v626 = vunpack.c.l.b16 %v546
        %v627 = vunpack.c.l.b16 %v547
        %v628 = vunpack.c.l.b16 %v548
        %v629 = vunpack.c.l.b16 %v549
        %v630 = vunpack.c.l.b16 %v550
        %v631 = vunpack.c.l.b16 %v551
        %v632 = vunpack.c.l.b16 %v552
        %v633 = vunpack.c.l.b16 %v553
        %v634 = vpack.c.b16 %v603, %v602
        %v635 = vpack.c.b16 %v605, %v604
        %v636 = vpack.c.b16 %v607, %v606
        %v637 = vpack.c.b16 %v609, %v608
        %v638 = vpack.c.b16 %v611, %v610
        %v639 = vpack.c.b16 %v613, %v612
        %v640 = vpack.c.b16 %v615, %v614
        %v641 = vpack.c.b16 %v617, %v616
        %v642 = vpack.c.b16 %v619, %v618
        %v643 = vpack.c.b16 %v621, %v620
        %v644 = vpack.c.b16 %v623, %v622
        %v645 = vpack.c.b16 %v625, %v624
        %v646 = vpack.c.b16 %v627, %v626
        %v647 = vpack.c.b16 %v629, %v628
        %v648 = vpack.c.b16 %v631, %v630
        %v649 = vpack.c.b16 %v633, %v632
        %v682 = vunpack.c.l.b16 %v554
        %v683 = vunpack.c.l.b16 %v555
        %v684 = vunpack.c.l.b16 %v556
        %v685 = vunpack.c.l.b16 %v557
        %v686 = vunpack.c.l.b16 %v558
        %v687 = vunpack.c.l.b16 %v559
        %v688 = vunpack.c.l.b16 %v560
        %v689 = vunpack.c.l.b16 %v561
        %v690 = vunpack.c.l.b16 %v562
        %v691 = vunpack.c.l.b16 %v563
        %v692 = vunpack.c.l.b16 %v564
        %v693 = vunpack.c.l.b16 %v565
        %v694 = vunpack.c.l.b16 %v566
        %v695 = vunpack.c.l.b16 %v567
        %v696 = vunpack.c.l.b16 %v568
        %v697 = vunpack.c.l.b16 %v569
        %v698 = vpack.c.b16 %v683, %v682
        %v699 = vpack.c.b16 %v685, %v684
        %v700 = vpack.c.b16 %v687, %v686
        %v701 = vpack.c.b16 %v689, %v688
        %v702 = vpack.c.b16 %v691, %v690
        %v703 = vpack.c.b16 %v693, %v692
        %v704 = vpack.c.b16 %v695, %v694
        %v705 = vpack.c.b16 %v697, %v696
        %714 = vmatprep.subr.bf16.mxu0 0
        %715 = vmatpush1.bf16.msra.mxu0 %v705
        %716 = vmatprep.subr.bf16.mxu0 0
        %717 = vmatpush1.bf16.msra.mxu0 %v704
        %718 = vmatprep.subr.bf16.mxu0 0
        %719 = vmatpush1.bf16.msra.mxu0 %v703
        %720 = vmatprep.subr.bf16.mxu0 0
        %721 = vmatpush1.bf16.msra.mxu0 %v702
        %722 = vmatprep.subr.bf16.mxu0 0
        %723 = vmatpush1.bf16.msra.mxu0 %v701
        %724 = vmatprep.subr.bf16.mxu0 0
        %725 = vmatpush1.bf16.msra.mxu0 %v700
        %726 = vmatprep.subr.bf16.mxu0 0
        %727 = vmatpush1.bf16.msra.mxu0 %v699
        %728 = vmatprep.subr.bf16.mxu0 0
        %729 = vmatpush1.bf16.msra.mxu0 %v698
        %730 = vmatprep.subr.bf16.mxu0 0
        %731 = vmatpush2.bf16.msra.mxu0 0
        %732 = vmatprep.subr.bf16.mxu0 0
        %733 = vmatpush2.bf16.msra.mxu0 0
        %734 = vmatprep.subr.bf16.mxu0 0
        %735 = vmatpush2.bf16.msra.mxu0 0
        %736 = vmatprep.subr.bf16.mxu0 0
        %737 = vmatpush2.bf16.msra.mxu0 0
        %738 = vmatprep.subr.bf16.mxu0 0
        %739 = vmatpush2.bf16.msra.mxu0 0
        %740 = vmatprep.subr.bf16.mxu0 0
        %741 = vmatpush2.bf16.msra.mxu0 0
        %742 = vmatprep.subr.bf16.mxu0 0
        %743 = vmatpush2.bf16.msra.mxu0 0
        %744 = vmatprep.subr.bf16.mxu0 0
        %745 = vmatpush2.bf16.msra.mxu0 0
        %746 = vmatprep.mubr.bf16.mxu0 0
        %747 = vmatmul.mubr.bf16.gmra.mxu0 %v634
        %v748 = vpop.f32.mrf.mxu0
        %v749 = vadd.f32 0.0, %v748
        %v750 = vpop.f32.mrf.mxu0
        %v751 = vpop.f32.mrf.mxu0
        %v752 = vadd.f32 0.0, %v751
        %v753 = vpop.f32.mrf.mxu0
        %754 = vmatprep.mubr.bf16.mxu0 0
        %755 = vmatmul.mubr.bf16.gmra.mxu0 %v635
        %v756 = vpop.f32.mrf.mxu0
        %v757 = vadd.f32 0.0, %v756
        %v758 = vpop.f32.mrf.mxu0
        %v759 = vpop.f32.mrf.mxu0
        %v760 = vadd.f32 0.0, %v759
        %v761 = vpop.f32.mrf.mxu0
        %762 = vmatprep.mubr.bf16.mxu0 0
        %763 = vmatmul.mubr.bf16.gmra.mxu0 %v636
        %v764 = vpop.f32.mrf.mxu0
        %v765 = vadd.f32 0.0, %v764
        %v766 = vpop.f32.mrf.mxu0
        %v767 = vpop.f32.mrf.mxu0
        %v768 = vadd.f32 0.0, %v767
        %v769 = vpop.f32.mrf.mxu0
        %770 = vmatprep.mubr.bf16.mxu0 0
        %771 = vmatmul.mubr.bf16.gmra.mxu0 %v637
        %v772 = vpop.f32.mrf.mxu0
        %v773 = vadd.f32 0.0, %v772
        %v774 = vpop.f32.mrf.mxu0
        %v775 = vpop.f32.mrf.mxu0
        %v776 = vadd.f32 0.0, %v775
        %v777 = vpop.f32.mrf.mxu0
        %778 = vmatprep.mubr.bf16.mxu0 0
        %779 = vmatmul.mubr.bf16.gmra.mxu0 %v638
        %v780 = vpop.f32.mrf.mxu0
        %v781 = vadd.f32 0.0, %v780
        %v782 = vpop.f32.mrf.mxu0
        %v783 = vpop.f32.mrf.mxu0
        %v784 = vadd.f32 0.0, %v783
        %v785 = vpop.f32.mrf.mxu0
        %786 = vmatprep.mubr.bf16.mxu0 0
        %787 = vmatmul.mubr.bf16.gmra.mxu0 %v639
        %v788 = vpop.f32.mrf.mxu0
        %v789 = vadd.f32 0.0, %v788
        %v790 = vpop.f32.mrf.mxu0
        %v791 = vpop.f32.mrf.mxu0
        %v792 = vadd.f32 0.0, %v791
        %v793 = vpop.f32.mrf.mxu0
        %794 = vmatprep.mubr.bf16.mxu0 0
        %795 = vmatmul.mubr.bf16.gmra.mxu0 %v640
        %v796 = vpop.f32.mrf.mxu0
        %v797 = vadd.f32 0.0, %v796
        %v798 = vpop.f32.mrf.mxu0
        %v799 = vpop.f32.mrf.mxu0
        %v800 = vadd.f32 0.0, %v799
        %v801 = vpop.f32.mrf.mxu0
        %802 = vmatprep.mubr.bf16.mxu0 0
        %803 = vmatmul.mubr.bf16.gmra.mxu0 %v641
        %v804 = vpop.f32.mrf.mxu0
        %v805 = vadd.f32 0.0, %v804
        %v806 = vpop.f32.mrf.mxu0
        %v807 = vpop.f32.mrf.mxu0
        %v808 = vadd.f32 0.0, %v807
        %v809 = vpop.f32.mrf.mxu0
        %810 = vmatprep.mubr.bf16.mxu0 0
        %811 = vmatmul.mubr.bf16.gmra.mxu0 %v642
        %v812 = vpop.f32.mrf.mxu0
        %v813 = vadd.f32 0.0, %v812
        %v814 = vpop.f32.mrf.mxu0
        %v815 = vpop.f32.mrf.mxu0
        %v816 = vadd.f32 0.0, %v815
        %v817 = vpop.f32.mrf.mxu0
        %818 = vmatprep.mubr.bf16.mxu0 0
        %819 = vmatmul.mubr.bf16.gmra.mxu0 %v643
        %v820 = vpop.f32.mrf.mxu0
        %v821 = vadd.f32 0.0, %v820
        %v822 = vpop.f32.mrf.mxu0
        %v823 = vpop.f32.mrf.mxu0
        %v824 = vadd.f32 0.0, %v823
        %v825 = vpop.f32.mrf.mxu0
        %826 = vmatprep.mubr.bf16.mxu0 0
        %827 = vmatmul.mubr.bf16.gmra.mxu0 %v644
        %v828 = vpop.f32.mrf.mxu0
        %v829 = vadd.f32 0.0, %v828
        %v830 = vpop.f32.mrf.mxu0
        %v831 = vpop.f32.mrf.mxu0
        %v832 = vadd.f32 0.0, %v831
        %v833 = vpop.f32.mrf.mxu0
        %834 = vmatprep.mubr.bf16.mxu0 0
        %835 = vmatmul.mubr.bf16.gmra.mxu0 %v645
        %v836 = vpop.f32.mrf.mxu0
        %v837 = vadd.f32 0.0, %v836
        %v838 = vpop.f32.mrf.mxu0
        %v839 = vpop.f32.mrf.mxu0
        %v840 = vadd.f32 0.0, %v839
        %v841 = vpop.f32.mrf.mxu0
        %842 = vmatprep.mubr.bf16.mxu0 0
        %843 = vmatmul.mubr.bf16.gmra.mxu0 %v646
        %v844 = vpop.f32.mrf.mxu0
        %v845 = vadd.f32 0.0, %v844
        %v846 = vpop.f32.mrf.mxu0
        %v847 = vpop.f32.mrf.mxu0
        %v848 = vadd.f32 0.0, %v847
        %v849 = vpop.f32.mrf.mxu0
        %850 = vmatprep.mubr.bf16.mxu0 0
        %851 = vmatmul.mubr.bf16.gmra.mxu0 %v647
        %v852 = vpop.f32.mrf.mxu0
        %v853 = vadd.f32 0.0, %v852
        %v854 = vpop.f32.mrf.mxu0
        %v855 = vpop.f32.mrf.mxu0
        %v856 = vadd.f32 0.0, %v855
        %v857 = vpop.f32.mrf.mxu0
        %858 = vmatprep.mubr.bf16.mxu0 0
        %859 = vmatmul.mubr.bf16.gmra.mxu0 %v648
        %v860 = vpop.f32.mrf.mxu0
        %v861 = vadd.f32 0.0, %v860
        %v862 = vpop.f32.mrf.mxu0
        %v863 = vpop.f32.mrf.mxu0
        %v864 = vadd.f32 0.0, %v863
        %v865 = vpop.f32.mrf.mxu0
        %866 = vmatprep.mubr.bf16.mxu0 0
        %867 = vmatmul.mubr.bf16.gmra.mxu0 %v649
        %v868 = vpop.f32.mrf.mxu0
        %v869 = vadd.f32 0.0, %v868
        %v870 = vpop.f32.mrf.mxu0
        %v871 = vpop.f32.mrf.mxu0
        %v872 = vadd.f32 0.0, %v871
        %v873 = vpop.f32.mrf.mxu0
        %874 = vdwg.mxu0
        %v875 = vadd.f32 %v490, %v749
        %v876 = vadd.f32 %v491, %v752
        %v877 = vadd.f32 %v492, %v757
        %v878 = vadd.f32 %v493, %v760
        %v879 = vadd.f32 %v494, %v765
        %v880 = vadd.f32 %v495, %v768
        %v881 = vadd.f32 %v496, %v773
        %v882 = vadd.f32 %v497, %v776
        %v883 = vadd.f32 %v498, %v781
        %v884 = vadd.f32 %v499, %v784
        %v885 = vadd.f32 %v500, %v789
        %v886 = vadd.f32 %v501, %v792
        %v887 = vadd.f32 %v502, %v797
        %v888 = vadd.f32 %v503, %v800
        %v889 = vadd.f32 %v504, %v805
        %v890 = vadd.f32 %v505, %v808
        %v891 = vadd.f32 %v506, %v813
        %v892 = vadd.f32 %v507, %v816
        %v893 = vadd.f32 %v508, %v821
        %v894 = vadd.f32 %v509, %v824
        %v895 = vadd.f32 %v510, %v829
        %v896 = vadd.f32 %v511, %v832
        %v897 = vadd.f32 %v512, %v837
        %v898 = vadd.f32 %v513, %v840
        %v899 = vadd.f32 %v514, %v845
        %v900 = vadd.f32 %v515, %v848
        %v901 = vadd.f32 %v516, %v853
        %v902 = vadd.f32 %v517, %v856
        %v903 = vadd.f32 %v518, %v861
        %v904 = vadd.f32 %v519, %v864
        %v905 = vadd.f32 %v520, %v869
        %v906 = vadd.f32 %v521, %v872
        %907 = vst [vmem:[#allocation2] sm:$0xff] %v875
        %908 = vst [vmem:[#allocation2 + $0x8] sm:$0xff] %v876
        %909 = vst [vmem:[#allocation2 + $0x10] sm:$0xff] %v877
        %910 = vst [vmem:[#allocation2 + $0x18] sm:$0xff] %v878
        %911 = vst [vmem:[#allocation2 + $0x20] sm:$0xff] %v879
        %912 = vst [vmem:[#allocation2 + $0x28] sm:$0xff] %v880
        %913 = vst [vmem:[#allocation2 + $0x30] sm:$0xff] %v881
        %914 = vst [vmem:[#allocation2 + $0x38] sm:$0xff] %v882
        %915 = vst [vmem:[#allocation2 + $0x40] sm:$0xff] %v883
        %916 = vst [vmem:[#allocation2 + $0x48] sm:$0xff] %v884
        %917 = vst [vmem:[#allocation2 + $0x50] sm:$0xff] %v885
        %918 = vst [vmem:[#allocation2 + $0x58] sm:$0xff] %v886
        %919 = vst [vmem:[#allocation2 + $0x60] sm:$0xff] %v887
        %920 = vst [vmem:[#allocation2 + $0x68] sm:$0xff] %v888
        %921 = vst [vmem:[#allocation2 + $0x70] sm:$0xff] %v889
        %922 = vst [vmem:[#allocation2 + $0x78] sm:$0xff] %v890
        %923 = vst [vmem:[#allocation2 + $0x80] sm:$0xff] %v891
        %924 = vst [vmem:[#allocation2 + $0x88] sm:$0xff] %v892
        %925 = vst [vmem:[#allocation2 + $0x90] sm:$0xff] %v893
        %926 = vst [vmem:[#allocation2 + $0x98] sm:$0xff] %v894
        %927 = vst [vmem:[#allocation2 + $0xa0] sm:$0xff] %v895
        %928 = vst [vmem:[#allocation2 + $0xa8] sm:$0xff] %v896
        %929 = vst [vmem:[#allocation2 + $0xb0] sm:$0xff] %v897
        %930 = vst [vmem:[#allocation2 + $0xb8] sm:$0xff] %v898
        %931 = vst [vmem:[#allocation2 + $0xc0] sm:$0xff] %v899
        %932 = vst [vmem:[#allocation2 + $0xc8] sm:$0xff] %v900
        %933 = vst [vmem:[#allocation2 + $0xd0] sm:$0xff] %v901
        %934 = vst [vmem:[#allocation2 + $0xd8] sm:$0xff] %v902
        %935 = vst [vmem:[#allocation2 + $0xe0] sm:$0xff] %v903
        %936 = vst [vmem:[#allocation2 + $0xe8] sm:$0xff] %v904
        %937 = vst [vmem:[#allocation2 + $0xf0] sm:$0xff] %v905
        %938 = vst [vmem:[#allocation2 + $0xf8] sm:$0xff] %v906
        %p939 = scmp.eq.s32.totalorder %s35, 2
        // Predicated region
        $region81: #{tpu_custom_call.1} parent=55 // pred_check
          %p940 = pneg %p939
        $region82: #{tpu_custom_call.1} parent=55 // pred_check_branch
          %942 = sbr.rel (%p940) target = $region84
        $region83: #{tpu_custom_call.1} parent=55 // pred_region
          %v943 = vld [vmem:[#allocation2] sm:$0xff]
          %v944 = vld [vmem:[#allocation2 + $0x8] sm:$0xff]
          %v945 = vld [vmem:[#allocation2 + $0x10] sm:$0xff]
          %v946 = vld [vmem:[#allocation2 + $0x18] sm:$0xff]
          %v947 = vld [vmem:[#allocation2 + $0x20] sm:$0xff]
          %v948 = vld [vmem:[#allocation2 + $0x28] sm:$0xff]
          %v949 = vld [vmem:[#allocation2 + $0x30] sm:$0xff]
          %v950 = vld [vmem:[#allocation2 + $0x38] sm:$0xff]
          %v951 = vld [vmem:[#allocation2 + $0x40] sm:$0xff]
          %v952 = vld [vmem:[#allocation2 + $0x48] sm:$0xff]
          %v953 = vld [vmem:[#allocation2 + $0x50] sm:$0xff]
          %v954 = vld [vmem:[#allocation2 + $0x58] sm:$0xff]
          %v955 = vld [vmem:[#allocation2 + $0x60] sm:$0xff]
          %v956 = vld [vmem:[#allocation2 + $0x68] sm:$0xff]
          %v957 = vld [vmem:[#allocation2 + $0x70] sm:$0xff]
          %v958 = vld [vmem:[#allocation2 + $0x78] sm:$0xff]
          %v959 = vld [vmem:[#allocation2 + $0x80] sm:$0xff]
          %v960 = vld [vmem:[#allocation2 + $0x88] sm:$0xff]
          %v961 = vld [vmem:[#allocation2 + $0x90] sm:$0xff]
          %v962 = vld [vmem:[#allocation2 + $0x98] sm:$0xff]
          %v963 = vld [vmem:[#allocation2 + $0xa0] sm:$0xff]
          %v964 = vld [vmem:[#allocation2 + $0xa8] sm:$0xff]
          %v965 = vld [vmem:[#allocation2 + $0xb0] sm:$0xff]
          %v966 = vld [vmem:[#allocation2 + $0xb8] sm:$0xff]
          %v967 = vld [vmem:[#allocation2 + $0xc0] sm:$0xff]
          %v968 = vld [vmem:[#allocation2 + $0xc8] sm:$0xff]
          %v969 = vld [vmem:[#allocation2 + $0xd0] sm:$0xff]
          %v970 = vld [vmem:[#allocation2 + $0xd8] sm:$0xff]
          %v971 = vld [vmem:[#allocation2 + $0xe0] sm:$0xff]
          %v972 = vld [vmem:[#allocation2 + $0xe8] sm:$0xff]
          %v973 = vld [vmem:[#allocation2 + $0xf0] sm:$0xff]
          %v974 = vld [vmem:[#allocation2 + $0xf8] sm:$0xff]
          %v975 = vld [vmem:[%s2] sm:$0x1]
          %v977 = vlaneseq
          %v978 = vshrl.u32 %v977, 7
          %v979 = vsub.s32 0, %v978
          %v980 = vrot.slane %v975, %v979
          %v982 = vadd.f32 %v943, %v980
          %v983 = vadd.f32 %v944, %v980
          %v984 = vadd.f32 %v945, %v980
          %v985 = vadd.f32 %v946, %v980
          %v986 = vadd.f32 %v947, %v980
          %v987 = vadd.f32 %v948, %v980
          %v988 = vadd.f32 %v949, %v980
          %v989 = vadd.f32 %v950, %v980
          %v990 = vadd.f32 %v951, %v980
          %v991 = vadd.f32 %v952, %v980
          %v992 = vadd.f32 %v953, %v980
          %v993 = vadd.f32 %v954, %v980
          %v994 = vadd.f32 %v955, %v980
          %v995 = vadd.f32 %v956, %v980
          %v996 = vadd.f32 %v957, %v980
          %v997 = vadd.f32 %v958, %v980
          %v998 = vadd.f32 %v959, %v980
          %v999 = vadd.f32 %v960, %v980
          %v1000 = vadd.f32 %v961, %v980
          %v1001 = vadd.f32 %v962, %v980
          %v1002 = vadd.f32 %v963, %v980
          %v1003 = vadd.f32 %v964, %v980
          %v1004 = vadd.f32 %v965, %v980
          %v1005 = vadd.f32 %v966, %v980
          %v1006 = vadd.f32 %v967, %v980
          %v1007 = vadd.f32 %v968, %v980
          %v1008 = vadd.f32 %v969, %v980
          %v1009 = vadd.f32 %v970, %v980
          %v1010 = vadd.f32 %v971, %v980
          %v1011 = vadd.f32 %v972, %v980
          %v1012 = vadd.f32 %v973, %v980
          %v1013 = vadd.f32 %v974, %v980
          %v1014 = vmax.f32 %v982, 0.0
          %v1015 = vmax.f32 %v983, 0.0
          %v1016 = vmax.f32 %v984, 0.0
          %v1017 = vmax.f32 %v985, 0.0
          %v1018 = vmax.f32 %v986, 0.0
          %v1019 = vmax.f32 %v987, 0.0
          %v1020 = vmax.f32 %v988, 0.0
          %v1021 = vmax.f32 %v989, 0.0
          %v1022 = vmax.f32 %v990, 0.0
          %v1023 = vmax.f32 %v991, 0.0
          %v1024 = vmax.f32 %v992, 0.0
          %v1025 = vmax.f32 %v993, 0.0
          %v1026 = vmax.f32 %v994, 0.0
          %v1027 = vmax.f32 %v995, 0.0
          %v1028 = vmax.f32 %v996, 0.0
          %v1029 = vmax.f32 %v997, 0.0
          %v1030 = vmax.f32 %v998, 0.0
          %v1031 = vmax.f32 %v999, 0.0
          %v1032 = vmax.f32 %v1000, 0.0
          %v1033 = vmax.f32 %v1001, 0.0
          %v1034 = vmax.f32 %v1002, 0.0
          %v1035 = vmax.f32 %v1003, 0.0
          %v1036 = vmax.f32 %v1004, 0.0
          %v1037 = vmax.f32 %v1005, 0.0
          %v1038 = vmax.f32 %v1006, 0.0
          %v1039 = vmax.f32 %v1007, 0.0
          %v1040 = vmax.f32 %v1008, 0.0
          %v1041 = vmax.f32 %v1009, 0.0
          %v1042 = vmax.f32 %v1010, 0.0
          %v1043 = vmax.f32 %v1011, 0.0
          %v1044 = vmax.f32 %v1012, 0.0
          %v1045 = vmax.f32 %v1013, 0.0
          %v1046 = vpack.c.bf16 %v1015, %v1014
          %v1047 = vpack.c.bf16 %v1017, %v1016
          %v1048 = vpack.c.bf16 %v1019, %v1018
          %v1049 = vpack.c.bf16 %v1021, %v1020
          %v1050 = vpack.c.bf16 %v1023, %v1022
          %v1051 = vpack.c.bf16 %v1025, %v1024
          %v1052 = vpack.c.bf16 %v1027, %v1026
          %v1053 = vpack.c.bf16 %v1029, %v1028
          %v1054 = vpack.c.bf16 %v1031, %v1030
          %v1055 = vpack.c.bf16 %v1033, %v1032
          %v1056 = vpack.c.bf16 %v1035, %v1034
          %v1057 = vpack.c.bf16 %v1037, %v1036
          %v1058 = vpack.c.bf16 %v1039, %v1038
          %v1059 = vpack.c.bf16 %v1041, %v1040
          %v1060 = vpack.c.bf16 %v1043, %v1042
          %v1061 = vpack.c.bf16 %v1045, %v1044
          %v1062 = vld [vmem:[#allocation8] sm:$0xf]
          %v1063 = vld [vmem:[#allocation8 + $0x4] sm:$0xf]
          %v1064 = vld [vmem:[#allocation8 + $0x8] sm:$0xf]
          %v1065 = vld [vmem:[#allocation8 + $0xc] sm:$0xf]
          %v1066 = vld [vmem:[#allocation8 + $0x10] sm:$0xf]
          %v1067 = vld [vmem:[#allocation8 + $0x14] sm:$0xf]
          %v1068 = vld [vmem:[#allocation8 + $0x18] sm:$0xf]
          %v1069 = vld [vmem:[#allocation8 + $0x1c] sm:$0xf]
          %v1070 = vld [vmem:[#allocation8 + $0x20] sm:$0xf]
          %v1071 = vld [vmem:[#allocation8 + $0x24] sm:$0xf]
          %v1072 = vld [vmem:[#allocation8 + $0x28] sm:$0xf]
          %v1073 = vld [vmem:[#allocation8 + $0x2c] sm:$0xf]
          %v1074 = vld [vmem:[#allocation8 + $0x30] sm:$0xf]
          %v1075 = vld [vmem:[#allocation8 + $0x34] sm:$0xf]
          %v1076 = vld [vmem:[#allocation8 + $0x38] sm:$0xf]
          %v1077 = vld [vmem:[#allocation8 + $0x3c] sm:$0xf]
          %v1078 = vld [vmem:[%s4] sm:$0x1]
          %v1080 = vlaneseq
          %v1081 = vshrl.u32 %v1080, 7
          %v1082 = vsub.s32 0, %v1081
          %v1083 = vrot.slane %v1078, %v1082
          %v1101 = vunpack.c.l.b16 %v1062
          %v1102 = vunpack.c.l.b16 %v1063
          %v1103 = vunpack.c.l.b16 %v1064
          %v1104 = vunpack.c.l.b16 %v1065
          %v1105 = vunpack.c.l.b16 %v1066
          %v1106 = vunpack.c.l.b16 %v1067
          %v1107 = vunpack.c.l.b16 %v1068
          %v1108 = vunpack.c.l.b16 %v1069
          %v1109 = vunpack.c.l.b16 %v1070
          %v1110 = vunpack.c.l.b16 %v1071
          %v1111 = vunpack.c.l.b16 %v1072
          %v1112 = vunpack.c.l.b16 %v1073
          %v1113 = vunpack.c.l.b16 %v1074
          %v1114 = vunpack.c.l.b16 %v1075
          %v1115 = vunpack.c.l.b16 %v1076
          %v1116 = vunpack.c.l.b16 %v1077
          %v1117 = vpack.c.b16 %v1102, %v1101
          %v1118 = vpack.c.b16 %v1104, %v1103
          %v1119 = vpack.c.b16 %v1106, %v1105
          %v1120 = vpack.c.b16 %v1108, %v1107
          %v1121 = vpack.c.b16 %v1110, %v1109
          %v1122 = vpack.c.b16 %v1112, %v1111
          %v1123 = vpack.c.b16 %v1114, %v1113
          %v1124 = vpack.c.b16 %v1116, %v1115
          %1133 = vmatprep.subr.bf16.mxu0 0
          %1134 = vmatpush1.bf16.msra.mxu0 %v1124
          %1135 = vmatprep.subr.bf16.mxu0 0
          %1136 = vmatpush1.bf16.msra.mxu0 %v1123
          %1137 = vmatprep.subr.bf16.mxu0 0
          %1138 = vmatpush1.bf16.msra.mxu0 %v1122
          %1139 = vmatprep.subr.bf16.mxu0 0
          %1140 = vmatpush1.bf16.msra.mxu0 %v1121
          %1141 = vmatprep.subr.bf16.mxu0 0
          %1142 = vmatpush1.bf16.msra.mxu0 %v1120
          %1143 = vmatprep.subr.bf16.mxu0 0
          %1144 = vmatpush1.bf16.msra.mxu0 %v1119
          %1145 = vmatprep.subr.bf16.mxu0 0
          %1146 = vmatpush1.bf16.msra.mxu0 %v1118
          %1147 = vmatprep.subr.bf16.mxu0 0
          %1148 = vmatpush1.bf16.msra.mxu0 %v1117
          %1149 = vmatprep.subr.bf16.mxu0 0
          %1150 = vmatpush2.bf16.msra.mxu0 0
          %1151 = vmatprep.subr.bf16.mxu0 0
          %1152 = vmatpush2.bf16.msra.mxu0 0
          %1153 = vmatprep.subr.bf16.mxu0 0
          %1154 = vmatpush2.bf16.msra.mxu0 0
          %1155 = vmatprep.subr.bf16.mxu0 0
          %1156 = vmatpush2.bf16.msra.mxu0 0
          %1157 = vmatprep.subr.bf16.mxu0 0
          %1158 = vmatpush2.bf16.msra.mxu0 0
          %1159 = vmatprep.subr.bf16.mxu0 0
          %1160 = vmatpush2.bf16.msra.mxu0 0
          %1161 = vmatprep.subr.bf16.mxu0 0
          %1162 = vmatpush2.bf16.msra.mxu0 0
          %1163 = vmatprep.subr.bf16.mxu0 0
          %1164 = vmatpush2.bf16.msra.mxu0 0
          %1165 = vmatprep.mubr.bf16.mxu0 0
          %1166 = vmatmul.mubr.bf16.gmra.mxu0 %v1046
          %v1167 = vpop.f32.mrf.mxu0
          %v1168 = vadd.f32 %v1083, %v1167
          %v1169 = vpop.f32.mrf.mxu0
          %v1170 = vpop.f32.mrf.mxu0
          %v1171 = vadd.f32 %v1083, %v1170
          %v1172 = vpop.f32.mrf.mxu0
          %1173 = vmatprep.mubr.bf16.mxu0 0
          %1174 = vmatmul.mubr.bf16.gmra.mxu0 %v1047
          %v1175 = vpop.f32.mrf.mxu0
          %v1176 = vadd.f32 %v1083, %v1175
          %v1177 = vpop.f32.mrf.mxu0
          %v1178 = vpop.f32.mrf.mxu0
          %v1179 = vadd.f32 %v1083, %v1178
          %v1180 = vpop.f32.mrf.mxu0
          %1181 = vmatprep.mubr.bf16.mxu0 0
          %1182 = vmatmul.mubr.bf16.gmra.mxu0 %v1048
          %v1183 = vpop.f32.mrf.mxu0
          %v1184 = vadd.f32 %v1083, %v1183
          %v1185 = vpop.f32.mrf.mxu0
          %v1186 = vpop.f32.mrf.mxu0
          %v1187 = vadd.f32 %v1083, %v1186
          %v1188 = vpop.f32.mrf.mxu0
          %1189 = vmatprep.mubr.bf16.mxu0 0
          %1190 = vmatmul.mubr.bf16.gmra.mxu0 %v1049
          %v1191 = vpop.f32.mrf.mxu0
          %v1192 = vadd.f32 %v1083, %v1191
          %v1193 = vpop.f32.mrf.mxu0
          %v1194 = vpop.f32.mrf.mxu0
          %v1195 = vadd.f32 %v1083, %v1194
          %v1196 = vpop.f32.mrf.mxu0
          %1197 = vmatprep.mubr.bf16.mxu0 0
          %1198 = vmatmul.mubr.bf16.gmra.mxu0 %v1050
          %v1199 = vpop.f32.mrf.mxu0
          %v1200 = vadd.f32 %v1083, %v1199
          %v1201 = vpop.f32.mrf.mxu0
          %v1202 = vpop.f32.mrf.mxu0
          %v1203 = vadd.f32 %v1083, %v1202
          %v1204 = vpop.f32.mrf.mxu0
          %1205 = vmatprep.mubr.bf16.mxu0 0
          %1206 = vmatmul.mubr.bf16.gmra.mxu0 %v1051
          %v1207 = vpop.f32.mrf.mxu0
          %v1208 = vadd.f32 %v1083, %v1207
          %v1209 = vpop.f32.mrf.mxu0
          %v1210 = vpop.f32.mrf.mxu0
          %v1211 = vadd.f32 %v1083, %v1210
          %v1212 = vpop.f32.mrf.mxu0
          %1213 = vmatprep.mubr.bf16.mxu0 0
          %1214 = vmatmul.mubr.bf16.gmra.mxu0 %v1052
          %v1215 = vpop.f32.mrf.mxu0
          %v1216 = vadd.f32 %v1083, %v1215
          %v1217 = vpop.f32.mrf.mxu0
          %v1218 = vpop.f32.mrf.mxu0
          %v1219 = vadd.f32 %v1083, %v1218
          %v1220 = vpop.f32.mrf.mxu0
          %1221 = vmatprep.mubr.bf16.mxu0 0
          %1222 = vmatmul.mubr.bf16.gmra.mxu0 %v1053
          %v1223 = vpop.f32.mrf.mxu0
          %v1224 = vadd.f32 %v1083, %v1223
          %v1225 = vpop.f32.mrf.mxu0
          %v1226 = vpop.f32.mrf.mxu0
          %v1227 = vadd.f32 %v1083, %v1226
          %v1228 = vpop.f32.mrf.mxu0
          %1229 = vmatprep.mubr.bf16.mxu0 0
          %1230 = vmatmul.mubr.bf16.gmra.mxu0 %v1054
          %v1231 = vpop.f32.mrf.mxu0
          %v1232 = vadd.f32 %v1083, %v1231
          %v1233 = vpop.f32.mrf.mxu0
          %v1234 = vpop.f32.mrf.mxu0
          %v1235 = vadd.f32 %v1083, %v1234
          %v1236 = vpop.f32.mrf.mxu0
          %1237 = vmatprep.mubr.bf16.mxu0 0
          %1238 = vmatmul.mubr.bf16.gmra.mxu0 %v1055
          %v1239 = vpop.f32.mrf.mxu0
          %v1240 = vadd.f32 %v1083, %v1239
          %v1241 = vpop.f32.mrf.mxu0
          %v1242 = vpop.f32.mrf.mxu0
          %v1243 = vadd.f32 %v1083, %v1242
          %v1244 = vpop.f32.mrf.mxu0
          %1245 = vmatprep.mubr.bf16.mxu0 0
          %1246 = vmatmul.mubr.bf16.gmra.mxu0 %v1056
          %v1247 = vpop.f32.mrf.mxu0
          %v1248 = vadd.f32 %v1083, %v1247
          %v1249 = vpop.f32.mrf.mxu0
          %v1250 = vpop.f32.mrf.mxu0
          %v1251 = vadd.f32 %v1083, %v1250
          %v1252 = vpop.f32.mrf.mxu0
          %1253 = vmatprep.mubr.bf16.mxu0 0
          %1254 = vmatmul.mubr.bf16.gmra.mxu0 %v1057
          %v1255 = vpop.f32.mrf.mxu0
          %v1256 = vadd.f32 %v1083, %v1255
          %v1257 = vpop.f32.mrf.mxu0
          %v1258 = vpop.f32.mrf.mxu0
          %v1259 = vadd.f32 %v1083, %v1258
          %v1260 = vpop.f32.mrf.mxu0
          %1261 = vmatprep.mubr.bf16.mxu0 0
          %1262 = vmatmul.mubr.bf16.gmra.mxu0 %v1058
          %v1263 = vpop.f32.mrf.mxu0
          %v1264 = vadd.f32 %v1083, %v1263
          %v1265 = vpop.f32.mrf.mxu0
          %v1266 = vpop.f32.mrf.mxu0
          %v1267 = vadd.f32 %v1083, %v1266
          %v1268 = vpop.f32.mrf.mxu0
          %1269 = vmatprep.mubr.bf16.mxu0 0
          %1270 = vmatmul.mubr.bf16.gmra.mxu0 %v1059
          %v1271 = vpop.f32.mrf.mxu0
          %v1272 = vadd.f32 %v1083, %v1271
          %v1273 = vpop.f32.mrf.mxu0
          %v1274 = vpop.f32.mrf.mxu0
          %v1275 = vadd.f32 %v1083, %v1274
          %v1276 = vpop.f32.mrf.mxu0
          %1277 = vmatprep.mubr.bf16.mxu0 0
          %1278 = vmatmul.mubr.bf16.gmra.mxu0 %v1060
          %v1279 = vpop.f32.mrf.mxu0
          %v1280 = vadd.f32 %v1083, %v1279
          %v1281 = vpop.f32.mrf.mxu0
          %v1282 = vpop.f32.mrf.mxu0
          %v1283 = vadd.f32 %v1083, %v1282
          %v1284 = vpop.f32.mrf.mxu0
          %1285 = vmatprep.mubr.bf16.mxu0 0
          %1286 = vmatmul.mubr.bf16.gmra.mxu0 %v1061
          %v1287 = vpop.f32.mrf.mxu0
          %v1288 = vadd.f32 %v1083, %v1287
          %v1289 = vpop.f32.mrf.mxu0
          %v1290 = vpop.f32.mrf.mxu0
          %v1291 = vadd.f32 %v1083, %v1290
          %v1292 = vpop.f32.mrf.mxu0
          %1293 = vdwg.mxu0
          %v1294 = vmax.f32 %v1168, 0.0
          %v1295 = vmax.f32 %v1171, 0.0
          %v1296 = vmax.f32 %v1176, 0.0
          %v1297 = vmax.f32 %v1179, 0.0
          %v1298 = vmax.f32 %v1184, 0.0
          %v1299 = vmax.f32 %v1187, 0.0
          %v1300 = vmax.f32 %v1192, 0.0
          %v1301 = vmax.f32 %v1195, 0.0
          %v1302 = vmax.f32 %v1200, 0.0
          %v1303 = vmax.f32 %v1203, 0.0
          %v1304 = vmax.f32 %v1208, 0.0
          %v1305 = vmax.f32 %v1211, 0.0
          %v1306 = vmax.f32 %v1216, 0.0
          %v1307 = vmax.f32 %v1219, 0.0
          %v1308 = vmax.f32 %v1224, 0.0
          %v1309 = vmax.f32 %v1227, 0.0
          %v1310 = vmax.f32 %v1232, 0.0
          %v1311 = vmax.f32 %v1235, 0.0
          %v1312 = vmax.f32 %v1240, 0.0
          %v1313 = vmax.f32 %v1243, 0.0
          %v1314 = vmax.f32 %v1248, 0.0
          %v1315 = vmax.f32 %v1251, 0.0
          %v1316 = vmax.f32 %v1256, 0.0
          %v1317 = vmax.f32 %v1259, 0.0
          %v1318 = vmax.f32 %v1264, 0.0
          %v1319 = vmax.f32 %v1267, 0.0
          %v1320 = vmax.f32 %v1272, 0.0
          %v1321 = vmax.f32 %v1275, 0.0
          %v1322 = vmax.f32 %v1280, 0.0
          %v1323 = vmax.f32 %v1283, 0.0
          %v1324 = vmax.f32 %v1288, 0.0
          %v1325 = vmax.f32 %v1291, 0.0
          %v1326 = vpack.c.bf16 %v1295, %v1294
          %v1327 = vpack.c.bf16 %v1297, %v1296
          %v1328 = vpack.c.bf16 %v1299, %v1298
          %v1329 = vpack.c.bf16 %v1301, %v1300
          %v1330 = vpack.c.bf16 %v1303, %v1302
          %v1331 = vpack.c.bf16 %v1305, %v1304
          %v1332 = vpack.c.bf16 %v1307, %v1306
          %v1333 = vpack.c.bf16 %v1309, %v1308
          %v1334 = vpack.c.bf16 %v1311, %v1310
          %v1335 = vpack.c.bf16 %v1313, %v1312
          %v1336 = vpack.c.bf16 %v1315, %v1314
          %v1337 = vpack.c.bf16 %v1317, %v1316
          %v1338 = vpack.c.bf16 %v1319, %v1318
          %v1339 = vpack.c.bf16 %v1321, %v1320
          %v1340 = vpack.c.bf16 %v1323, %v1322
          %v1341 = vpack.c.bf16 %v1325, %v1324
          %v1342 = vld [vmem:[#allocation9] sm:$0xf]
          %v1343 = vld [vmem:[#allocation9 + $0x4] sm:$0xf]
          %v1344 = vld [vmem:[#allocation9 + $0x8] sm:$0xf]
          %v1345 = vld [vmem:[#allocation9 + $0xc] sm:$0xf]
          %v1346 = vld [vmem:[#allocation9 + $0x10] sm:$0xf]
          %v1347 = vld [vmem:[#allocation9 + $0x14] sm:$0xf]
          %v1348 = vld [vmem:[#allocation9 + $0x18] sm:$0xf]
          %v1349 = vld [vmem:[#allocation9 + $0x1c] sm:$0xf]
          %v1350 = vld [vmem:[#allocation9 + $0x20] sm:$0xf]
          %v1351 = vld [vmem:[#allocation9 + $0x24] sm:$0xf]
          %v1352 = vld [vmem:[#allocation9 + $0x28] sm:$0xf]
          %v1353 = vld [vmem:[#allocation9 + $0x2c] sm:$0xf]
          %v1354 = vld [vmem:[#allocation9 + $0x30] sm:$0xf]
          %v1355 = vld [vmem:[#allocation9 + $0x34] sm:$0xf]
          %v1356 = vld [vmem:[#allocation9 + $0x38] sm:$0xf]
          %v1357 = vld [vmem:[#allocation9 + $0x3c] sm:$0xf]
          %v1358 = vld [vmem:[%s6] sm:$0x1]
          %v1360 = vlaneseq
          %v1361 = vshrl.u32 %v1360, 7
          %v1362 = vsub.s32 0, %v1361
          %v1363 = vrot.slane %v1358, %v1362
          %v1381 = vunpack.c.l.b16 %v1342
          %v1382 = vunpack.c.l.b16 %v1343
          %v1383 = vunpack.c.l.b16 %v1344
          %v1384 = vunpack.c.l.b16 %v1345
          %v1385 = vunpack.c.l.b16 %v1346
          %v1386 = vunpack.c.l.b16 %v1347
          %v1387 = vunpack.c.l.b16 %v1348
          %v1388 = vunpack.c.l.b16 %v1349
          %v1389 = vunpack.c.l.b16 %v1350
          %v1390 = vunpack.c.l.b16 %v1351
          %v1391 = vunpack.c.l.b16 %v1352
          %v1392 = vunpack.c.l.b16 %v1353
          %v1393 = vunpack.c.l.b16 %v1354
          %v1394 = vunpack.c.l.b16 %v1355
          %v1395 = vunpack.c.l.b16 %v1356
          %v1396 = vunpack.c.l.b16 %v1357
          %v1397 = vpack.c.b16 %v1382, %v1381
          %v1398 = vpack.c.b16 %v1384, %v1383
          %v1399 = vpack.c.b16 %v1386, %v1385
          %v1400 = vpack.c.b16 %v1388, %v1387
          %v1401 = vpack.c.b16 %v1390, %v1389
          %v1402 = vpack.c.b16 %v1392, %v1391
          %v1403 = vpack.c.b16 %v1394, %v1393
          %v1404 = vpack.c.b16 %v1396, %v1395
          %1413 = vmatprep.subr.bf16.mxu0 0
          %1414 = vmatpush1.bf16.msra.mxu0 %v1404
          %1415 = vmatprep.subr.bf16.mxu0 0
          %1416 = vmatpush1.bf16.msra.mxu0 %v1403
          %1417 = vmatprep.subr.bf16.mxu0 0
          %1418 = vmatpush1.bf16.msra.mxu0 %v1402
          %1419 = vmatprep.subr.bf16.mxu0 0
          %1420 = vmatpush1.bf16.msra.mxu0 %v1401
          %1421 = vmatprep.subr.bf16.mxu0 0
          %1422 = vmatpush1.bf16.msra.mxu0 %v1400
          %1423 = vmatprep.subr.bf16.mxu0 0
          %1424 = vmatpush1.bf16.msra.mxu0 %v1399
          %1425 = vmatprep.subr.bf16.mxu0 0
          %1426 = vmatpush1.bf16.msra.mxu0 %v1398
          %1427 = vmatprep.subr.bf16.mxu0 0
          %1428 = vmatpush1.bf16.msra.mxu0 %v1397
          %1429 = vmatprep.subr.bf16.mxu0 0
          %1430 = vmatpush2.bf16.msra.mxu0 0
          %1431 = vmatprep.subr.bf16.mxu0 0
          %1432 = vmatpush2.bf16.msra.mxu0 0
          %1433 = vmatprep.subr.bf16.mxu0 0
          %1434 = vmatpush2.bf16.msra.mxu0 0
          %1435 = vmatprep.subr.bf16.mxu0 0
          %1436 = vmatpush2.bf16.msra.mxu0 0
          %1437 = vmatprep.subr.bf16.mxu0 0
          %1438 = vmatpush2.bf16.msra.mxu0 0
          %1439 = vmatprep.subr.bf16.mxu0 0
          %1440 = vmatpush2.bf16.msra.mxu0 0
          %1441 = vmatprep.subr.bf16.mxu0 0
          %1442 = vmatpush2.bf16.msra.mxu0 0
          %1443 = vmatprep.subr.bf16.mxu0 0
          %1444 = vmatpush2.bf16.msra.mxu0 0
          %1445 = vmatprep.mubr.bf16.mxu0 0
          %1446 = vmatmul.mubr.bf16.gmra.mxu0 %v1326
          %v1447 = vpop.f32.mrf.mxu0
          %v1448 = vadd.f32 %v1363, %v1447
          %v1449 = vpop.f32.mrf.mxu0
          %v1450 = vpop.f32.mrf.mxu0
          %v1451 = vadd.f32 %v1363, %v1450
          %v1452 = vpop.f32.mrf.mxu0
          %1453 = vmatprep.mubr.bf16.mxu0 0
          %1454 = vmatmul.mubr.bf16.gmra.mxu0 %v1327
          %v1455 = vpop.f32.mrf.mxu0
          %v1456 = vadd.f32 %v1363, %v1455
          %v1457 = vpop.f32.mrf.mxu0
          %v1458 = vpop.f32.mrf.mxu0
          %v1459 = vadd.f32 %v1363, %v1458
          %v1460 = vpop.f32.mrf.mxu0
          %1461 = vmatprep.mubr.bf16.mxu0 0
          %1462 = vmatmul.mubr.bf16.gmra.mxu0 %v1328
          %v1463 = vpop.f32.mrf.mxu0
          %v1464 = vadd.f32 %v1363, %v1463
          %v1465 = vpop.f32.mrf.mxu0
          %v1466 = vpop.f32.mrf.mxu0
          %v1467 = vadd.f32 %v1363, %v1466
          %v1468 = vpop.f32.mrf.mxu0
          %1469 = vmatprep.mubr.bf16.mxu0 0
          %1470 = vmatmul.mubr.bf16.gmra.mxu0 %v1329
          %v1471 = vpop.f32.mrf.mxu0
          %v1472 = vadd.f32 %v1363, %v1471
          %v1473 = vpop.f32.mrf.mxu0
          %v1474 = vpop.f32.mrf.mxu0
          %v1475 = vadd.f32 %v1363, %v1474
          %v1476 = vpop.f32.mrf.mxu0
          %1477 = vmatprep.mubr.bf16.mxu0 0
          %1478 = vmatmul.mubr.bf16.gmra.mxu0 %v1330
          %v1479 = vpop.f32.mrf.mxu0
          %v1480 = vadd.f32 %v1363, %v1479
          %v1481 = vpop.f32.mrf.mxu0
          %v1482 = vpop.f32.mrf.mxu0
          %v1483 = vadd.f32 %v1363, %v1482
          %v1484 = vpop.f32.mrf.mxu0
          %1485 = vmatprep.mubr.bf16.mxu0 0
          %1486 = vmatmul.mubr.bf16.gmra.mxu0 %v1331
          %v1487 = vpop.f32.mrf.mxu0
          %v1488 = vadd.f32 %v1363, %v1487
          %v1489 = vpop.f32.mrf.mxu0
          %v1490 = vpop.f32.mrf.mxu0
          %v1491 = vadd.f32 %v1363, %v1490
          %v1492 = vpop.f32.mrf.mxu0
          %1493 = vmatprep.mubr.bf16.mxu0 0
          %1494 = vmatmul.mubr.bf16.gmra.mxu0 %v1332
          %v1495 = vpop.f32.mrf.mxu0
          %v1496 = vadd.f32 %v1363, %v1495
          %v1497 = vpop.f32.mrf.mxu0
          %v1498 = vpop.f32.mrf.mxu0
          %v1499 = vadd.f32 %v1363, %v1498
          %v1500 = vpop.f32.mrf.mxu0
          %1501 = vmatprep.mubr.bf16.mxu0 0
          %1502 = vmatmul.mubr.bf16.gmra.mxu0 %v1333
          %v1503 = vpop.f32.mrf.mxu0
          %v1504 = vadd.f32 %v1363, %v1503
          %v1505 = vpop.f32.mrf.mxu0
          %v1506 = vpop.f32.mrf.mxu0
          %v1507 = vadd.f32 %v1363, %v1506
          %v1508 = vpop.f32.mrf.mxu0
          %1509 = vmatprep.mubr.bf16.mxu0 0
          %1510 = vmatmul.mubr.bf16.gmra.mxu0 %v1334
          %v1511 = vpop.f32.mrf.mxu0
          %v1512 = vadd.f32 %v1363, %v1511
          %v1513 = vpop.f32.mrf.mxu0
          %v1514 = vpop.f32.mrf.mxu0
          %v1515 = vadd.f32 %v1363, %v1514
          %v1516 = vpop.f32.mrf.mxu0
          %1517 = vmatprep.mubr.bf16.mxu0 0
          %1518 = vmatmul.mubr.bf16.gmra.mxu0 %v1335
          %v1519 = vpop.f32.mrf.mxu0
          %v1520 = vadd.f32 %v1363, %v1519
          %v1521 = vpop.f32.mrf.mxu0
          %v1522 = vpop.f32.mrf.mxu0
          %v1523 = vadd.f32 %v1363, %v1522
          %v1524 = vpop.f32.mrf.mxu0
          %1525 = vmatprep.mubr.bf16.mxu0 0
          %1526 = vmatmul.mubr.bf16.gmra.mxu0 %v1336
          %v1527 = vpop.f32.mrf.mxu0
          %v1528 = vadd.f32 %v1363, %v1527
          %v1529 = vpop.f32.mrf.mxu0
          %v1530 = vpop.f32.mrf.mxu0
          %v1531 = vadd.f32 %v1363, %v1530
          %v1532 = vpop.f32.mrf.mxu0
          %1533 = vmatprep.mubr.bf16.mxu0 0
          %1534 = vmatmul.mubr.bf16.gmra.mxu0 %v1337
          %v1535 = vpop.f32.mrf.mxu0
          %v1536 = vadd.f32 %v1363, %v1535
          %v1537 = vpop.f32.mrf.mxu0
          %v1538 = vpop.f32.mrf.mxu0
          %v1539 = vadd.f32 %v1363, %v1538
          %v1540 = vpop.f32.mrf.mxu0
          %1541 = vmatprep.mubr.bf16.mxu0 0
          %1542 = vmatmul.mubr.bf16.gmra.mxu0 %v1338
          %v1543 = vpop.f32.mrf.mxu0
          %v1544 = vadd.f32 %v1363, %v1543
          %v1545 = vpop.f32.mrf.mxu0
          %v1546 = vpop.f32.mrf.mxu0
          %v1547 = vadd.f32 %v1363, %v1546
          %v1548 = vpop.f32.mrf.mxu0
          %1549 = vmatprep.mubr.bf16.mxu0 0
          %1550 = vmatmul.mubr.bf16.gmra.mxu0 %v1339
          %v1551 = vpop.f32.mrf.mxu0
          %v1552 = vadd.f32 %v1363, %v1551
          %v1553 = vpop.f32.mrf.mxu0
          %v1554 = vpop.f32.mrf.mxu0
          %v1555 = vadd.f32 %v1363, %v1554
          %v1556 = vpop.f32.mrf.mxu0
          %1557 = vmatprep.mubr.bf16.mxu0 0
          %1558 = vmatmul.mubr.bf16.gmra.mxu0 %v1340
          %v1559 = vpop.f32.mrf.mxu0
          %v1560 = vadd.f32 %v1363, %v1559
          %v1561 = vpop.f32.mrf.mxu0
          %v1562 = vpop.f32.mrf.mxu0
          %v1563 = vadd.f32 %v1363, %v1562
          %v1564 = vpop.f32.mrf.mxu0
          %1565 = vmatprep.mubr.bf16.mxu0 0
          %1566 = vmatmul.mubr.bf16.gmra.mxu0 %v1341
          %v1567 = vpop.f32.mrf.mxu0
          %v1568 = vadd.f32 %v1363, %v1567
          %v1569 = vpop.f32.mrf.mxu0
          %v1570 = vpop.f32.mrf.mxu0
          %v1571 = vadd.f32 %v1363, %v1570
          %v1572 = vpop.f32.mrf.mxu0
          %1573 = vdwg.mxu0
          %v1574 = vmax.f32 %v1448, 0.0
          %v1575 = vmax.f32 %v1451, 0.0
          %v1576 = vmax.f32 %v1456, 0.0
          %v1577 = vmax.f32 %v1459, 0.0
          %v1578 = vmax.f32 %v1464, 0.0
          %v1579 = vmax.f32 %v1467, 0.0
          %v1580 = vmax.f32 %v1472, 0.0
          %v1581 = vmax.f32 %v1475, 0.0
          %v1582 = vmax.f32 %v1480, 0.0
          %v1583 = vmax.f32 %v1483, 0.0
          %v1584 = vmax.f32 %v1488, 0.0
          %v1585 = vmax.f32 %v1491, 0.0
          %v1586 = vmax.f32 %v1496, 0.0
          %v1587 = vmax.f32 %v1499, 0.0
          %v1588 = vmax.f32 %v1504, 0.0
          %v1589 = vmax.f32 %v1507, 0.0
          %v1590 = vmax.f32 %v1512, 0.0
          %v1591 = vmax.f32 %v1515, 0.0
          %v1592 = vmax.f32 %v1520, 0.0
          %v1593 = vmax.f32 %v1523, 0.0
          %v1594 = vmax.f32 %v1528, 0.0
          %v1595 = vmax.f32 %v1531, 0.0
          %v1596 = vmax.f32 %v1536, 0.0
          %v1597 = vmax.f32 %v1539, 0.0
          %v1598 = vmax.f32 %v1544, 0.0
          %v1599 = vmax.f32 %v1547, 0.0
          %v1600 = vmax.f32 %v1552, 0.0
          %v1601 = vmax.f32 %v1555, 0.0
          %v1602 = vmax.f32 %v1560, 0.0
          %v1603 = vmax.f32 %v1563, 0.0
          %v1604 = vmax.f32 %v1568, 0.0
          %v1605 = vmax.f32 %v1571, 0.0
          %v1606 = vpack.c.bf16 %v1575, %v1574
          %v1607 = vpack.c.bf16 %v1577, %v1576
          %v1608 = vpack.c.bf16 %v1579, %v1578
          %v1609 = vpack.c.bf16 %v1581, %v1580
          %v1610 = vpack.c.bf16 %v1583, %v1582
          %v1611 = vpack.c.bf16 %v1585, %v1584
          %v1612 = vpack.c.bf16 %v1587, %v1586
          %v1613 = vpack.c.bf16 %v1589, %v1588
          %v1614 = vpack.c.bf16 %v1591, %v1590
          %v1615 = vpack.c.bf16 %v1593, %v1592
          %v1616 = vpack.c.bf16 %v1595, %v1594
          %v1617 = vpack.c.bf16 %v1597, %v1596
          %v1618 = vpack.c.bf16 %v1599, %v1598
          %v1619 = vpack.c.bf16 %v1601, %v1600
          %v1620 = vpack.c.bf16 %v1603, %v1602
          %v1621 = vpack.c.bf16 %v1605, %v1604
          %v1622 = vld [vmem:[#allocation11] sm:$0xf]
          %v1623 = vld [vmem:[#allocation11 + $0x4] sm:$0xf]
          %v1624 = vld [vmem:[#allocation11 + $0x8] sm:$0xf]
          %v1625 = vld [vmem:[#allocation11 + $0xc] sm:$0xf]
          %v1626 = vld [vmem:[#allocation11 + $0x10] sm:$0xf]
          %v1627 = vld [vmem:[#allocation11 + $0x14] sm:$0xf]
          %v1628 = vld [vmem:[#allocation11 + $0x18] sm:$0xf]
          %v1629 = vld [vmem:[#allocation11 + $0x1c] sm:$0xf]
          %v1630 = vld [vmem:[#allocation11 + $0x20] sm:$0xf]
          %v1631 = vld [vmem:[#allocation11 + $0x24] sm:$0xf]
          %v1632 = vld [vmem:[#allocation11 + $0x28] sm:$0xf]
          %v1633 = vld [vmem:[#allocation11 + $0x2c] sm:$0xf]
          %v1634 = vld [vmem:[#allocation11 + $0x30] sm:$0xf]
          %v1635 = vld [vmem:[#allocation11 + $0x34] sm:$0xf]
          %v1636 = vld [vmem:[#allocation11 + $0x38] sm:$0xf]
          %v1637 = vld [vmem:[#allocation11 + $0x3c] sm:$0xf]
          %v1638 = vld [vmem:[%s8] sm:$0x1]
          %v1640 = vlaneseq
          %v1641 = vshrl.u32 %v1640, 7
          %v1642 = vsub.s32 0, %v1641
          %v1643 = vrot.slane %v1638, %v1642
          %v1661 = vunpack.c.l.b16 %v1622
          %v1662 = vunpack.c.l.b16 %v1623
          %v1663 = vunpack.c.l.b16 %v1624
          %v1664 = vunpack.c.l.b16 %v1625
          %v1665 = vunpack.c.l.b16 %v1626
          %v1666 = vunpack.c.l.b16 %v1627
          %v1667 = vunpack.c.l.b16 %v1628
          %v1668 = vunpack.c.l.b16 %v1629
          %v1669 = vunpack.c.l.b16 %v1630
          %v1670 = vunpack.c.l.b16 %v1631
          %v1671 = vunpack.c.l.b16 %v1632
          %v1672 = vunpack.c.l.b16 %v1633
          %v1673 = vunpack.c.l.b16 %v1634
          %v1674 = vunpack.c.l.b16 %v1635
          %v1675 = vunpack.c.l.b16 %v1636
          %v1676 = vunpack.c.l.b16 %v1637
          %v1677 = vpack.c.b16 %v1662, %v1661
          %v1678 = vpack.c.b16 %v1664, %v1663
          %v1679 = vpack.c.b16 %v1666, %v1665
          %v1680 = vpack.c.b16 %v1668, %v1667
          %v1681 = vpack.c.b16 %v1670, %v1669
          %v1682 = vpack.c.b16 %v1672, %v1671
          %v1683 = vpack.c.b16 %v1674, %v1673
          %v1684 = vpack.c.b16 %v1676, %v1675
          %1693 = vmatprep.subr.bf16.mxu0 0
          %1694 = vmatpush1.bf16.msra.mxu0 %v1684
          %1695 = vmatprep.subr.bf16.mxu0 0
          %1696 = vmatpush1.bf16.msra.mxu0 %v1683
          %1697 = vmatprep.subr.bf16.mxu0 0
          %1698 = vmatpush1.bf16.msra.mxu0 %v1682
          %1699 = vmatprep.subr.bf16.mxu0 0
          %1700 = vmatpush1.bf16.msra.mxu0 %v1681
          %1701 = vmatprep.subr.bf16.mxu0 0
          %1702 = vmatpush1.bf16.msra.mxu0 %v1680
          %1703 = vmatprep.subr.bf16.mxu0 0
          %1704 = vmatpush1.bf16.msra.mxu0 %v1679
          %1705 = vmatprep.subr.bf16.mxu0 0
          %1706 = vmatpush1.bf16.msra.mxu0 %v1678
          %1707 = vmatprep.subr.bf16.mxu0 0
          %1708 = vmatpush1.bf16.msra.mxu0 %v1677
          %1709 = vmatprep.subr.bf16.mxu0 0
          %1710 = vmatpush2.bf16.msra.mxu0 0
          %1711 = vmatprep.subr.bf16.mxu0 0
          %1712 = vmatpush2.bf16.msra.mxu0 0
          %1713 = vmatprep.subr.bf16.mxu0 0
          %1714 = vmatpush2.bf16.msra.mxu0 0
          %1715 = vmatprep.subr.bf16.mxu0 0
          %1716 = vmatpush2.bf16.msra.mxu0 0
          %1717 = vmatprep.subr.bf16.mxu0 0
          %1718 = vmatpush2.bf16.msra.mxu0 0
          %1719 = vmatprep.subr.bf16.mxu0 0
          %1720 = vmatpush2.bf16.msra.mxu0 0
          %1721 = vmatprep.subr.bf16.mxu0 0
          %1722 = vmatpush2.bf16.msra.mxu0 0
          %1723 = vmatprep.subr.bf16.mxu0 0
          %1724 = vmatpush2.bf16.msra.mxu0 0
          %1725 = vmatprep.mubr.bf16.mxu0 0
          %1726 = vmatmul.mubr.bf16.gmra.mxu0 %v1606
          %v1727 = vpop.f32.mrf.mxu0
          %v1728 = vadd.f32 %v1643, %v1727
          %v1729 = vpop.f32.mrf.mxu0
          %v1730 = vpop.f32.mrf.mxu0
          %v1731 = vadd.f32 %v1643, %v1730
          %v1732 = vpop.f32.mrf.mxu0
          %1733 = vmatprep.mubr.bf16.mxu0 0
          %1734 = vmatmul.mubr.bf16.gmra.mxu0 %v1607
          %v1735 = vpop.f32.mrf.mxu0
          %v1736 = vadd.f32 %v1643, %v1735
          %v1737 = vpop.f32.mrf.mxu0
          %v1738 = vpop.f32.mrf.mxu0
          %v1739 = vadd.f32 %v1643, %v1738
          %v1740 = vpop.f32.mrf.mxu0
          %1741 = vmatprep.mubr.bf16.mxu0 0
          %1742 = vmatmul.mubr.bf16.gmra.mxu0 %v1608
          %v1743 = vpop.f32.mrf.mxu0
          %v1744 = vadd.f32 %v1643, %v1743
          %v1745 = vpop.f32.mrf.mxu0
          %v1746 = vpop.f32.mrf.mxu0
          %v1747 = vadd.f32 %v1643, %v1746
          %v1748 = vpop.f32.mrf.mxu0
          %1749 = vmatprep.mubr.bf16.mxu0 0
          %1750 = vmatmul.mubr.bf16.gmra.mxu0 %v1609
          %v1751 = vpop.f32.mrf.mxu0
          %v1752 = vadd.f32 %v1643, %v1751
          %v1753 = vpop.f32.mrf.mxu0
          %v1754 = vpop.f32.mrf.mxu0
          %v1755 = vadd.f32 %v1643, %v1754
          %v1756 = vpop.f32.mrf.mxu0
          %1757 = vmatprep.mubr.bf16.mxu0 0
          %1758 = vmatmul.mubr.bf16.gmra.mxu0 %v1610
          %v1759 = vpop.f32.mrf.mxu0
          %v1760 = vadd.f32 %v1643, %v1759
          %v1761 = vpop.f32.mrf.mxu0
          %v1762 = vpop.f32.mrf.mxu0
          %v1763 = vadd.f32 %v1643, %v1762
          %v1764 = vpop.f32.mrf.mxu0
          %1765 = vmatprep.mubr.bf16.mxu0 0
          %1766 = vmatmul.mubr.bf16.gmra.mxu0 %v1611
          %v1767 = vpop.f32.mrf.mxu0
          %v1768 = vadd.f32 %v1643, %v1767
          %v1769 = vpop.f32.mrf.mxu0
          %v1770 = vpop.f32.mrf.mxu0
          %v1771 = vadd.f32 %v1643, %v1770
          %v1772 = vpop.f32.mrf.mxu0
          %1773 = vmatprep.mubr.bf16.mxu0 0
          %1774 = vmatmul.mubr.bf16.gmra.mxu0 %v1612
          %v1775 = vpop.f32.mrf.mxu0
          %v1776 = vadd.f32 %v1643, %v1775
          %v1777 = vpop.f32.mrf.mxu0
          %v1778 = vpop.f32.mrf.mxu0
          %v1779 = vadd.f32 %v1643, %v1778
          %v1780 = vpop.f32.mrf.mxu0
          %1781 = vmatprep.mubr.bf16.mxu0 0
          %1782 = vmatmul.mubr.bf16.gmra.mxu0 %v1613
          %v1783 = vpop.f32.mrf.mxu0
          %v1784 = vadd.f32 %v1643, %v1783
          %v1785 = vpop.f32.mrf.mxu0
          %v1786 = vpop.f32.mrf.mxu0
          %v1787 = vadd.f32 %v1643, %v1786
          %v1788 = vpop.f32.mrf.mxu0
          %1789 = vmatprep.mubr.bf16.mxu0 0
          %1790 = vmatmul.mubr.bf16.gmra.mxu0 %v1614
          %v1791 = vpop.f32.mrf.mxu0
          %v1792 = vadd.f32 %v1643, %v1791
          %v1793 = vpop.f32.mrf.mxu0
          %v1794 = vpop.f32.mrf.mxu0
          %v1795 = vadd.f32 %v1643, %v1794
          %v1796 = vpop.f32.mrf.mxu0
          %1797 = vmatprep.mubr.bf16.mxu0 0
          %1798 = vmatmul.mubr.bf16.gmra.mxu0 %v1615
          %v1799 = vpop.f32.mrf.mxu0
          %v1800 = vadd.f32 %v1643, %v1799
          %v1801 = vpop.f32.mrf.mxu0
          %v1802 = vpop.f32.mrf.mxu0
          %v1803 = vadd.f32 %v1643, %v1802
          %v1804 = vpop.f32.mrf.mxu0
          %1805 = vmatprep.mubr.bf16.mxu0 0
          %1806 = vmatmul.mubr.bf16.gmra.mxu0 %v1616
          %v1807 = vpop.f32.mrf.mxu0
          %v1808 = vadd.f32 %v1643, %v1807
          %v1809 = vpop.f32.mrf.mxu0
          %v1810 = vpop.f32.mrf.mxu0
          %v1811 = vadd.f32 %v1643, %v1810
          %v1812 = vpop.f32.mrf.mxu0
          %1813 = vmatprep.mubr.bf16.mxu0 0
          %1814 = vmatmul.mubr.bf16.gmra.mxu0 %v1617
          %v1815 = vpop.f32.mrf.mxu0
          %v1816 = vadd.f32 %v1643, %v1815
          %v1817 = vpop.f32.mrf.mxu0
          %v1818 = vpop.f32.mrf.mxu0
          %v1819 = vadd.f32 %v1643, %v1818
          %v1820 = vpop.f32.mrf.mxu0
          %1821 = vmatprep.mubr.bf16.mxu0 0
          %1822 = vmatmul.mubr.bf16.gmra.mxu0 %v1618
          %v1823 = vpop.f32.mrf.mxu0
          %v1824 = vadd.f32 %v1643, %v1823
          %v1825 = vpop.f32.mrf.mxu0
          %v1826 = vpop.f32.mrf.mxu0
          %v1827 = vadd.f32 %v1643, %v1826
          %v1828 = vpop.f32.mrf.mxu0
          %1829 = vmatprep.mubr.bf16.mxu0 0
          %1830 = vmatmul.mubr.bf16.gmra.mxu0 %v1619
          %v1831 = vpop.f32.mrf.mxu0
          %v1832 = vadd.f32 %v1643, %v1831
          %v1833 = vpop.f32.mrf.mxu0
          %v1834 = vpop.f32.mrf.mxu0
          %v1835 = vadd.f32 %v1643, %v1834
          %v1836 = vpop.f32.mrf.mxu0
          %1837 = vmatprep.mubr.bf16.mxu0 0
          %1838 = vmatmul.mubr.bf16.gmra.mxu0 %v1620
          %v1839 = vpop.f32.mrf.mxu0
          %v1840 = vadd.f32 %v1643, %v1839
          %v1841 = vpop.f32.mrf.mxu0
          %v1842 = vpop.f32.mrf.mxu0
          %v1843 = vadd.f32 %v1643, %v1842
          %v1844 = vpop.f32.mrf.mxu0
          %1845 = vmatprep.mubr.bf16.mxu0 0
          %1846 = vmatmul.mubr.bf16.gmra.mxu0 %v1621
          %v1847 = vpop.f32.mrf.mxu0
          %v1848 = vadd.f32 %v1643, %v1847
          %v1849 = vpop.f32.mrf.mxu0
          %v1850 = vpop.f32.mrf.mxu0
          %v1851 = vadd.f32 %v1643, %v1850
          %v1852 = vpop.f32.mrf.mxu0
          %1853 = vdwg.mxu0
          %v1854 = vxor.u32 %v1728, 2147483648
          %v1855 = vxor.u32 %v1731, 2147483648
          %v1856 = vxor.u32 %v1736, 2147483648
          %v1857 = vxor.u32 %v1739, 2147483648
          %v1858 = vxor.u32 %v1744, 2147483648
          %v1859 = vxor.u32 %v1747, 2147483648
          %v1860 = vxor.u32 %v1752, 2147483648
          %v1861 = vxor.u32 %v1755, 2147483648
          %v1862 = vxor.u32 %v1760, 2147483648
          %v1863 = vxor.u32 %v1763, 2147483648
          %v1864 = vxor.u32 %v1768, 2147483648
          %v1865 = vxor.u32 %v1771, 2147483648
          %v1866 = vxor.u32 %v1776, 2147483648
          %v1867 = vxor.u32 %v1779, 2147483648
          %v1868 = vxor.u32 %v1784, 2147483648
          %v1869 = vxor.u32 %v1787, 2147483648
          %v1870 = vxor.u32 %v1792, 2147483648
          %v1871 = vxor.u32 %v1795, 2147483648
          %v1872 = vxor.u32 %v1800, 2147483648
          %v1873 = vxor.u32 %v1803, 2147483648
          %v1874 = vxor.u32 %v1808, 2147483648
          %v1875 = vxor.u32 %v1811, 2147483648
          %v1876 = vxor.u32 %v1816, 2147483648
          %v1877 = vxor.u32 %v1819, 2147483648
          %v1878 = vxor.u32 %v1824, 2147483648
          %v1879 = vxor.u32 %v1827, 2147483648
          %v1880 = vxor.u32 %v1832, 2147483648
          %v1881 = vxor.u32 %v1835, 2147483648
          %v1882 = vxor.u32 %v1840, 2147483648
          %v1883 = vxor.u32 %v1843, 2147483648
          %v1884 = vxor.u32 %v1848, 2147483648
          %v1885 = vxor.u32 %v1851, 2147483648
          %v1886 = vmul.f32 %v1854, 1.442695
          %v1887 = vpow.pop %v1886
          %v1888 = vmul.f32 %v1855, 1.442695
          %v1889 = vpow.pop %v1888
          %v1890 = vmul.f32 %v1856, 1.442695
          %v1891 = vpow.pop %v1890
          %v1892 = vmul.f32 %v1857, 1.442695
          %v1893 = vpow.pop %v1892
          %v1894 = vmul.f32 %v1858, 1.442695
          %v1895 = vpow.pop %v1894
          %v1896 = vmul.f32 %v1859, 1.442695
          %v1897 = vpow.pop %v1896
          %v1898 = vmul.f32 %v1860, 1.442695
          %v1899 = vpow.pop %v1898
          %v1900 = vmul.f32 %v1861, 1.442695
          %v1901 = vpow.pop %v1900
          %v1902 = vmul.f32 %v1862, 1.442695
          %v1903 = vpow.pop %v1902
          %v1904 = vmul.f32 %v1863, 1.442695
          %v1905 = vpow.pop %v1904
          %v1906 = vmul.f32 %v1864, 1.442695
          %v1907 = vpow.pop %v1906
          %v1908 = vmul.f32 %v1865, 1.442695
          %v1909 = vpow.pop %v1908
          %v1910 = vmul.f32 %v1866, 1.442695
          %v1911 = vpow.pop %v1910
          %v1912 = vmul.f32 %v1867, 1.442695
          %v1913 = vpow.pop %v1912
          %v1914 = vmul.f32 %v1868, 1.442695
          %v1915 = vpow.pop %v1914
          %v1916 = vmul.f32 %v1869, 1.442695
          %v1917 = vpow.pop %v1916
          %v1918 = vmul.f32 %v1870, 1.442695
          %v1919 = vpow.pop %v1918
          %v1920 = vmul.f32 %v1871, 1.442695
          %v1921 = vpow.pop %v1920
          %v1922 = vmul.f32 %v1872, 1.442695
          %v1923 = vpow.pop %v1922
          %v1924 = vmul.f32 %v1873, 1.442695
          %v1925 = vpow.pop %v1924
          %v1926 = vmul.f32 %v1874, 1.442695
          %v1927 = vpow.pop %v1926
          %v1928 = vmul.f32 %v1875, 1.442695
          %v1929 = vpow.pop %v1928
          %v1930 = vmul.f32 %v1876, 1.442695
          %v1931 = vpow.pop %v1930
          %v1932 = vmul.f32 %v1877, 1.442695
          %v1933 = vpow.pop %v1932
          %v1934 = vmul.f32 %v1878, 1.442695
          %v1935 = vpow.pop %v1934
          %v1936 = vmul.f32 %v1879, 1.442695
          %v1937 = vpow.pop %v1936
          %v1938 = vmul.f32 %v1880, 1.442695
          %v1939 = vpow.pop %v1938
          %v1940 = vmul.f32 %v1881, 1.442695
          %v1941 = vpow.pop %v1940
          %v1942 = vmul.f32 %v1882, 1.442695
          %v1943 = vpow.pop %v1942
          %v1944 = vmul.f32 %v1883, 1.442695
          %v1945 = vpow.pop %v1944
          %v1946 = vmul.f32 %v1884, 1.442695
          %v1947 = vpow.pop %v1946
          %v1948 = vmul.f32 %v1885, 1.442695
          %v1949 = vpow.pop %v1948
          %v1950 = vadd.f32 %v1887, 1.0
          %v1951 = vadd.f32 %v1889, 1.0
          %v1952 = vadd.f32 %v1891, 1.0
          %v1953 = vadd.f32 %v1893, 1.0
          %v1954 = vadd.f32 %v1895, 1.0
          %v1955 = vadd.f32 %v1897, 1.0
          %v1956 = vadd.f32 %v1899, 1.0
          %v1957 = vadd.f32 %v1901, 1.0
          %v1958 = vadd.f32 %v1903, 1.0
          %v1959 = vadd.f32 %v1905, 1.0
          %v1960 = vadd.f32 %v1907, 1.0
          %v1961 = vadd.f32 %v1909, 1.0
          %v1962 = vadd.f32 %v1911, 1.0
          %v1963 = vadd.f32 %v1913, 1.0
          %v1964 = vadd.f32 %v1915, 1.0
          %v1965 = vadd.f32 %v1917, 1.0
          %v1966 = vadd.f32 %v1919, 1.0
          %v1967 = vadd.f32 %v1921, 1.0
          %v1968 = vadd.f32 %v1923, 1.0
          %v1969 = vadd.f32 %v1925, 1.0
          %v1970 = vadd.f32 %v1927, 1.0
          %v1971 = vadd.f32 %v1929, 1.0
          %v1972 = vadd.f32 %v1931, 1.0
          %v1973 = vadd.f32 %v1933, 1.0
          %v1974 = vadd.f32 %v1935, 1.0
          %v1975 = vadd.f32 %v1937, 1.0
          %v1976 = vadd.f32 %v1939, 1.0
          %v1977 = vadd.f32 %v1941, 1.0
          %v1978 = vadd.f32 %v1943, 1.0
          %v1979 = vadd.f32 %v1945, 1.0
          %v1980 = vadd.f32 %v1947, 1.0
          %v1981 = vadd.f32 %v1949, 1.0
          %v1982 = vrcp.pop %v1950
          %v1983 = vmul.f32 1.0, %v1982
          %v1984 = vrcp.pop %v1951
          %v1985 = vmul.f32 1.0, %v1984
          %v1986 = vrcp.pop %v1952
          %v1987 = vmul.f32 1.0, %v1986
          %v1988 = vrcp.pop %v1953
          %v1989 = vmul.f32 1.0, %v1988
          %v1990 = vrcp.pop %v1954
          %v1991 = vmul.f32 1.0, %v1990
          %v1992 = vrcp.pop %v1955
          %v1993 = vmul.f32 1.0, %v1992
          %v1994 = vrcp.pop %v1956
          %v1995 = vmul.f32 1.0, %v1994
          %v1996 = vrcp.pop %v1957
          %v1997 = vmul.f32 1.0, %v1996
          %v1998 = vrcp.pop %v1958
          %v1999 = vmul.f32 1.0, %v1998
          %v2000 = vrcp.pop %v1959
          %v2001 = vmul.f32 1.0, %v2000
          %v2002 = vrcp.pop %v1960
          %v2003 = vmul.f32 1.0, %v2002
          %v2004 = vrcp.pop %v1961
          %v2005 = vmul.f32 1.0, %v2004
          %v2006 = vrcp.pop %v1962
          %v2007 = vmul.f32 1.0, %v2006
          %v2008 = vrcp.pop %v1963
          %v2009 = vmul.f32 1.0, %v2008
          %v2010 = vrcp.pop %v1964
          %v2011 = vmul.f32 1.0, %v2010
          %v2012 = vrcp.pop %v1965
          %v2013 = vmul.f32 1.0, %v2012
          %v2014 = vrcp.pop %v1966
          %v2015 = vmul.f32 1.0, %v2014
          %v2016 = vrcp.pop %v1967
          %v2017 = vmul.f32 1.0, %v2016
          %v2018 = vrcp.pop %v1968
          %v2019 = vmul.f32 1.0, %v2018
          %v2020 = vrcp.pop %v1969
          %v2021 = vmul.f32 1.0, %v2020
          %v2022 = vrcp.pop %v1970
          %v2023 = vmul.f32 1.0, %v2022
          %v2024 = vrcp.pop %v1971
          %v2025 = vmul.f32 1.0, %v2024
          %v2026 = vrcp.pop %v1972
          %v2027 = vmul.f32 1.0, %v2026
          %v2028 = vrcp.pop %v1973
          %v2029 = vmul.f32 1.0, %v2028
          %v2030 = vrcp.pop %v1974
          %v2031 = vmul.f32 1.0, %v2030
          %v2032 = vrcp.pop %v1975
          %v2033 = vmul.f32 1.0, %v2032
          %v2034 = vrcp.pop %v1976
          %v2035 = vmul.f32 1.0, %v2034
          %v2036 = vrcp.pop %v1977
          %v2037 = vmul.f32 1.0, %v2036
          %v2038 = vrcp.pop %v1978
          %v2039 = vmul.f32 1.0, %v2038
          %v2040 = vrcp.pop %v1979
          %v2041 = vmul.f32 1.0, %v2040
          %v2042 = vrcp.pop %v1980
          %v2043 = vmul.f32 1.0, %v2042
          %v2044 = vrcp.pop %v1981
          %v2045 = vmul.f32 1.0, %v2044
          %v2046 = vpack.c.bf16 %v1985, %v1983
          %v2047 = vpack.c.bf16 %v1989, %v1987
          %v2048 = vpack.c.bf16 %v1993, %v1991
          %v2049 = vpack.c.bf16 %v1997, %v1995
          %v2050 = vpack.c.bf16 %v2001, %v1999
          %v2051 = vpack.c.bf16 %v2005, %v2003
          %v2052 = vpack.c.bf16 %v2009, %v2007
          %v2053 = vpack.c.bf16 %v2013, %v2011
          %v2054 = vpack.c.bf16 %v2017, %v2015
          %v2055 = vpack.c.bf16 %v2021, %v2019
          %v2056 = vpack.c.bf16 %v2025, %v2023
          %v2057 = vpack.c.bf16 %v2029, %v2027
          %v2058 = vpack.c.bf16 %v2033, %v2031
          %v2059 = vpack.c.bf16 %v2037, %v2035
          %v2060 = vpack.c.bf16 %v2041, %v2039
          %v2061 = vpack.c.bf16 %v2045, %v2043
          %v2078 = vunpack.c.l.b16 %v2046
          %v2079 = vunpack.c.h.b16 %v2046
          %v2080 = vunpack.c.l.b16 %v2047
          %v2081 = vunpack.c.h.b16 %v2047
          %v2082 = vunpack.c.l.b16 %v2048
          %v2083 = vunpack.c.h.b16 %v2048
          %v2084 = vunpack.c.l.b16 %v2049
          %v2085 = vunpack.c.h.b16 %v2049
          %v2086 = vunpack.c.l.b16 %v2050
          %v2087 = vunpack.c.h.b16 %v2050
          %v2088 = vunpack.c.l.b16 %v2051
          %v2089 = vunpack.c.h.b16 %v2051
          %v2090 = vunpack.c.l.b16 %v2052
          %v2091 = vunpack.c.h.b16 %v2052
          %v2092 = vunpack.c.l.b16 %v2053
          %v2093 = vunpack.c.h.b16 %v2053
          %v2094 = vunpack.c.l.b16 %v2054
          %v2095 = vunpack.c.h.b16 %v2054
          %v2096 = vunpack.c.l.b16 %v2055
          %v2097 = vunpack.c.h.b16 %v2055
          %v2098 = vunpack.c.l.b16 %v2056
          %v2099 = vunpack.c.h.b16 %v2056
          %v2100 = vunpack.c.l.b16 %v2057
          %v2101 = vunpack.c.h.b16 %v2057
          %v2102 = vunpack.c.l.b16 %v2058
          %v2103 = vunpack.c.h.b16 %v2058
          %v2104 = vunpack.c.l.b16 %v2059
          %v2105 = vunpack.c.h.b16 %v2059
          %v2106 = vunpack.c.l.b16 %v2060
          %v2107 = vunpack.c.h.b16 %v2060
          %v2108 = vunpack.c.l.b16 %v2061
          %v2109 = vunpack.c.h.b16 %v2061
          %v2110 = vpack.c.b16 %v2078, %v2078
          %v2111 = vpack.c.b16 %v2079, %v2079
          %v2112 = vpack.c.b16 %v2080, %v2080
          %v2113 = vpack.c.b16 %v2081, %v2081
          %v2114 = vpack.c.b16 %v2082, %v2082
          %v2115 = vpack.c.b16 %v2083, %v2083
          %v2116 = vpack.c.b16 %v2084, %v2084
          %v2117 = vpack.c.b16 %v2085, %v2085
          %v2118 = vpack.c.b16 %v2086, %v2086
          %v2119 = vpack.c.b16 %v2087, %v2087
          %v2120 = vpack.c.b16 %v2088, %v2088
          %v2121 = vpack.c.b16 %v2089, %v2089
          %v2122 = vpack.c.b16 %v2090, %v2090
          %v2123 = vpack.c.b16 %v2091, %v2091
          %v2124 = vpack.c.b16 %v2092, %v2092
          %v2125 = vpack.c.b16 %v2093, %v2093
          %v2126 = vpack.c.b16 %v2094, %v2094
          %v2127 = vpack.c.b16 %v2095, %v2095
          %v2128 = vpack.c.b16 %v2096, %v2096
          %v2129 = vpack.c.b16 %v2097, %v2097
          %v2130 = vpack.c.b16 %v2098, %v2098
          %v2131 = vpack.c.b16 %v2099, %v2099
          %v2132 = vpack.c.b16 %v2100, %v2100
          %v2133 = vpack.c.b16 %v2101, %v2101
          %v2134 = vpack.c.b16 %v2102, %v2102
          %v2135 = vpack.c.b16 %v2103, %v2103
          %v2136 = vpack.c.b16 %v2104, %v2104
          %v2137 = vpack.c.b16 %v2105, %v2105
          %v2138 = vpack.c.b16 %v2106, %v2106
          %v2139 = vpack.c.b16 %v2107, %v2107
          %v2140 = vpack.c.b16 %v2108, %v2108
          %v2141 = vpack.c.b16 %v2109, %v2109
          %2174 = vst [vmem:[%s449] sm:$0xf] %v2110
          %2175 = vst [vmem:[%s449 + $0x4] sm:$0xf] %v2111
          %2176 = vst [vmem:[%s449 + $0x8] sm:$0xf] %v2112
          %2177 = vst [vmem:[%s449 + $0xc] sm:$0xf] %v2113
          %2178 = vst [vmem:[%s449 + $0x10] sm:$0xf] %v2114
          %2179 = vst [vmem:[%s449 + $0x14] sm:$0xf] %v2115
          %2180 = vst [vmem:[%s449 + $0x18] sm:$0xf] %v2116
          %2181 = vst [vmem:[%s449 + $0x1c] sm:$0xf] %v2117
          %2182 = vst [vmem:[%s449 + $0x20] sm:$0xf] %v2118
          %2183 = vst [vmem:[%s449 + $0x24] sm:$0xf] %v2119
          %2184 = vst [vmem:[%s449 + $0x28] sm:$0xf] %v2120
          %2185 = vst [vmem:[%s449 + $0x2c] sm:$0xf] %v2121
          %2186 = vst [vmem:[%s449 + $0x30] sm:$0xf] %v2122
          %2187 = vst [vmem:[%s449 + $0x34] sm:$0xf] %v2123
          %2188 = vst [vmem:[%s449 + $0x38] sm:$0xf] %v2124
          %2189 = vst [vmem:[%s449 + $0x3c] sm:$0xf] %v2125
          %2190 = vst [vmem:[%s449 + $0x40] sm:$0xf] %v2126
          %2191 = vst [vmem:[%s449 + $0x44] sm:$0xf] %v2127
          %2192 = vst [vmem:[%s449 + $0x48] sm:$0xf] %v2128
          %2193 = vst [vmem:[%s449 + $0x4c] sm:$0xf] %v2129
          %2194 = vst [vmem:[%s449 + $0x50] sm:$0xf] %v2130
          %2195 = vst [vmem:[%s449 + $0x54] sm:$0xf] %v2131
          %2196 = vst [vmem:[%s449 + $0x58] sm:$0xf] %v2132
          %2197 = vst [vmem:[%s449 + $0x5c] sm:$0xf] %v2133
          %2198 = vst [vmem:[%s449 + $0x60] sm:$0xf] %v2134
          %2199 = vst [vmem:[%s449 + $0x64] sm:$0xf] %v2135
          %2200 = vst [vmem:[%s449 + $0x68] sm:$0xf] %v2136
          %2201 = vst [vmem:[%s449 + $0x6c] sm:$0xf] %v2137
          %2202 = vst [vmem:[%s449 + $0x70] sm:$0xf] %v2138
          %2203 = vst [vmem:[%s449 + $0x74] sm:$0xf] %v2139
          %2204 = vst [vmem:[%s449 + $0x78] sm:$0xf] %v2140
          %2205 = vst [vmem:[%s449 + $0x7c] sm:$0xf] %v2141
        $region84: #{tpu_custom_call.1} parent=55 // pred_fallthru
          _
        %s2206 = sand.u32 %s251, 1
        %s2207 = scalar_lea.sflag [#allocation5], %s2206
        %s2208 = sand.u32 %s251, 1
        %s2209 = smul.addr %s2208, 128
        %s2210 = scalar_lea.vmem [#allocation12], %s2209
        // Predicated region
        $region85: #{tpu_custom_call.1} parent=55 // pred_check
          %p2211 = pneg %p261
        $region86: #{tpu_custom_call.1} parent=55 // pred_check_branch
          %2213 = sbr.rel (%p2211) target = $region88
        $region87: #{tpu_custom_call.1} parent=55 // pred_region
          %s2214 = smul.u32 32, %s34
          %s2216 = ssub.s32 2048, 2048
          %2217 = vsyncadd %s2207, %s2216
          %s2218 = smul.addr %s2214, 64
          %s2219 = scalar_lea.hbm %s9, %s2218
          %s2220 = sshll.u32 %s2210, 4
          %s2221 = int_to_ptr.vmem [resolvable:$true] %s2220
          %2226 = dma.vmem_to_hbm [thread:$0]  %s2221, 2048, %s2219, %s2207, 64, 64, 4
        $region88: #{tpu_custom_call.1} parent=55 // pred_fallthru
          _
      $region56: #{tpu_custom_call.1} parent=5 // pred_fallthru
        _
      %p2227 = scmp.le.s32.totalorder 2, %s25
      // Predicated region
      $region89: #{tpu_custom_call.1} parent=5 // pred_check
        %p2228 = pneg %p2227
      $region90: #{tpu_custom_call.1} parent=5 // pred_check_branch
        %2230 = sbr.rel (%p2228) target = $region92
      $region91: #{tpu_custom_call.1} parent=5 // pred_region
        %s2231 = ssub.s32 %s25, 2
        // Predicated region
        $region93: #{tpu_custom_call.1} parent=91 // pred_check
          %p2232 = pneg %p267
        $region94: #{tpu_custom_call.1} parent=91 // pred_check_branch
          %2234 = sbr.rel (%p2232) target = $region96
        $region95: #{tpu_custom_call.1} parent=91 // pred_region
          %s2235 = sand.u32 %s252, 1
          %s2236 = scalar_lea.sflag [#allocation5], %s2235
          %s2237 = sand.u32 %s252, 1
          %s2238 = smul.addr %s2237, 128
          %s2239 = scalar_lea.vmem [#allocation12], %s2238
          %2240 = dma.done %s2236, 2048
        $region96: #{tpu_custom_call.1} parent=91 // pred_fallthru
          _
      $region92: #{tpu_custom_call.1} parent=5 // pred_fallthru
        _
    $region6: #{tpu_custom_call.1} parent=1 // loop_footer
      %s29 = sadd.s32 1, %s25
    $region7: #{tpu_custom_call.1} parent=1 // loop_footer_branch
      %24 = sbr.rel target = $region3
    $region8: #{tpu_custom_call.1} parent=1 // loop_exit
      _
    %2241 = vsyncpa [#allocation4], 1
    %s2242 = scalar_lea.sflag [#allocation4], 1
    %2243 = vsyncpa %s2242, 1
    %2244 = vsyncpa [#allocation7], 1
    %s2245 = scalar_lea.sflag [#allocation7], 1
    %2246 = vsyncpa %s2245, 1
    %2247 = vsyncpa [#allocation10], 1
    %2248 = vsyncpa [#allocation5], 1
    %s2249 = scalar_lea.sflag [#allocation5], 1
    %2250 = vsyncpa %s2249, 1

// kernel: tpu_custom_call.1
$region0: #{tpu_custom_call.1}
  #allocation0 [shape = 'u32[]', space=smem, size = 0x4, offset = 0x4, fixed_abs, tag = 'smem constant byte address 0x4 - core index']
  #allocation1 [shape = 'u32[144,128]{1,0:T(1,128)}', space=vmem, size = 0x12000, scoped, tag = 'internal scratch']
  #allocation2 [shape = 'f32[256,128]{1,0:T(8,128)}', space=vmem, size = 0x20000, scoped, tag = 'scratch operand']
  %s0 = inlined_call_operand.hbm [shape: bf16[512,384], index: 0, kind: input, shape index: {}]
  %s1 = inlined_call_operand.hbm [shape: bf16[384,128], index: 1, kind: input, shape index: {}]
  %s2 = inlined_call_operand.vmem [shape: f32[1,128], index: 2, kind: input, shape index: {}]
  %s3 = inlined_call_operand.hbm [shape: bf16[128,128], index: 3, kind: input, shape index: {}]
  %s4 = inlined_call_operand.vmem [shape: f32[1,128], index: 4, kind: input, shape index: {}]
  %s5 = inlined_call_operand.hbm [shape: bf16[128,128], index: 5, kind: input, shape index: {}]
  %s6 = inlined_call_operand.vmem [shape: f32[1,128], index: 6, kind: input, shape index: {}]
  %s7 = inlined_call_operand.hbm [shape: bf16[128,128], index: 7, kind: input, shape index: {}]
  %s8 = inlined_call_operand.vmem [shape: f32[1,128], index: 8, kind: input, shape index: {}]
  %s9 = inlined_call_operand.hbm [shape: bf16[512,128], index: 9, kind: output, shape index: {}]
  %s10 = sld [smem:[#allocation0]]
  $region97: #{tpu_custom_call.1} parent=0
    _
  %s12 = ssub.s32 1, %s10
  %s13 = scalar_select 0, %s12, %s10
  $region1: #{tpu_custom_call.1} parent=0
    #allocation3 [shape = 'u8[131072]{0}', space=vmem, size = 0x20000, scoped, tag = 'input window, operand 0']
    #allocation4 [shape = 's32[2]{0}', space=sflag, size = 0x8, scoped, tag = 'scoped memory for tpu_custom_call.1']
    #allocation5 [shape = 's32[2]{0}', space=sflag, size = 0x8, scoped, tag = 'scoped memory for tpu_custom_call.1']
    #allocation6 [shape = 'u8[65536]{0}', space=vmem, size = 0x10000, scoped, tag = 'input window, operand 1']
    #allocation7 [shape = 's32[2]{0}', space=sflag, size = 0x8, scoped, tag = 'scoped memory for tpu_custom_call.1']
    #allocation8 [shape = 'u8[32768]{0}', space=vmem, size = 0x8000, scoped, tag = 'input window, operand 3, single buffered']
    #allocation9 [shape = 'u8[32768]{0}', space=vmem, size = 0x8000, scoped, tag = 'input window, operand 5, single buffered']
    #allocation10 [shape = 's32[1]{0}', space=sflag, size = 0x4, scoped, tag = 'scoped memory for tpu_custom_call.1']
    #allocation11 [shape = 'u8[32768]{0}', space=vmem, size = 0x8000, scoped, tag = 'input window, operand 7, single buffered']
    #allocation12 [shape = 'u8[131072]{0}', space=vmem, size = 0x20000, scoped, tag = 'output window, operand 0']
    %14 = vsyncpa [#allocation4], 0
    %s15 = scalar_lea.sflag [#allocation4], 1
    %16 = vsyncpa %s15, 0
    %17 = vsyncpa [#allocation7], 0
    %s18 = scalar_lea.sflag [#allocation7], 1
    %19 = vsyncpa %s18, 0
    %20 = vsyncpa [#allocation10], 0
    %21 = vsyncpa [#allocation5], 0
    %s22 = scalar_lea.sflag [#allocation5], 1
    %23 = vsyncpa %s22, 0
    loop: start=0, step=1, limit=8
    $region2: #{tpu_custom_call.1} parent=1 // loop_pre_header
      _
    $region3: #{tpu_custom_call.1} parent=1 // loop_header
      %s25 = sphi 0, %s29
      %p26 = scmp.ge.s32.totalorder %s25, 8
      %s32 = sphi 0, %s44
      %s33 = sphi 0, %s40
      %s34 = sphi 0, %s32
      %s35 = sphi 0, %s33
      %s36 = sphi 0, %s34
      %s37 = sphi 0, %s35
      %s49 = sphi 0, %s51
      %s52 = sphi 0, %s49
      %s53 = sphi 0, %s52
      %s69 = sphi 0, %s53
      %s75 = sphi 0, %s77
      %s78 = sphi 0, %s75
      %s79 = sphi 0, %s78
      %s95 = sphi 0, %s79
      %s99 = sphi 0, %s99
      %s101 = sphi 0, %s99
      %s102 = sphi 0, %s101
      %s116 = sphi 0, %s102
      %s120 = sphi 0, %s120
      %s122 = sphi 0, %s120
      %s123 = sphi 0, %s122
      %s137 = sphi 0, %s123
      %s141 = sphi 0, %s141
      %s143 = sphi 0, %s141
      %s144 = sphi 0, %s143
      %s158 = sphi 0, %s144
      %s162 = sphi 0, %s162
      %s164 = sphi 0, %s162
      %s165 = sphi 0, %s164
      %s179 = sphi 0, %s165
      %s183 = sphi 0, %s183
      %s185 = sphi 0, %s183
      %s186 = sphi 0, %s185
      %s200 = sphi 0, %s186
      %s204 = sphi 0, %s204
      %s206 = sphi 0, %s204
      %s207 = sphi 0, %s206
      %s221 = sphi 0, %s207
      %s225 = sphi 0, %s225
      %s227 = sphi 0, %s225
      %s228 = sphi 0, %s227
      %s242 = sphi 0, %s228
      %s248 = sphi 0, %s250
      %s251 = sphi 0, %s248
      %s252 = sphi 0, %s251
      %s268 = sphi 0, %s252
    $region4: #{tpu_custom_call.1} parent=1 // loop_header_branch
      %28 = sbr.rel (%p26) target = $region8
    $region5: #{tpu_custom_call.1} parent=1 // loop_body
      %s30 = ssub.s32 %s25, 1
      %s31 = ssub.s32 %s25, 2
      %s38 = sadd.s32 1, %s33
      %p39 = scmp.ge.s32.totalorder %s38, 3
      %s40 = scalar_select %p39, 0, %s38
      %s41 = sadd.s32 1, %s32
      %s42 = scalar_select %p39, %s41, %s32
      %p43 = scmp.ge.s32.totalorder %s42, 2
      %s44 = scalar_select %p43, 0, %s42
      %s45 = ssub.s32 %s32, %s44
      %s46 = ssub.s32 %s33, %s40
      %s47 = sor.u32 %s45, %s46
      %p48 = scmp.eq.s32.totalorder %s47, 0
      %s50 = sadd.s32 %s49, 1
      %s51 = scalar_select %p48, %s49, %s50
      %p54 = pneg %p48
      %p55 = scmp.eq.s32.totalorder %s25, 5
      %p56 = por %p54, %p55
      %p57 = scmp.ne.s32.totalorder %s49, %s52
      %p58 = scmp.eq.s32.totalorder %s25, 0
      %p59 = por %p57, %p58
      %p60 = scmp.ne.s32.totalorder %s49, %s52
      %p61 = scmp.eq.s32.totalorder %s30, 5
      %p62 = por %p60, %p61
      %p63 = scmp.ne.s32.totalorder %s52, %s53
      %p64 = scmp.eq.s32.totalorder %s30, 0
      %p65 = por %p63, %p64
      %p66 = scmp.ne.s32.totalorder %s52, %s53
      %p67 = scmp.eq.s32.totalorder %s31, 5
      %p68 = por %p66, %p67
      %p70 = scmp.ne.s32.totalorder %s53, %s69
      %p71 = scmp.eq.s32.totalorder %s31, 0
      %p72 = por %p70, %p71
      %s73 = ssub.s32 %s33, %s40
      %p74 = scmp.eq.s32.totalorder %s73, 0
      %s76 = sadd.s32 %s75, 1
      %s77 = scalar_select %p74, %s75, %s76
      %p80 = pneg %p74
      %p81 = scmp.eq.s32.totalorder %s25, 5
      %p82 = por %p80, %p81
      %p83 = scmp.ne.s32.totalorder %s75, %s78
      %p84 = scmp.eq.s32.totalorder %s25, 0
      %p85 = por %p83, %p84
      %p86 = scmp.ne.s32.totalorder %s75, %s78
      %p87 = scmp.eq.s32.totalorder %s30, 5
      %p88 = por %p86, %p87
      %p89 = scmp.ne.s32.totalorder %s78, %s79
      %p90 = scmp.eq.s32.totalorder %s30, 0
      %p91 = por %p89, %p90
      %p92 = scmp.ne.s32.totalorder %s78, %s79
      %p93 = scmp.eq.s32.totalorder %s31, 5
      %p94 = por %p92, %p93
      %p96 = scmp.ne.s32.totalorder %s79, %s95
      %p97 = scmp.eq.s32.totalorder %s31, 0
      %p98 = por %p96, %p97
      %s100 = sadd.s32 %s99, 1
      %p103 = scmp.eq.s32.totalorder %s25, 5
      %p104 = scmp.ne.s32.totalorder %s99, %s101
      %p105 = scmp.eq.s32.totalorder %s25, 0
      %p106 = por %p104, %p105
      %p107 = scmp.ne.s32.totalorder %s99, %s101
      %p108 = scmp.eq.s32.totalorder %s30, 5
      %p109 = por %p107, %p108
      %p110 = scmp.ne.s32.totalorder %s101, %s102
      %p111 = scmp.eq.s32.totalorder %s30, 0
      %p112 = por %p110, %p111
      %p113 = scmp.ne.s32.totalorder %s101, %s102
      %p114 = scmp.eq.s32.totalorder %s31, 5
      %p115 = por %p113, %p114
      %p117 = scmp.ne.s32.totalorder %s102, %s116
      %p118 = scmp.eq.s32.totalorder %s31, 0
      %p119 = por %p117, %p118
      %s121 = sadd.s32 %s120, 1
      %p124 = scmp.eq.s32.totalorder %s25, 5
      %p125 = scmp.ne.s32.totalorder %s120, %s122
      %p126 = scmp.eq.s32.totalorder %s25, 0
      %p127 = por %p125, %p126
      %p128 = scmp.ne.s32.totalorder %s120, %s122
      %p129 = scmp.eq.s32.totalorder %s30, 5
      %p130 = por %p128, %p129
      %p131 = scmp.ne.s32.totalorder %s122, %s123
      %p132 = scmp.eq.s32.totalorder %s30, 0
      %p133 = por %p131, %p132
      %p134 = scmp.ne.s32.totalorder %s122, %s123
      %p135 = scmp.eq.s32.totalorder %s31, 5
      %p136 = por %p134, %p135
      %p138 = scmp.ne.s32.totalorder %s123, %s137
      %p139 = scmp.eq.s32.totalorder %s31, 0
      %p140 = por %p138, %p139
      %s142 = sadd.s32 %s141, 1
      %p145 = scmp.eq.s32.totalorder %s25, 5
      %p146 = scmp.ne.s32.totalorder %s141, %s143
      %p147 = scmp.eq.s32.totalorder %s25, 0
      %p148 = por %p146, %p147
      %p149 = scmp.ne.s32.totalorder %s141, %s143
      %p150 = scmp.eq.s32.totalorder %s30, 5
      %p151 = por %p149, %p150
      %p152 = scmp.ne.s32.totalorder %s143, %s144
      %p153 = scmp.eq.s32.totalorder %s30, 0
      %p154 = por %p152, %p153
      %p155 = scmp.ne.s32.totalorder %s143, %s144
      %p156 = scmp.eq.s32.totalorder %s31, 5
      %p157 = por %p155, %p156
      %p159 = scmp.ne.s32.totalorder %s144, %s158
      %p160 = scmp.eq.s32.totalorder %s31, 0
      %p161 = por %p159, %p160
      %s163 = sadd.s32 %s162, 1
      %p166 = scmp.eq.s32.totalorder %s25, 5
      %p167 = scmp.ne.s32.totalorder %s162, %s164
      %p168 = scmp.eq.s32.totalorder %s25, 0
      %p169 = por %p167, %p168
      %p170 = scmp.ne.s32.totalorder %s162, %s164
      %p171 = scmp.eq.s32.totalorder %s30, 5
      %p172 = por %p170, %p171
      %p173 = scmp.ne.s32.totalorder %s164, %s165
      %p174 = scmp.eq.s32.totalorder %s30, 0
      %p175 = por %p173, %p174
      %p176 = scmp.ne.s32.totalorder %s164, %s165
      %p177 = scmp.eq.s32.totalorder %s31, 5
      %p178 = por %p176, %p177
      %p180 = scmp.ne.s32.totalorder %s165, %s179
      %p181 = scmp.eq.s32.totalorder %s31, 0
      %p182 = por %p180, %p181
      %s184 = sadd.s32 %s183, 1
      %p187 = scmp.eq.s32.totalorder %s25, 5
      %p188 = scmp.ne.s32.totalorder %s183, %s185
      %p189 = scmp.eq.s32.totalorder %s25, 0
      %p190 = por %p188, %p189
      %p191 = scmp.ne.s32.totalorder %s183, %s185
      %p192 = scmp.eq.s32.totalorder %s30, 5
      %p193 = por %p191, %p192
      %p194 = scmp.ne.s32.totalorder %s185, %s186
      %p195 = scmp.eq.s32.totalorder %s30, 0
      %p196 = por %p194, %p195
      %p197 = scmp.ne.s32.totalorder %s185, %s186
      %p198 = scmp.eq.s32.totalorder %s31, 5
      %p199 = por %p197, %p198
      %p201 = scmp.ne.s32.totalorder %s186, %s200
      %p202 = scmp.eq.s32.totalorder %s31, 0
      %p203 = por %p201, %p202
      %s205 = sadd.s32 %s204, 1
      %p208 = scmp.eq.s32.totalorder %s25, 5
      %p209 = scmp.ne.s32.totalorder %s204, %s206
      %p210 = scmp.eq.s32.totalorder %s25, 0
      %p211 = por %p209, %p210
      %p212 = scmp.ne.s32.totalorder %s204, %s206
      %p213 = scmp.eq.s32.totalorder %s30, 5
      %p214 = por %p212, %p213
      %p215 = scmp.ne.s32.totalorder %s206, %s207
      %p216 = scmp.eq.s32.totalorder %s30, 0
      %p217 = por %p215, %p216
      %p218 = scmp.ne.s32.totalorder %s206, %s207
      %p219 = scmp.eq.s32.totalorder %s31, 5
      %p220 = por %p218, %p219
      %p222 = scmp.ne.s32.totalorder %s207, %s221
      %p223 = scmp.eq.s32.totalorder %s31, 0
      %p224 = por %p222, %p223
      %s226 = sadd.s32 %s225, 1
      %p229 = scmp.eq.s32.totalorder %s25, 5
      %p230 = scmp.ne.s32.totalorder %s225, %s227
      %p231 = scmp.eq.s32.totalorder %s25, 0
      %p232 = por %p230, %p231
      %p233 = scmp.ne.s32.totalorder %s225, %s227
      %p234 = scmp.eq.s32.totalorder %s30, 5
      %p235 = por %p233, %p234
      %p236 = scmp.ne.s32.totalorder %s227, %s228
      %p237 = scmp.eq.s32.totalorder %s30, 0
      %p238 = por %p236, %p237
      %p239 = scmp.ne.s32.totalorder %s227, %s228
      %p240 = scmp.eq.s32.totalorder %s31, 5
      %p241 = por %p239, %p240
      %p243 = scmp.ne.s32.totalorder %s228, %s242
      %p244 = scmp.eq.s32.totalorder %s31, 0
      %p245 = por %p243, %p244
      %s246 = ssub.s32 %s32, %s44
      %p247 = scmp.eq.s32.totalorder %s246, 0
      %s249 = sadd.s32 %s248, 1
      %s250 = scalar_select %p247, %s248, %s249
      %p253 = pneg %p247
      %p254 = scmp.eq.s32.totalorder %s25, 5
      %p255 = por %p253, %p254
      %p256 = scmp.ne.s32.totalorder %s248, %s251
      %p257 = scmp.eq.s32.totalorder %s25, 0
      %p258 = por %p256, %p257
      %p259 = scmp.ne.s32.totalorder %s248, %s251
      %p260 = scmp.eq.s32.totalorder %s30, 5
      %p261 = por %p259, %p260
      %p262 = scmp.ne.s32.totalorder %s251, %s252
      %p263 = scmp.eq.s32.totalorder %s30, 0
      %p264 = por %p262, %p263
      %p265 = scmp.ne.s32.totalorder %s251, %s252
      %p266 = scmp.eq.s32.totalorder %s31, 5
      %p267 = por %p265, %p266
      %p269 = scmp.ne.s32.totalorder %s252, %s268
      %p270 = scmp.eq.s32.totalorder %s31, 0
      %p271 = por %p269, %p270
      %p272 = scmp.le.s32.totalorder 1, %s25
      %p273 = scmp.lt.s32.totalorder %s25, 7
      %p274 = pnand %p272, %p273
      %p275 = pneg %p274
      // Predicated region
      $region9: #{tpu_custom_call.1} parent=5 // pred_check
        _
      $region10: #{tpu_custom_call.1} parent=5 // pred_check_branch
        %277 = sbr.rel (%p274) target = $region12
      $region11: #{tpu_custom_call.1} parent=5 // pred_region
        %s278 = ssub.s32 %s25, 1
        // Predicated region
        $region13: #{tpu_custom_call.1} parent=11 // pred_check
          %p279 = pneg %p112
        $region14: #{tpu_custom_call.1} parent=11 // pred_check_branch
          %281 = sbr.rel (%p279) target = $region16
        $region15: #{tpu_custom_call.1} parent=11 // pred_region
          _
        $region16: #{tpu_custom_call.1} parent=11 // pred_fallthru
          _
        // Predicated region
        $region17: #{tpu_custom_call.1} parent=11 // pred_check
          %p282 = pneg %p133
        $region18: #{tpu_custom_call.1} parent=11 // pred_check_branch
          %284 = sbr.rel (%p282) target = $region20
        $region19: #{tpu_custom_call.1} parent=11 // pred_region
          %s286 = ssub.s32 1024, 1024
          %287 = vsyncadd [#allocation7], %s286
          %s288 = sshll.u32 [#allocation8], 4
          %s289 = int_to_ptr.vmem [resolvable:$true] %s288
          %294 = dma.hbm_to_vmem [thread:$0]  %s3, 1024, %s289, [#allocation7], 64, 64, 4
        $region20: #{tpu_custom_call.1} parent=11 // pred_fallthru
          _
        // Predicated region
        $region21: #{tpu_custom_call.1} parent=11 // pred_check
          %p295 = pneg %p154
        $region22: #{tpu_custom_call.1} parent=11 // pred_check_branch
          %297 = sbr.rel (%p295) target = $region24
        $region23: #{tpu_custom_call.1} parent=11 // pred_region
          _
        $region24: #{tpu_custom_call.1} parent=11 // pred_fallthru
          _
        // Predicated region
        $region25: #{tpu_custom_call.1} parent=11 // pred_check
          %p298 = pneg %p175
        $region26: #{tpu_custom_call.1} parent=11 // pred_check_branch
          %300 = sbr.rel (%p298) target = $region28
        $region27: #{tpu_custom_call.1} parent=11 // pred_region
          %s302 = ssub.s32 1024, 1024
          %303 = vsyncadd [#allocation10], %s302
          %s304 = sshll.u32 [#allocation9], 4
          %s305 = int_to_ptr.vmem [resolvable:$true] %s304
          %310 = dma.hbm_to_vmem [thread:$0]  %s5, 1024, %s305, [#allocation10], 64, 64, 4
        $region28: #{tpu_custom_call.1} parent=11 // pred_fallthru
          _
        // Predicated region
        $region29: #{tpu_custom_call.1} parent=11 // pred_check
          %p311 = pneg %p196
        $region30: #{tpu_custom_call.1} parent=11 // pred_check_branch
          %313 = sbr.rel (%p311) target = $region32
        $region31: #{tpu_custom_call.1} parent=11 // pred_region
          _
        $region32: #{tpu_custom_call.1} parent=11 // pred_fallthru
          _
        // Predicated region
        $region33: #{tpu_custom_call.1} parent=11 // pred_check
          %p314 = pneg %p217
        $region34: #{tpu_custom_call.1} parent=11 // pred_check_branch
          %316 = sbr.rel (%p314) target = $region36
        $region35: #{tpu_custom_call.1} parent=11 // pred_region
          %s318 = ssub.s32 1024, 1024
          %319 = vsyncadd [#allocation10], %s318
          %s320 = sshll.u32 [#allocation11], 4
          %s321 = int_to_ptr.vmem [resolvable:$true] %s320
          %326 = dma.hbm_to_vmem [thread:$0]  %s7, 1024, %s321, [#allocation10], 64, 64, 4
        $region36: #{tpu_custom_call.1} parent=11 // pred_fallthru
          _
        // Predicated region
        $region37: #{tpu_custom_call.1} parent=11 // pred_check
          %p327 = pneg %p238
        $region38: #{tpu_custom_call.1} parent=11 // pred_check_branch
          %329 = sbr.rel (%p327) target = $region40
        $region39: #{tpu_custom_call.1} parent=11 // pred_region
          _
        $region40: #{tpu_custom_call.1} parent=11 // pred_fallthru
          _
      $region12: #{tpu_custom_call.1} parent=5 // pred_fallthru
        _
      %p330 = scmp.lt.s32.totalorder %s25, 6
      // Predicated region
      $region41: #{tpu_custom_call.1} parent=5 // pred_check
        %p331 = pneg %p330
      $region42: #{tpu_custom_call.1} parent=5 // pred_check_branch
        %333 = sbr.rel (%p331) target = $region44
      $region43: #{tpu_custom_call.1} parent=5 // pred_region
        // Predicated region
        $region45: #{tpu_custom_call.1} parent=43 // pred_check
          %p334 = pneg %p59
        $region46: #{tpu_custom_call.1} parent=43 // pred_check_branch
          %336 = sbr.rel (%p334) target = $region48
        $region47: #{tpu_custom_call.1} parent=43 // pred_region
          %s337 = sand.u32 %s49, 1
          %s338 = scalar_lea.sflag [#allocation4], %s337
          %s339 = sand.u32 %s49, 1
          %s340 = smul.addr %s339, 128
          %s341 = scalar_lea.vmem [#allocation3], %s340
          %s342 = smul.u32 32, %s32
          %s344 = ssub.s32 2048, 2048
          %345 = vsyncadd %s338, %s344
          %s346 = smul.addr %s342, 3
          %s347 = sadd.s32 %s33, %s346
          %s348 = smul.addr %s347, 64
          %s349 = scalar_lea.hbm %s0, %s348
          %s350 = sshll.u32 %s341, 4
          %s351 = int_to_ptr.vmem [resolvable:$true] %s350
          %356 = dma.hbm_to_vmem [thread:$0]  %s349, 2048, %s351, %s338, 192, 64, 4
        $region48: #{tpu_custom_call.1} parent=43 // pred_fallthru
          _
        // Predicated region
        $region49: #{tpu_custom_call.1} parent=43 // pred_check
          %p357 = pneg %p85
        $region50: #{tpu_custom_call.1} parent=43 // pred_check_branch
          %359 = sbr.rel (%p357) target = $region52
        $region51: #{tpu_custom_call.1} parent=43 // pred_region
          %s360 = sand.u32 %s25, 1
          %s361 = scalar_lea.sflag [#allocation7], %s360
          %s362 = sand.u32 %s75, 1
          %s363 = smul.addr %s362, 64
          %s364 = scalar_lea.vmem [#allocation6], %s363
          %s365 = smul.u32 16, %s33
          %s367 = ssub.s32 1024, 1024
          %368 = vsyncadd %s361, %s367
          %s369 = smul.addr %s365, 64
          %s370 = scalar_lea.hbm %s1, %s369
          %s371 = sshll.u32 %s364, 4
          %s372 = int_to_ptr.vmem [resolvable:$true] %s371
          %377 = dma.hbm_to_vmem [thread:$0]  %s370, 1024, %s372, %s361, 64, 64, 4
        $region52: #{tpu_custom_call.1} parent=43 // pred_fallthru
          _
      $region44: #{tpu_custom_call.1} parent=5 // pred_fallthru
        _
      %p378 = scmp.le.s32.totalorder 1, %s25
      %p379 = scmp.lt.s32.totalorder %s25, 7
      %p380 = pnand %p378, %p379
      %p381 = pneg %p380
      // Predicated region
      $region53: #{tpu_custom_call.1} parent=5 // pred_check
        _
      $region54: #{tpu_custom_call.1} parent=5 // pred_check_branch
        %383 = sbr.rel (%p380) target = $region56
      $region55: #{tpu_custom_call.1} parent=5 // pred_region
        %s384 = ssub.s32 %s25, 1
        %s385 = sand.u32 %s52, 1
        %s386 = scalar_lea.sflag [#allocation4], %s385
        %s387 = sand.u32 %s52, 1
        %s388 = smul.addr %s387, 128
        %s389 = scalar_lea.vmem [#allocation3], %s388
        // Predicated region
        $region57: #{tpu_custom_call.1} parent=55 // pred_check
          %p390 = pneg %p65
        $region58: #{tpu_custom_call.1} parent=55 // pred_check_branch
          %392 = sbr.rel (%p390) target = $region60
        $region59: #{tpu_custom_call.1} parent=55 // pred_region
          %393 = dma.done %s386, 2048
        $region60: #{tpu_custom_call.1} parent=55 // pred_fallthru
          _
        %s394 = sand.u32 %s30, 1
        %s395 = scalar_lea.sflag [#allocation7], %s394
        %s396 = sand.u32 %s78, 1
        %s397 = smul.addr %s396, 64
        %s398 = scalar_lea.vmem [#allocation6], %s397
        // Predicated region
        $region61: #{tpu_custom_call.1} parent=55 // pred_check
          %p399 = pneg %p91
        $region62: #{tpu_custom_call.1} parent=55 // pred_check_branch
          %401 = sbr.rel (%p399) target = $region64
        $region63: #{tpu_custom_call.1} parent=55 // pred_region
          %402 = dma.done %s395, 1024
        $region64: #{tpu_custom_call.1} parent=55 // pred_fallthru
          _
        // Predicated region
        $region65: #{tpu_custom_call.1} parent=55 // pred_check
          %p403 = pneg %p133
        $region66: #{tpu_custom_call.1} parent=55 // pred_check_branch
          %405 = sbr.rel (%p403) target = $region68
        $region67: #{tpu_custom_call.1} parent=55 // pred_region
          %406 = dma.done [#allocation7], 1024
        $region68: #{tpu_custom_call.1} parent=55 // pred_fallthru
          _
        // Predicated region
        $region69: #{tpu_custom_call.1} parent=55 // pred_check
          %p407 = pneg %p175
        $region70: #{tpu_custom_call.1} parent=55 // pred_check_branch
          %409 = sbr.rel (%p407) target = $region72
        $region71: #{tpu_custom_call.1} parent=55 // pred_region
          %410 = dma.done [#allocation10], 1024
        $region72: #{tpu_custom_call.1} parent=55 // pred_fallthru
          _
        // Predicated region
        $region73: #{tpu_custom_call.1} parent=55 // pred_check
          %p411 = pneg %p217
        $region74: #{tpu_custom_call.1} parent=55 // pred_check_branch
          %413 = sbr.rel (%p411) target = $region76
        $region75: #{tpu_custom_call.1} parent=55 // pred_region
          %414 = dma.done [#allocation10], 1024
        $region76: #{tpu_custom_call.1} parent=55 // pred_fallthru
          _
        %s415 = sand.u32 %s52, 1
        %s416 = scalar_lea.sflag [#allocation4], %s415
        %s417 = sand.u32 %s52, 1
        %s418 = smul.addr %s417, 128
        %s419 = scalar_lea.vmem [#allocation3], %s418
        %p420 = pneg %p65
        %p421 = pneg %p62
        %s422 = sand.u32 %s30, 1
        %s423 = scalar_lea.sflag [#allocation7], %s422
        %s424 = sand.u32 %s78, 1
        %s425 = smul.addr %s424, 64
        %s426 = scalar_lea.vmem [#allocation6], %s425
        %p427 = pneg %p91
        %p428 = pneg %p88
        %p429 = pneg %p112
        %p430 = pneg %p109
        %p431 = pneg %p133
        %p432 = pneg %p130
        %p433 = pneg %p154
        %p434 = pneg %p151
        %p435 = pneg %p175
        %p436 = pneg %p172
        %p437 = pneg %p196
        %p438 = pneg %p193
        %p439 = pneg %p217
        %p440 = pneg %p214
        %p441 = pneg %p238
        %p442 = pneg %p235
        %p443 = pneg %p264
        %p444 = pneg %p261
        %s445 = sand.u32 %s251, 1
        %s446 = scalar_lea.sflag [#allocation5], %s445
        %s447 = sand.u32 %s251, 1
        %s448 = smul.addr %s447, 128
        %s449 = scalar_lea.vmem [#allocation12], %s448
        %s450 = smul.u32 32, %s34
        %s451 = smul.u32 16, %s35
        %s452 = smul.u32 32, %s34
        %p454 = scmp.eq.s32.totalorder %s35, 0
        // Predicated region
        $region77: #{tpu_custom_call.1} parent=55 // pred_check
          %p455 = pneg %p454
        $region78: #{tpu_custom_call.1} parent=55 // pred_check_branch
          %457 = sbr.rel (%p455) target = $region80
        $region79: #{tpu_custom_call.1} parent=55 // pred_region
          %458 = vst [vmem:[#allocation2] sm:$0xff] 0.0
          %459 = vst [vmem:[#allocation2 + $0x8] sm:$0xff] 0.0
          %460 = vst [vmem:[#allocation2 + $0x10] sm:$0xff] 0.0
          %461 = vst [vmem:[#allocation2 + $0x18] sm:$0xff] 0.0
          %462 = vst [vmem:[#allocation2 + $0x20] sm:$0xff] 0.0
          %463 = vst [vmem:[#allocation2 + $0x28] sm:$0xff] 0.0
          %464 = vst [vmem:[#allocation2 + $0x30] sm:$0xff] 0.0
          %465 = vst [vmem:[#allocation2 + $0x38] sm:$0xff] 0.0
          %466 = vst [vmem:[#allocation2 + $0x40] sm:$0xff] 0.0
          %467 = vst [vmem:[#allocation2 + $0x48] sm:$0xff] 0.0
          %468 = vst [vmem:[#allocation2 + $0x50] sm:$0xff] 0.0
          %469 = vst [vmem:[#allocation2 + $0x58] sm:$0xff] 0.0
          %470 = vst [vmem:[#allocation2 + $0x60] sm:$0xff] 0.0
          %471 = vst [vmem:[#allocation2 + $0x68] sm:$0xff] 0.0
          %472 = vst [vmem:[#allocation2 + $0x70] sm:$0xff] 0.0
          %473 = vst [vmem:[#allocation2 + $0x78] sm:$0xff] 0.0
          %474 = vst [vmem:[#allocation2 + $0x80] sm:$0xff] 0.0
          %475 = vst [vmem:[#allocation2 + $0x88] sm:$0xff] 0.0
          %476 = vst [vmem:[#allocation2 + $0x90] sm:$0xff] 0.0
          %477 = vst [vmem:[#allocation2 + $0x98] sm:$0xff] 0.0
          %478 = vst [vmem:[#allocation2 + $0xa0] sm:$0xff] 0.0
          %479 = vst [vmem:[#allocation2 + $0xa8] sm:$0xff] 0.0
          %480 = vst [vmem:[#allocation2 + $0xb0] sm:$0xff] 0.0
          %481 = vst [vmem:[#allocation2 + $0xb8] sm:$0xff] 0.0
          %482 = vst [vmem:[#allocation2 + $0xc0] sm:$0xff] 0.0
          %483 = vst [vmem:[#allocation2 + $0xc8] sm:$0xff] 0.0
          %484 = vst [vmem:[#allocation2 + $0xd0] sm:$0xff] 0.0
          %485 = vst [vmem:[#allocation2 + $0xd8] sm:$0xff] 0.0
          %486 = vst [vmem:[#allocation2 + $0xe0] sm:$0xff] 0.0
          %487 = vst [vmem:[#allocation2 + $0xe8] sm:$0xff] 0.0
          %488 = vst [vmem:[#allocation2 + $0xf0] sm:$0xff] 0.0
          %489 = vst [vmem:[#allocation2 + $0xf8] sm:$0xff] 0.0
        $region80: #{tpu_custom_call.1} parent=55 // pred_fallthru
          _
        %v490 = vld [vmem:[#allocation2] sm:$0xff]
        %v491 = vld [vmem:[#allocation2 + $0x8] sm:$0xff]
        %v492 = vld [vmem:[#allocation2 + $0x10] sm:$0xff]
        %v493 = vld [vmem:[#allocation2 + $0x18] sm:$0xff]
        %v494 = vld [vmem:[#allocation2 + $0x20] sm:$0xff]
        %v495 = vld [vmem:[#allocation2 + $0x28] sm:$0xff]
        %v496 = vld [vmem:[#allocation2 + $0x30] sm:$0xff]
        %v497 = vld [vmem:[#allocation2 + $0x38] sm:$0xff]
        %v498 = vld [vmem:[#allocation2 + $0x40] sm:$0xff]
        %v499 = vld [vmem:[#allocation2 + $0x48] sm:$0xff]
        %v500 = vld [vmem:[#allocation2 + $0x50] sm:$0xff]
        %v501 = vld [vmem:[#allocation2 + $0x58] sm:$0xff]
        %v502 = vld [vmem:[#allocation2 + $0x60] sm:$0xff]
        %v503 = vld [vmem:[#allocation2 + $0x68] sm:$0xff]
        %v504 = vld [vmem:[#allocation2 + $0x70] sm:$0xff]
        %v505 = vld [vmem:[#allocation2 + $0x78] sm:$0xff]
        %v506 = vld [vmem:[#allocation2 + $0x80] sm:$0xff]
        %v507 = vld [vmem:[#allocation2 + $0x88] sm:$0xff]
        %v508 = vld [vmem:[#allocation2 + $0x90] sm:$0xff]
        %v509 = vld [vmem:[#allocation2 + $0x98] sm:$0xff]
        %v510 = vld [vmem:[#allocation2 + $0xa0] sm:$0xff]
        %v511 = vld [vmem:[#allocation2 + $0xa8] sm:$0xff]
        %v512 = vld [vmem:[#allocation2 + $0xb0] sm:$0xff]
        %v513 = vld [vmem:[#allocation2 + $0xb8] sm:$0xff]
        %v514 = vld [vmem:[#allocation2 + $0xc0] sm:$0xff]
        %v515 = vld [vmem:[#allocation2 + $0xc8] sm:$0xff]
        %v516 = vld [vmem:[#allocation2 + $0xd0] sm:$0xff]
        %v517 = vld [vmem:[#allocation2 + $0xd8] sm:$0xff]
        %v518 = vld [vmem:[#allocation2 + $0xe0] sm:$0xff]
        %v519 = vld [vmem:[#allocation2 + $0xe8] sm:$0xff]
        %v520 = vld [vmem:[#allocation2 + $0xf0] sm:$0xff]
        %v521 = vld [vmem:[#allocation2 + $0xf8] sm:$0xff]
        %v522 = vld [vmem:[%s389] sm:$0xf]
        %v523 = vld [vmem:[%s389 + $0x4] sm:$0xf]
        %v524 = vld [vmem:[%s389 + $0x8] sm:$0xf]
        %v525 = vld [vmem:[%s389 + $0xc] sm:$0xf]
        %v526 = vld [vmem:[%s389 + $0x10] sm:$0xf]
        %v527 = vld [vmem:[%s389 + $0x14] sm:$0xf]
        %v528 = vld [vmem:[%s389 + $0x18] sm:$0xf]
        %v529 = vld [vmem:[%s389 + $0x1c] sm:$0xf]
        %v530 = vld [vmem:[%s389 + $0x20] sm:$0xf]
        %v531 = vld [vmem:[%s389 + $0x24] sm:$0xf]
        %v532 = vld [vmem:[%s389 + $0x28] sm:$0xf]
        %v533 = vld [vmem:[%s389 + $0x2c] sm:$0xf]
        %v534 = vld [vmem:[%s389 + $0x30] sm:$0xf]
        %v535 = vld [vmem:[%s389 + $0x34] sm:$0xf]
        %v536 = vld [vmem:[%s389 + $0x38] sm:$0xf]
        %v537 = vld [vmem:[%s389 + $0x3c] sm:$0xf]
        %v538 = vld [vmem:[%s389 + $0x40] sm:$0xf]
        %v539 = vld [vmem:[%s389 + $0x44] sm:$0xf]
        %v540 = vld [vmem:[%s389 + $0x48] sm:$0xf]
        %v541 = vld [vmem:[%s389 + $0x4c] sm:$0xf]
        %v542 = vld [vmem:[%s389 + $0x50] sm:$0xf]
        %v543 = vld [vmem:[%s389 + $0x54] sm:$0xf]
        %v544 = vld [vmem:[%s389 + $0x58] sm:$0xf]
        %v545 = vld [vmem:[%s389 + $0x5c] sm:$0xf]
        %v546 = vld [vmem:[%s389 + $0x60] sm:$0xf]
        %v547 = vld [vmem:[%s389 + $0x64] sm:$0xf]
        %v548 = vld [vmem:[%s389 + $0x68] sm:$0xf]
        %v549 = vld [vmem:[%s389 + $0x6c] sm:$0xf]
        %v550 = vld [vmem:[%s389 + $0x70] sm:$0xf]
        %v551 = vld [vmem:[%s389 + $0x74] sm:$0xf]
        %v552 = vld [vmem:[%s389 + $0x78] sm:$0xf]
        %v553 = vld [vmem:[%s389 + $0x7c] sm:$0xf]
        %v554 = vld [vmem:[%s398] sm:$0xf]
        %v555 = vld [vmem:[%s398 + $0x4] sm:$0xf]
        %v556 = vld [vmem:[%s398 + $0x8] sm:$0xf]
        %v557 = vld [vmem:[%s398 + $0xc] sm:$0xf]
        %v558 = vld [vmem:[%s398 + $0x10] sm:$0xf]
        %v559 = vld [vmem:[%s398 + $0x14] sm:$0xf]
        %v560 = vld [vmem:[%s398 + $0x18] sm:$0xf]
        %v561 = vld [vmem:[%s398 + $0x1c] sm:$0xf]
        %v562 = vld [vmem:[%s398 + $0x20] sm:$0xf]
        %v563 = vld [vmem:[%s398 + $0x24] sm:$0xf]
        %v564 = vld [vmem:[%s398 + $0x28] sm:$0xf]
        %v565 = vld [vmem:[%s398 + $0x2c] sm:$0xf]
        %v566 = vld [vmem:[%s398 + $0x30] sm:$0xf]
        %v567 = vld [vmem:[%s398 + $0x34] sm:$0xf]
        %v568 = vld [vmem:[%s398 + $0x38] sm:$0xf]
        %v569 = vld [vmem:[%s398 + $0x3c] sm:$0xf]
        %v602 = vunpack.c.l.b16 %v522
        %v603 = vunpack.c.l.b16 %v523
        %v604 = vunpack.c.l.b16 %v524
        %v605 = vunpack.c.l.b16 %v525
        %v606 = vunpack.c.l.b16 %v526
        %v607 = vunpack.c.l.b16 %v527
        %v608 = vunpack.c.l.b16 %v528
        %v609 = vunpack.c.l.b16 %v529
        %v610 = vunpack.c.l.b16 %v530
        %v611 = vunpack.c.l.b16 %v531
        %v612 = vunpack.c.l.b16 %v532
        %v613 = vunpack.c.l.b16 %v533
        %v614 = vunpack.c.l.b16 %v534
        %v615 = vunpack.c.l.b16 %v535
        %v616 = vunpack.c.l.b16 %v536
        %v617 = vunpack.c.l.b16 %v537
        %v618 = vunpack.c.l.b16 %v538
        %v619 = vunpack.c.l.b16 %v539
        %v620 = vunpack.c.l.b16 %v540
        %v621 = vunpack.c.l.b16 %v541
        %v622 = vunpack.c.l.b16 %v542
        %v623 = vunpack.c.l.b16 %v543
        %v624 = vunpack.c.l.b16 %v544
        %v625 = vunpack.c.l.b16 %v545
        %v626 = vunpack.c.l.b16 %v546
        %v627 = vunpack.c.l.b16 %v547
        %v628 = vunpack.c.l.b16 %v548
        %v629 = vunpack.c.l.b16 %v549
        %v630 = vunpack.c.l.b16 %v550
        %v631 = vunpack.c.l.b16 %v551
        %v632 = vunpack.c.l.b16 %v552
        %v633 = vunpack.c.l.b16 %v553
        %v634 = vpack.c.b16 %v603, %v602
        %v635 = vpack.c.b16 %v605, %v604
        %v636 = vpack.c.b16 %v607, %v606
        %v637 = vpack.c.b16 %v609, %v608
        %v638 = vpack.c.b16 %v611, %v610
        %v639 = vpack.c.b16 %v613, %v612
        %v640 = vpack.c.b16 %v615, %v614
        %v641 = vpack.c.b16 %v617, %v616
        %v642 = vpack.c.b16 %v619, %v618
        %v643 = vpack.c.b16 %v621, %v620
        %v644 = vpack.c.b16 %v623, %v622
        %v645 = vpack.c.b16 %v625, %v624
        %v646 = vpack.c.b16 %v627, %v626
        %v647 = vpack.c.b16 %v629, %v628
        %v648 = vpack.c.b16 %v631, %v630
        %v649 = vpack.c.b16 %v633, %v632
        %v682 = vunpack.c.l.b16 %v554
        %v683 = vunpack.c.l.b16 %v555
        %v684 = vunpack.c.l.b16 %v556
        %v685 = vunpack.c.l.b16 %v557
        %v686 = vunpack.c.l.b16 %v558
        %v687 = vunpack.c.l.b16 %v559
        %v688 = vunpack.c.l.b16 %v560
        %v689 = vunpack.c.l.b16 %v561
        %v690 = vunpack.c.l.b16 %v562
        %v691 = vunpack.c.l.b16 %v563
        %v692 = vunpack.c.l.b16 %v564
        %v693 = vunpack.c.l.b16 %v565
        %v694 = vunpack.c.l.b16 %v566
        %v695 = vunpack.c.l.b16 %v567
        %v696 = vunpack.c.l.b16 %v568
        %v697 = vunpack.c.l.b16 %v569
        %v698 = vpack.c.b16 %v683, %v682
        %v699 = vpack.c.b16 %v685, %v684
        %v700 = vpack.c.b16 %v687, %v686
        %v701 = vpack.c.b16 %v689, %v688
        %v702 = vpack.c.b16 %v691, %v690
        %v703 = vpack.c.b16 %v693, %v692
        %v704 = vpack.c.b16 %v695, %v694
        %v705 = vpack.c.b16 %v697, %v696
        %714 = vmatprep.subr.bf16.mxu0 0
        %715 = vmatpush1.bf16.msra.mxu0 %v705
        %716 = vmatprep.subr.bf16.mxu0 0
        %717 = vmatpush1.bf16.msra.mxu0 %v704
        %718 = vmatprep.subr.bf16.mxu0 0
        %719 = vmatpush1.bf16.msra.mxu0 %v703
        %720 = vmatprep.subr.bf16.mxu0 0
        %721 = vmatpush1.bf16.msra.mxu0 %v702
        %722 = vmatprep.subr.bf16.mxu0 0
        %723 = vmatpush1.bf16.msra.mxu0 %v701
        %724 = vmatprep.subr.bf16.mxu0 0
        %725 = vmatpush1.bf16.msra.mxu0 %v700
        %726 = vmatprep.subr.bf16.mxu0 0
        %727 = vmatpush1.bf16.msra.mxu0 %v699
        %728 = vmatprep.subr.bf16.mxu0 0
        %729 = vmatpush1.bf16.msra.mxu0 %v698
        %730 = vmatprep.subr.bf16.mxu0 0
        %731 = vmatpush2.bf16.msra.mxu0 0
        %732 = vmatprep.subr.bf16.mxu0 0
        %733 = vmatpush2.bf16.msra.mxu0 0
        %734 = vmatprep.subr.bf16.mxu0 0
        %735 = vmatpush2.bf16.msra.mxu0 0
        %736 = vmatprep.subr.bf16.mxu0 0
        %737 = vmatpush2.bf16.msra.mxu0 0
        %738 = vmatprep.subr.bf16.mxu0 0
        %739 = vmatpush2.bf16.msra.mxu0 0
        %740 = vmatprep.subr.bf16.mxu0 0
        %741 = vmatpush2.bf16.msra.mxu0 0
        %742 = vmatprep.subr.bf16.mxu0 0
        %743 = vmatpush2.bf16.msra.mxu0 0
        %744 = vmatprep.subr.bf16.mxu0 0
        %745 = vmatpush2.bf16.msra.mxu0 0
        %746 = vmatprep.mubr.bf16.mxu0 0
        %747 = vmatmul.mubr.bf16.gmra.mxu0 %v634
        %v748 = vpop.f32.mrf.mxu0
        %v749 = vadd.f32 0.0, %v748
        %v750 = vpop.f32.mrf.mxu0
        %v751 = vpop.f32.mrf.mxu0
        %v752 = vadd.f32 0.0, %v751
        %v753 = vpop.f32.mrf.mxu0
        %754 = vmatprep.mubr.bf16.mxu0 0
        %755 = vmatmul.mubr.bf16.gmra.mxu0 %v635
        %v756 = vpop.f32.mrf.mxu0
        %v757 = vadd.f32 0.0, %v756
        %v758 = vpop.f32.mrf.mxu0
        %v759 = vpop.f32.mrf.mxu0
        %v760 = vadd.f32 0.0, %v759
        %v761 = vpop.f32.mrf.mxu0
        %762 = vmatprep.mubr.bf16.mxu0 0
        %763 = vmatmul.mubr.bf16.gmra.mxu0 %v636
        %v764 = vpop.f32.mrf.mxu0
        %v765 = vadd.f32 0.0, %v764
        %v766 = vpop.f32.mrf.mxu0
        %v767 = vpop.f32.mrf.mxu0
        %v768 = vadd.f32 0.0, %v767
        %v769 = vpop.f32.mrf.mxu0
        %770 = vmatprep.mubr.bf16.mxu0 0
        %771 = vmatmul.mubr.bf16.gmra.mxu0 %v637
        %v772 = vpop.f32.mrf.mxu0
        %v773 = vadd.f32 0.0, %v772
        %v774 = vpop.f32.mrf.mxu0
        %v775 = vpop.f32.mrf.mxu0
        %v776 = vadd.f32 0.0, %v775
        %v777 = vpop.f32.mrf.mxu0
        %778 = vmatprep.mubr.bf16.mxu0 0
        %779 = vmatmul.mubr.bf16.gmra.mxu0 %v638
        %v780 = vpop.f32.mrf.mxu0
        %v781 = vadd.f32 0.0, %v780
        %v782 = vpop.f32.mrf.mxu0
        %v783 = vpop.f32.mrf.mxu0
        %v784 = vadd.f32 0.0, %v783
        %v785 = vpop.f32.mrf.mxu0
        %786 = vmatprep.mubr.bf16.mxu0 0
        %787 = vmatmul.mubr.bf16.gmra.mxu0 %v639
        %v788 = vpop.f32.mrf.mxu0
        %v789 = vadd.f32 0.0, %v788
        %v790 = vpop.f32.mrf.mxu0
        %v791 = vpop.f32.mrf.mxu0
        %v792 = vadd.f32 0.0, %v791
        %v793 = vpop.f32.mrf.mxu0
        %794 = vmatprep.mubr.bf16.mxu0 0
        %795 = vmatmul.mubr.bf16.gmra.mxu0 %v640
        %v796 = vpop.f32.mrf.mxu0
        %v797 = vadd.f32 0.0, %v796
        %v798 = vpop.f32.mrf.mxu0
        %v799 = vpop.f32.mrf.mxu0
        %v800 = vadd.f32 0.0, %v799
        %v801 = vpop.f32.mrf.mxu0
        %802 = vmatprep.mubr.bf16.mxu0 0
        %803 = vmatmul.mubr.bf16.gmra.mxu0 %v641
        %v804 = vpop.f32.mrf.mxu0
        %v805 = vadd.f32 0.0, %v804
        %v806 = vpop.f32.mrf.mxu0
        %v807 = vpop.f32.mrf.mxu0
        %v808 = vadd.f32 0.0, %v807
        %v809 = vpop.f32.mrf.mxu0
        %810 = vmatprep.mubr.bf16.mxu0 0
        %811 = vmatmul.mubr.bf16.gmra.mxu0 %v642
        %v812 = vpop.f32.mrf.mxu0
        %v813 = vadd.f32 0.0, %v812
        %v814 = vpop.f32.mrf.mxu0
        %v815 = vpop.f32.mrf.mxu0
        %v816 = vadd.f32 0.0, %v815
        %v817 = vpop.f32.mrf.mxu0
        %818 = vmatprep.mubr.bf16.mxu0 0
        %819 = vmatmul.mubr.bf16.gmra.mxu0 %v643
        %v820 = vpop.f32.mrf.mxu0
        %v821 = vadd.f32 0.0, %v820
        %v822 = vpop.f32.mrf.mxu0
        %v823 = vpop.f32.mrf.mxu0
        %v824 = vadd.f32 0.0, %v823
        %v825 = vpop.f32.mrf.mxu0
        %826 = vmatprep.mubr.bf16.mxu0 0
        %827 = vmatmul.mubr.bf16.gmra.mxu0 %v644
        %v828 = vpop.f32.mrf.mxu0
        %v829 = vadd.f32 0.0, %v828
        %v830 = vpop.f32.mrf.mxu0
        %v831 = vpop.f32.mrf.mxu0
        %v832 = vadd.f32 0.0, %v831
        %v833 = vpop.f32.mrf.mxu0
        %834 = vmatprep.mubr.bf16.mxu0 0
        %835 = vmatmul.mubr.bf16.gmra.mxu0 %v645
        %v836 = vpop.f32.mrf.mxu0
        %v837 = vadd.f32 0.0, %v836
        %v838 = vpop.f32.mrf.mxu0
        %v839 = vpop.f32.mrf.mxu0
        %v840 = vadd.f32 0.0, %v839
        %v841 = vpop.f32.mrf.mxu0
        %842 = vmatprep.mubr.bf16.mxu0 0
        %843 = vmatmul.mubr.bf16.gmra.mxu0 %v646
        %v844 = vpop.f32.mrf.mxu0
        %v845 = vadd.f32 0.0, %v844
        %v846 = vpop.f32.mrf.mxu0
        %v847 = vpop.f32.mrf.mxu0
        %v848 = vadd.f32 0.0, %v847
        %v849 = vpop.f32.mrf.mxu0
        %850 = vmatprep.mubr.bf16.mxu0 0
        %851 = vmatmul.mubr.bf16.gmra.mxu0 %v647
        %v852 = vpop.f32.mrf.mxu0
        %v853 = vadd.f32 0.0, %v852
        %v854 = vpop.f32.mrf.mxu0
        %v855 = vpop.f32.mrf.mxu0
        %v856 = vadd.f32 0.0, %v855
        %v857 = vpop.f32.mrf.mxu0
        %858 = vmatprep.mubr.bf16.mxu0 0
        %859 = vmatmul.mubr.bf16.gmra.mxu0 %v648
        %v860 = vpop.f32.mrf.mxu0
        %v861 = vadd.f32 0.0, %v860
        %v862 = vpop.f32.mrf.mxu0
        %v863 = vpop.f32.mrf.mxu0
        %v864 = vadd.f32 0.0, %v863
        %v865 = vpop.f32.mrf.mxu0
        %866 = vmatprep.mubr.bf16.mxu0 0
        %867 = vmatmul.mubr.bf16.gmra.mxu0 %v649
        %v868 = vpop.f32.mrf.mxu0
        %v869 = vadd.f32 0.0, %v868
        %v870 = vpop.f32.mrf.mxu0
        %v871 = vpop.f32.mrf.mxu0
        %v872 = vadd.f32 0.0, %v871
        %v873 = vpop.f32.mrf.mxu0
        %874 = vdwg.mxu0
        %v875 = vadd.f32 %v490, %v749
        %v876 = vadd.f32 %v491, %v752
        %v877 = vadd.f32 %v492, %v757
        %v878 = vadd.f32 %v493, %v760
        %v879 = vadd.f32 %v494, %v765
        %v880 = vadd.f32 %v495, %v768
        %v881 = vadd.f32 %v496, %v773
        %v882 = vadd.f32 %v497, %v776
        %v883 = vadd.f32 %v498, %v781
        %v884 = vadd.f32 %v499, %v784
        %v885 = vadd.f32 %v500, %v789
        %v886 = vadd.f32 %v501, %v792
        %v887 = vadd.f32 %v502, %v797
        %v888 = vadd.f32 %v503, %v800
        %v889 = vadd.f32 %v504, %v805
        %v890 = vadd.f32 %v505, %v808
        %v891 = vadd.f32 %v506, %v813
        %v892 = vadd.f32 %v507, %v816
        %v893 = vadd.f32 %v508, %v821
        %v894 = vadd.f32 %v509, %v824
        %v895 = vadd.f32 %v510, %v829
        %v896 = vadd.f32 %v511, %v832
        %v897 = vadd.f32 %v512, %v837
        %v898 = vadd.f32 %v513, %v840
        %v899 = vadd.f32 %v514, %v845
        %v900 = vadd.f32 %v515, %v848
        %v901 = vadd.f32 %v516, %v853
        %v902 = vadd.f32 %v517, %v856
        %v903 = vadd.f32 %v518, %v861
        %v904 = vadd.f32 %v519, %v864
        %v905 = vadd.f32 %v520, %v869
        %v906 = vadd.f32 %v521, %v872
        %907 = vst [vmem:[#allocation2] sm:$0xff] %v875
        %908 = vst [vmem:[#allocation2 + $0x8] sm:$0xff] %v876
        %909 = vst [vmem:[#allocation2 + $0x10] sm:$0xff] %v877
        %910 = vst [vmem:[#allocation2 + $0x18] sm:$0xff] %v878
        %911 = vst [vmem:[#allocation2 + $0x20] sm:$0xff] %v879
        %912 = vst [vmem:[#allocation2 + $0x28] sm:$0xff] %v880
        %913 = vst [vmem:[#allocation2 + $0x30] sm:$0xff] %v881
        %914 = vst [vmem:[#allocation2 + $0x38] sm:$0xff] %v882
        %915 = vst [vmem:[#allocation2 + $0x40] sm:$0xff] %v883
        %916 = vst [vmem:[#allocation2 + $0x48] sm:$0xff] %v884
        %917 = vst [vmem:[#allocation2 + $0x50] sm:$0xff] %v885
        %918 = vst [vmem:[#allocation2 + $0x58] sm:$0xff] %v886
        %919 = vst [vmem:[#allocation2 + $0x60] sm:$0xff] %v887
        %920 = vst [vmem:[#allocation2 + $0x68] sm:$0xff] %v888
        %921 = vst [vmem:[#allocation2 + $0x70] sm:$0xff] %v889
        %922 = vst [vmem:[#allocation2 + $0x78] sm:$0xff] %v890
        %923 = vst [vmem:[#allocation2 + $0x80] sm:$0xff] %v891
        %924 = vst [vmem:[#allocation2 + $0x88] sm:$0xff] %v892
        %925 = vst [vmem:[#allocation2 + $0x90] sm:$0xff] %v893
        %926 = vst [vmem:[#allocation2 + $0x98] sm:$0xff] %v894
        %927 = vst [vmem:[#allocation2 + $0xa0] sm:$0xff] %v895
        %928 = vst [vmem:[#allocation2 + $0xa8] sm:$0xff] %v896
        %929 = vst [vmem:[#allocation2 + $0xb0] sm:$0xff] %v897
        %930 = vst [vmem:[#allocation2 + $0xb8] sm:$0xff] %v898
        %931 = vst [vmem:[#allocation2 + $0xc0] sm:$0xff] %v899
        %932 = vst [vmem:[#allocation2 + $0xc8] sm:$0xff] %v900
        %933 = vst [vmem:[#allocation2 + $0xd0] sm:$0xff] %v901
        %934 = vst [vmem:[#allocation2 + $0xd8] sm:$0xff] %v902
        %935 = vst [vmem:[#allocation2 + $0xe0] sm:$0xff] %v903
        %936 = vst [vmem:[#allocation2 + $0xe8] sm:$0xff] %v904
        %937 = vst [vmem:[#allocation2 + $0xf0] sm:$0xff] %v905
        %938 = vst [vmem:[#allocation2 + $0xf8] sm:$0xff] %v906
        %p939 = scmp.eq.s32.totalorder %s35, 2
        // Predicated region
        $region81: #{tpu_custom_call.1} parent=55 // pred_check
          %p940 = pneg %p939
        $region82: #{tpu_custom_call.1} parent=55 // pred_check_branch
          %942 = sbr.rel (%p940) target = $region84
        $region83: #{tpu_custom_call.1} parent=55 // pred_region
          %v943 = vld [vmem:[#allocation2] sm:$0xff]
          %v944 = vld [vmem:[#allocation2 + $0x8] sm:$0xff]
          %v945 = vld [vmem:[#allocation2 + $0x10] sm:$0xff]
          %v946 = vld [vmem:[#allocation2 + $0x18] sm:$0xff]
          %v947 = vld [vmem:[#allocation2 + $0x20] sm:$0xff]
          %v948 = vld [vmem:[#allocation2 + $0x28] sm:$0xff]
          %v949 = vld [vmem:[#allocation2 + $0x30] sm:$0xff]
          %v950 = vld [vmem:[#allocation2 + $0x38] sm:$0xff]
          %v951 = vld [vmem:[#allocation2 + $0x40] sm:$0xff]
          %v952 = vld [vmem:[#allocation2 + $0x48] sm:$0xff]
          %v953 = vld [vmem:[#allocation2 + $0x50] sm:$0xff]
          %v954 = vld [vmem:[#allocation2 + $0x58] sm:$0xff]
          %v955 = vld [vmem:[#allocation2 + $0x60] sm:$0xff]
          %v956 = vld [vmem:[#allocation2 + $0x68] sm:$0xff]
          %v957 = vld [vmem:[#allocation2 + $0x70] sm:$0xff]
          %v958 = vld [vmem:[#allocation2 + $0x78] sm:$0xff]
          %v959 = vld [vmem:[#allocation2 + $0x80] sm:$0xff]
          %v960 = vld [vmem:[#allocation2 + $0x88] sm:$0xff]
          %v961 = vld [vmem:[#allocation2 + $0x90] sm:$0xff]
          %v962 = vld [vmem:[#allocation2 + $0x98] sm:$0xff]
          %v963 = vld [vmem:[#allocation2 + $0xa0] sm:$0xff]
          %v964 = vld [vmem:[#allocation2 + $0xa8] sm:$0xff]
          %v965 = vld [vmem:[#allocation2 + $0xb0] sm:$0xff]
          %v966 = vld [vmem:[#allocation2 + $0xb8] sm:$0xff]
          %v967 = vld [vmem:[#allocation2 + $0xc0] sm:$0xff]
          %v968 = vld [vmem:[#allocation2 + $0xc8] sm:$0xff]
          %v969 = vld [vmem:[#allocation2 + $0xd0] sm:$0xff]
          %v970 = vld [vmem:[#allocation2 + $0xd8] sm:$0xff]
          %v971 = vld [vmem:[#allocation2 + $0xe0] sm:$0xff]
          %v972 = vld [vmem:[#allocation2 + $0xe8] sm:$0xff]
          %v973 = vld [vmem:[#allocation2 + $0xf0] sm:$0xff]
          %v974 = vld [vmem:[#allocation2 + $0xf8] sm:$0xff]
          %v975 = vld [vmem:[%s2] sm:$0x1]
          %v977 = vlaneseq
          %v978 = vshrl.u32 %v977, 7
          %v979 = vsub.s32 0, %v978
          %v980 = vrot.slane %v975, %v979
          %v982 = vadd.f32 %v943, %v980
          %v983 = vadd.f32 %v944, %v980
          %v984 = vadd.f32 %v945, %v980
          %v985 = vadd.f32 %v946, %v980
          %v986 = vadd.f32 %v947, %v980
          %v987 = vadd.f32 %v948, %v980
          %v988 = vadd.f32 %v949, %v980
          %v989 = vadd.f32 %v950, %v980
          %v990 = vadd.f32 %v951, %v980
          %v991 = vadd.f32 %v952, %v980
          %v992 = vadd.f32 %v953, %v980
          %v993 = vadd.f32 %v954, %v980
          %v994 = vadd.f32 %v955, %v980
          %v995 = vadd.f32 %v956, %v980
          %v996 = vadd.f32 %v957, %v980
          %v997 = vadd.f32 %v958, %v980
          %v998 = vadd.f32 %v959, %v980
          %v999 = vadd.f32 %v960, %v980
          %v1000 = vadd.f32 %v961, %v980
          %v1001 = vadd.f32 %v962, %v980
          %v1002 = vadd.f32 %v963, %v980
          %v1003 = vadd.f32 %v964, %v980
          %v1004 = vadd.f32 %v965, %v980
          %v1005 = vadd.f32 %v966, %v980
          %v1006 = vadd.f32 %v967, %v980
          %v1007 = vadd.f32 %v968, %v980
          %v1008 = vadd.f32 %v969, %v980
          %v1009 = vadd.f32 %v970, %v980
          %v1010 = vadd.f32 %v971, %v980
          %v1011 = vadd.f32 %v972, %v980
          %v1012 = vadd.f32 %v973, %v980
          %v1013 = vadd.f32 %v974, %v980
          %v1014 = vmax.f32 %v982, 0.0
          %v1015 = vmax.f32 %v983, 0.0
          %v1016 = vmax.f32 %v984, 0.0
          %v1017 = vmax.f32 %v985, 0.0
          %v1018 = vmax.f32 %v986, 0.0
          %v1019 = vmax.f32 %v987, 0.0
          %v1020 = vmax.f32 %v988, 0.0
          %v1021 = vmax.f32 %v989, 0.0
          %v1022 = vmax.f32 %v990, 0.0
          %v1023 = vmax.f32 %v991, 0.0
          %v1024 = vmax.f32 %v992, 0.0
          %v1025 = vmax.f32 %v993, 0.0
          %v1026 = vmax.f32 %v994, 0.0
          %v1027 = vmax.f32 %v995, 0.0
          %v1028 = vmax.f32 %v996, 0.0
          %v1029 = vmax.f32 %v997, 0.0
          %v1030 = vmax.f32 %v998, 0.0
          %v1031 = vmax.f32 %v999, 0.0
          %v1032 = vmax.f32 %v1000, 0.0
          %v1033 = vmax.f32 %v1001, 0.0
          %v1034 = vmax.f32 %v1002, 0.0
          %v1035 = vmax.f32 %v1003, 0.0
          %v1036 = vmax.f32 %v1004, 0.0
          %v1037 = vmax.f32 %v1005, 0.0
          %v1038 = vmax.f32 %v1006, 0.0
          %v1039 = vmax.f32 %v1007, 0.0
          %v1040 = vmax.f32 %v1008, 0.0
          %v1041 = vmax.f32 %v1009, 0.0
          %v1042 = vmax.f32 %v1010, 0.0
          %v1043 = vmax.f32 %v1011, 0.0
          %v1044 = vmax.f32 %v1012, 0.0
          %v1045 = vmax.f32 %v1013, 0.0
          %v1046 = vpack.c.bf16 %v1015, %v1014
          %v1047 = vpack.c.bf16 %v1017, %v1016
          %v1048 = vpack.c.bf16 %v1019, %v1018
          %v1049 = vpack.c.bf16 %v1021, %v1020
          %v1050 = vpack.c.bf16 %v1023, %v1022
          %v1051 = vpack.c.bf16 %v1025, %v1024
          %v1052 = vpack.c.bf16 %v1027, %v1026
          %v1053 = vpack.c.bf16 %v1029, %v1028
          %v1054 = vpack.c.bf16 %v1031, %v1030
          %v1055 = vpack.c.bf16 %v1033, %v1032
          %v1056 = vpack.c.bf16 %v1035, %v1034
          %v1057 = vpack.c.bf16 %v1037, %v1036
          %v1058 = vpack.c.bf16 %v1039, %v1038
          %v1059 = vpack.c.bf16 %v1041, %v1040
          %v1060 = vpack.c.bf16 %v1043, %v1042
          %v1061 = vpack.c.bf16 %v1045, %v1044
          %v1062 = vld [vmem:[#allocation8] sm:$0xf]
          %v1063 = vld [vmem:[#allocation8 + $0x4] sm:$0xf]
          %v1064 = vld [vmem:[#allocation8 + $0x8] sm:$0xf]
          %v1065 = vld [vmem:[#allocation8 + $0xc] sm:$0xf]
          %v1066 = vld [vmem:[#allocation8 + $0x10] sm:$0xf]
          %v1067 = vld [vmem:[#allocation8 + $0x14] sm:$0xf]
          %v1068 = vld [vmem:[#allocation8 + $0x18] sm:$0xf]
          %v1069 = vld [vmem:[#allocation8 + $0x1c] sm:$0xf]
          %v1070 = vld [vmem:[#allocation8 + $0x20] sm:$0xf]
          %v1071 = vld [vmem:[#allocation8 + $0x24] sm:$0xf]
          %v1072 = vld [vmem:[#allocation8 + $0x28] sm:$0xf]
          %v1073 = vld [vmem:[#allocation8 + $0x2c] sm:$0xf]
          %v1074 = vld [vmem:[#allocation8 + $0x30] sm:$0xf]
          %v1075 = vld [vmem:[#allocation8 + $0x34] sm:$0xf]
          %v1076 = vld [vmem:[#allocation8 + $0x38] sm:$0xf]
          %v1077 = vld [vmem:[#allocation8 + $0x3c] sm:$0xf]
          %v1078 = vld [vmem:[%s4] sm:$0x1]
          %v1080 = vlaneseq
          %v1081 = vshrl.u32 %v1080, 7
          %v1082 = vsub.s32 0, %v1081
          %v1083 = vrot.slane %v1078, %v1082
          %v1101 = vunpack.c.l.b16 %v1062
          %v1102 = vunpack.c.l.b16 %v1063
          %v1103 = vunpack.c.l.b16 %v1064
          %v1104 = vunpack.c.l.b16 %v1065
          %v1105 = vunpack.c.l.b16 %v1066
          %v1106 = vunpack.c.l.b16 %v1067
          %v1107 = vunpack.c.l.b16 %v1068
          %v1108 = vunpack.c.l.b16 %v1069
          %v1109 = vunpack.c.l.b16 %v1070
          %v1110 = vunpack.c.l.b16 %v1071
          %v1111 = vunpack.c.l.b16 %v1072
          %v1112 = vunpack.c.l.b16 %v1073
          %v1113 = vunpack.c.l.b16 %v1074
          %v1114 = vunpack.c.l.b16 %v1075
          %v1115 = vunpack.c.l.b16 %v1076
          %v1116 = vunpack.c.l.b16 %v1077
          %v1117 = vpack.c.b16 %v1102, %v1101
          %v1118 = vpack.c.b16 %v1104, %v1103
          %v1119 = vpack.c.b16 %v1106, %v1105
          %v1120 = vpack.c.b16 %v1108, %v1107
          %v1121 = vpack.c.b16 %v1110, %v1109
          %v1122 = vpack.c.b16 %v1112, %v1111
          %v1123 = vpack.c.b16 %v1114, %v1113
          %v1124 = vpack.c.b16 %v1116, %v1115
          %1133 = vmatprep.subr.bf16.mxu0 0
          %1134 = vmatpush1.bf16.msra.mxu0 %v1124
          %1135 = vmatprep.subr.bf16.mxu0 0
          %1136 = vmatpush1.bf16.msra.mxu0 %v1123
          %1137 = vmatprep.subr.bf16.mxu0 0
          %1138 = vmatpush1.bf16.msra.mxu0 %v1122
          %1139 = vmatprep.subr.bf16.mxu0 0
          %1140 = vmatpush1.bf16.msra.mxu0 %v1121
          %1141 = vmatprep.subr.bf16.mxu0 0
          %1142 = vmatpush1.bf16.msra.mxu0 %v1120
          %1143 = vmatprep.subr.bf16.mxu0 0
          %1144 = vmatpush1.bf16.msra.mxu0 %v1119
          %1145 = vmatprep.subr.bf16.mxu0 0
          %1146 = vmatpush1.bf16.msra.mxu0 %v1118
          %1147 = vmatprep.subr.bf16.mxu0 0
          %1148 = vmatpush1.bf16.msra.mxu0 %v1117
          %1149 = vmatprep.subr.bf16.mxu0 0
          %1150 = vmatpush2.bf16.msra.mxu0 0
          %1151 = vmatprep.subr.bf16.mxu0 0
          %1152 = vmatpush2.bf16.msra.mxu0 0
          %1153 = vmatprep.subr.bf16.mxu0 0
          %1154 = vmatpush2.bf16.msra.mxu0 0
          %1155 = vmatprep.subr.bf16.mxu0 0
          %1156 = vmatpush2.bf16.msra.mxu0 0
          %1157 = vmatprep.subr.bf16.mxu0 0
          %1158 = vmatpush2.bf16.msra.mxu0 0
          %1159 = vmatprep.subr.bf16.mxu0 0
          %1160 = vmatpush2.bf16.msra.mxu0 0
          %1161 = vmatprep.subr.bf16.mxu0 0
          %1162 = vmatpush2.bf16.msra.mxu0 0
          %1163 = vmatprep.subr.bf16.mxu0 0
          %1164 = vmatpush2.bf16.msra.mxu0 0
          %1165 = vmatprep.mubr.bf16.mxu0 0
          %1166 = vmatmul.mubr.bf16.gmra.mxu0 %v1046
          %v1167 = vpop.f32.mrf.mxu0
          %v1168 = vadd.f32 %v1083, %v1167
          %v1169 = vpop.f32.mrf.mxu0
          %v1170 = vpop.f32.mrf.mxu0
          %v1171 = vadd.f32 %v1083, %v1170
          %v1172 = vpop.f32.mrf.mxu0
          %1173 = vmatprep.mubr.bf16.mxu0 0
          %1174 = vmatmul.mubr.bf16.gmra.mxu0 %v1047
          %v1175 = vpop.f32.mrf.mxu0
          %v1176 = vadd.f32 %v1083, %v1175
          %v1177 = vpop.f32.mrf.mxu0
          %v1178 = vpop.f32.mrf.mxu0
          %v1179 = vadd.f32 %v1083, %v1178
          %v1180 = vpop.f32.mrf.mxu0
          %1181 = vmatprep.mubr.bf16.mxu0 0
          %1182 = vmatmul.mubr.bf16.gmra.mxu0 %v1048
          %v1183 = vpop.f32.mrf.mxu0
          %v1184 = vadd.f32 %v1083, %v1183
          %v1185 = vpop.f32.mrf.mxu0
          %v1186 = vpop.f32.mrf.mxu0
          %v1187 = vadd.f32 %v1083, %v1186
          %v1188 = vpop.f32.mrf.mxu0
          %1189 = vmatprep.mubr.bf16.mxu0 0
          %1190 = vmatmul.mubr.bf16.gmra.mxu0 %v1049
          %v1191 = vpop.f32.mrf.mxu0
          %v1192 = vadd.f32 %v1083, %v1191
          %v1193 = vpop.f32.mrf.mxu0
          %v1194 = vpop.f32.mrf.mxu0
          %v1195 = vadd.f32 %v1083, %v1194
          %v1196 = vpop.f32.mrf.mxu0
          %1197 = vmatprep.mubr.bf16.mxu0 0
          %1198 = vmatmul.mubr.bf16.gmra.mxu0 %v1050
          %v1199 = vpop.f32.mrf.mxu0
          %v1200 = vadd.f32 %v1083, %v1199
          %v1201 = vpop.f32.mrf.mxu0
          %v1202 = vpop.f32.mrf.mxu0
          %v1203 = vadd.f32 %v1083, %v1202
          %v1204 = vpop.f32.mrf.mxu0
          %1205 = vmatprep.mubr.bf16.mxu0 0
          %1206 = vmatmul.mubr.bf16.gmra.mxu0 %v1051
          %v1207 = vpop.f32.mrf.mxu0
          %v1208 = vadd.f32 %v1083, %v1207
          %v1209 = vpop.f32.mrf.mxu0
          %v1210 = vpop.f32.mrf.mxu0
          %v1211 = vadd.f32 %v1083, %v1210
          %v1212 = vpop.f32.mrf.mxu0
          %1213 = vmatprep.mubr.bf16.mxu0 0
          %1214 = vmatmul.mubr.bf16.gmra.mxu0 %v1052
          %v1215 = vpop.f32.mrf.mxu0
          %v1216 = vadd.f32 %v1083, %v1215
          %v1217 = vpop.f32.mrf.mxu0
          %v1218 = vpop.f32.mrf.mxu0
          %v1219 = vadd.f32 %v1083, %v1218
          %v1220 = vpop.f32.mrf.mxu0
          %1221 = vmatprep.mubr.bf16.mxu0 0
          %1222 = vmatmul.mubr.bf16.gmra.mxu0 %v1053
          %v1223 = vpop.f32.mrf.mxu0
          %v1224 = vadd.f32 %v1083, %v1223
          %v1225 = vpop.f32.mrf.mxu0
          %v1226 = vpop.f32.mrf.mxu0
          %v1227 = vadd.f32 %v1083, %v1226
          %v1228 = vpop.f32.mrf.mxu0
          %1229 = vmatprep.mubr.bf16.mxu0 0
          %1230 = vmatmul.mubr.bf16.gmra.mxu0 %v1054
          %v1231 = vpop.f32.mrf.mxu0
          %v1232 = vadd.f32 %v1083, %v1231
          %v1233 = vpop.f32.mrf.mxu0
          %v1234 = vpop.f32.mrf.mxu0
          %v1235 = vadd.f32 %v1083, %v1234
          %v1236 = vpop.f32.mrf.mxu0
          %1237 = vmatprep.mubr.bf16.mxu0 0
          %1238 = vmatmul.mubr.bf16.gmra.mxu0 %v1055
          %v1239 = vpop.f32.mrf.mxu0
          %v1240 = vadd.f32 %v1083, %v1239
          %v1241 = vpop.f32.mrf.mxu0
          %v1242 = vpop.f32.mrf.mxu0
          %v1243 = vadd.f32 %v1083, %v1242
          %v1244 = vpop.f32.mrf.mxu0
          %1245 = vmatprep.mubr.bf16.mxu0 0
          %1246 = vmatmul.mubr.bf16.gmra.mxu0 %v1056
          %v1247 = vpop.f32.mrf.mxu0
          %v1248 = vadd.f32 %v1083, %v1247
          %v1249 = vpop.f32.mrf.mxu0
          %v1250 = vpop.f32.mrf.mxu0
          %v1251 = vadd.f32 %v1083, %v1250
          %v1252 = vpop.f32.mrf.mxu0
          %1253 = vmatprep.mubr.bf16.mxu0 0
          %1254 = vmatmul.mubr.bf16.gmra.mxu0 %v1057
          %v1255 = vpop.f32.mrf.mxu0
          %v1256 = vadd.f32 %v1083, %v1255
          %v1257 = vpop.f32.mrf.mxu0
          %v1258 = vpop.f32.mrf.mxu0
          %v1259 = vadd.f32 %v1083, %v1258
          %v1260 = vpop.f32.mrf.mxu0
          %1261 = vmatprep.mubr.bf16.mxu0 0
          %1262 = vmatmul.mubr.bf16.gmra.mxu0 %v1058
          %v1263 = vpop.f32.mrf.mxu0
          %v1264 = vadd.f32 %v1083, %v1263
          %v1265 = vpop.f32.mrf.mxu0
          %v1266 = vpop.f32.mrf.mxu0
          %v1267 = vadd.f32 %v1083, %v1266
          %v1268 = vpop.f32.mrf.mxu0
          %1269 = vmatprep.mubr.bf16.mxu0 0
          %1270 = vmatmul.mubr.bf16.gmra.mxu0 %v1059
          %v1271 = vpop.f32.mrf.mxu0
          %v1272 = vadd.f32 %v1083, %v1271
          %v1273 = vpop.f32.mrf.mxu0
          %v1274 = vpop.f32.mrf.mxu0
          %v1275 = vadd.f32 %v1083, %v1274
          %v1276 = vpop.f32.mrf.mxu0
          %1277 = vmatprep.mubr.bf16.mxu0 0
          %1278 = vmatmul.mubr.bf16.gmra.mxu0 %v1060
          %v1279 = vpop.f32.mrf.mxu0
          %v1280 = vadd.f32 %v1083, %v1279
          %v1281 = vpop.f32.mrf.mxu0
          %v1282 = vpop.f32.mrf.mxu0
          %v1283 = vadd.f32 %v1083, %v1282
          %v1284 = vpop.f32.mrf.mxu0
          %1285 = vmatprep.mubr.bf16.mxu0 0
          %1286 = vmatmul.mubr.bf16.gmra.mxu0 %v1061
          %v1287 = vpop.f32.mrf.mxu0
          %v1288 = vadd.f32 %v1083, %v1287
          %v1289 = vpop.f32.mrf.mxu0
          %v1290 = vpop.f32.mrf.mxu0
          %v1291 = vadd.f32 %v1083, %v1290
          %v1292 = vpop.f32.mrf.mxu0
          %1293 = vdwg.mxu0
          %v1294 = vmax.f32 %v1168, 0.0
          %v1295 = vmax.f32 %v1171, 0.0
          %v1296 = vmax.f32 %v1176, 0.0
          %v1297 = vmax.f32 %v1179, 0.0
          %v1298 = vmax.f32 %v1184, 0.0
          %v1299 = vmax.f32 %v1187, 0.0
          %v1300 = vmax.f32 %v1192, 0.0
          %v1301 = vmax.f32 %v1195, 0.0
          %v1302 = vmax.f32 %v1200, 0.0
          %v1303 = vmax.f32 %v1203, 0.0
          %v1304 = vmax.f32 %v1208, 0.0
          %v1305 = vmax.f32 %v1211, 0.0
          %v1306 = vmax.f32 %v1216, 0.0
          %v1307 = vmax.f32 %v1219, 0.0
          %v1308 = vmax.f32 %v1224, 0.0
          %v1309 = vmax.f32 %v1227, 0.0
          %v1310 = vmax.f32 %v1232, 0.0
          %v1311 = vmax.f32 %v1235, 0.0
          %v1312 = vmax.f32 %v1240, 0.0
          %v1313 = vmax.f32 %v1243, 0.0
          %v1314 = vmax.f32 %v1248, 0.0
          %v1315 = vmax.f32 %v1251, 0.0
          %v1316 = vmax.f32 %v1256, 0.0
          %v1317 = vmax.f32 %v1259, 0.0
          %v1318 = vmax.f32 %v1264, 0.0
          %v1319 = vmax.f32 %v1267, 0.0
          %v1320 = vmax.f32 %v1272, 0.0
          %v1321 = vmax.f32 %v1275, 0.0
          %v1322 = vmax.f32 %v1280, 0.0
          %v1323 = vmax.f32 %v1283, 0.0
          %v1324 = vmax.f32 %v1288, 0.0
          %v1325 = vmax.f32 %v1291, 0.0
          %v1326 = vpack.c.bf16 %v1295, %v1294
          %v1327 = vpack.c.bf16 %v1297, %v1296
          %v1328 = vpack.c.bf16 %v1299, %v1298
          %v1329 = vpack.c.bf16 %v1301, %v1300
          %v1330 = vpack.c.bf16 %v1303, %v1302
          %v1331 = vpack.c.bf16 %v1305, %v1304
          %v1332 = vpack.c.bf16 %v1307, %v1306
          %v1333 = vpack.c.bf16 %v1309, %v1308
          %v1334 = vpack.c.bf16 %v1311, %v1310
          %v1335 = vpack.c.bf16 %v1313, %v1312
          %v1336 = vpack.c.bf16 %v1315, %v1314
          %v1337 = vpack.c.bf16 %v1317, %v1316
          %v1338 = vpack.c.bf16 %v1319, %v1318
          %v1339 = vpack.c.bf16 %v1321, %v1320
          %v1340 = vpack.c.bf16 %v1323, %v1322
          %v1341 = vpack.c.bf16 %v1325, %v1324
          %v1342 = vld [vmem:[#allocation9] sm:$0xf]
          %v1343 = vld [vmem:[#allocation9 + $0x4] sm:$0xf]
          %v1344 = vld [vmem:[#allocation9 + $0x8] sm:$0xf]
          %v1345 = vld [vmem:[#allocation9 + $0xc] sm:$0xf]
          %v1346 = vld [vmem:[#allocation9 + $0x10] sm:$0xf]
          %v1347 = vld [vmem:[#allocation9 + $0x14] sm:$0xf]
          %v1348 = vld [vmem:[#allocation9 + $0x18] sm:$0xf]
          %v1349 = vld [vmem:[#allocation9 + $0x1c] sm:$0xf]
          %v1350 = vld [vmem:[#allocation9 + $0x20] sm:$0xf]
          %v1351 = vld [vmem:[#allocation9 + $0x24] sm:$0xf]
          %v1352 = vld [vmem:[#allocation9 + $0x28] sm:$0xf]
          %v1353 = vld [vmem:[#allocation9 + $0x2c] sm:$0xf]
          %v1354 = vld [vmem:[#allocation9 + $0x30] sm:$0xf]
          %v1355 = vld [vmem:[#allocation9 + $0x34] sm:$0xf]
          %v1356 = vld [vmem:[#allocation9 + $0x38] sm:$0xf]
          %v1357 = vld [vmem:[#allocation9 + $0x3c] sm:$0xf]
          %v1358 = vld [vmem:[%s6] sm:$0x1]
          %v1360 = vlaneseq
          %v1361 = vshrl.u32 %v1360, 7
          %v1362 = vsub.s32 0, %v1361
          %v1363 = vrot.slane %v1358, %v1362
          %v1381 = vunpack.c.l.b16 %v1342
          %v1382 = vunpack.c.l.b16 %v1343
          %v1383 = vunpack.c.l.b16 %v1344
          %v1384 = vunpack.c.l.b16 %v1345
          %v1385 = vunpack.c.l.b16 %v1346
          %v1386 = vunpack.c.l.b16 %v1347
          %v1387 = vunpack.c.l.b16 %v1348
          %v1388 = vunpack.c.l.b16 %v1349
          %v1389 = vunpack.c.l.b16 %v1350
          %v1390 = vunpack.c.l.b16 %v1351
          %v1391 = vunpack.c.l.b16 %v1352
          %v1392 = vunpack.c.l.b16 %v1353
          %v1393 = vunpack.c.l.b16 %v1354
          %v1394 = vunpack.c.l.b16 %v1355
          %v1395 = vunpack.c.l.b16 %v1356
          %v1396 = vunpack.c.l.b16 %v1357
          %v1397 = vpack.c.b16 %v1382, %v1381
          %v1398 = vpack.c.b16 %v1384, %v1383
          %v1399 = vpack.c.b16 %v1386, %v1385
          %v1400 = vpack.c.b16 %v1388, %v1387
          %v1401 = vpack.c.b16 %v1390, %v1389
          %v1402 = vpack.c.b16 %v1392, %v1391
          %v1403 = vpack.c.b16 %v1394, %v1393
          %v1404 = vpack.c.b16 %v1396, %v1395
          %1413 = vmatprep.subr.bf16.mxu0 0
          %1414 = vmatpush1.bf16.msra.mxu0 %v1404
          %1415 = vmatprep.subr.bf16.mxu0 0
          %1416 = vmatpush1.bf16.msra.mxu0 %v1403
          %1417 = vmatprep.subr.bf16.mxu0 0
          %1418 = vmatpush1.bf16.msra.mxu0 %v1402
          %1419 = vmatprep.subr.bf16.mxu0 0
          %1420 = vmatpush1.bf16.msra.mxu0 %v1401
          %1421 = vmatprep.subr.bf16.mxu0 0
          %1422 = vmatpush1.bf16.msra.mxu0 %v1400
          %1423 = vmatprep.subr.bf16.mxu0 0
          %1424 = vmatpush1.bf16.msra.mxu0 %v1399
          %1425 = vmatprep.subr.bf16.mxu0 0
          %1426 = vmatpush1.bf16.msra.mxu0 %v1398
          %1427 = vmatprep.subr.bf16.mxu0 0
          %1428 = vmatpush1.bf16.msra.mxu0 %v1397
          %1429 = vmatprep.subr.bf16.mxu0 0
          %1430 = vmatpush2.bf16.msra.mxu0 0
          %1431 = vmatprep.subr.bf16.mxu0 0
          %1432 = vmatpush2.bf16.msra.mxu0 0
          %1433 = vmatprep.subr.bf16.mxu0 0
          %1434 = vmatpush2.bf16.msra.mxu0 0
          %1435 = vmatprep.subr.bf16.mxu0 0
          %1436 = vmatpush2.bf16.msra.mxu0 0
          %1437 = vmatprep.subr.bf16.mxu0 0
          %1438 = vmatpush2.bf16.msra.mxu0 0
          %1439 = vmatprep.subr.bf16.mxu0 0
          %1440 = vmatpush2.bf16.msra.mxu0 0
          %1441 = vmatprep.subr.bf16.mxu0 0
          %1442 = vmatpush2.bf16.msra.mxu0 0
          %1443 = vmatprep.subr.bf16.mxu0 0
          %1444 = vmatpush2.bf16.msra.mxu0 0
          %1445 = vmatprep.mubr.bf16.mxu0 0
          %1446 = vmatmul.mubr.bf16.gmra.mxu0 %v1326
          %v1447 = vpop.f32.mrf.mxu0
          %v1448 = vadd.f32 %v1363, %v1447
          %v1449 = vpop.f32.mrf.mxu0
          %v1450 = vpop.f32.mrf.mxu0
          %v1451 = vadd.f32 %v1363, %v1450
          %v1452 = vpop.f32.mrf.mxu0
          %1453 = vmatprep.mubr.bf16.mxu0 0
          %1454 = vmatmul.mubr.bf16.gmra.mxu0 %v1327
          %v1455 = vpop.f32.mrf.mxu0
          %v1456 = vadd.f32 %v1363, %v1455
          %v1457 = vpop.f32.mrf.mxu0
          %v1458 = vpop.f32.mrf.mxu0
          %v1459 = vadd.f32 %v1363, %v1458
          %v1460 = vpop.f32.mrf.mxu0
          %1461 = vmatprep.mubr.bf16.mxu0 0
          %1462 = vmatmul.mubr.bf16.gmra.mxu0 %v1328
          %v1463 = vpop.f32.mrf.mxu0
          %v1464 = vadd.f32 %v1363, %v1463
          %v1465 = vpop.f32.mrf.mxu0
          %v1466 = vpop.f32.mrf.mxu0
          %v1467 = vadd.f32 %v1363, %v1466
          %v1468 = vpop.f32.mrf.mxu0
          %1469 = vmatprep.mubr.bf16.mxu0 0
          %1470 = vmatmul.mubr.bf16.gmra.mxu0 %v1329
          %v1471 = vpop.f32.mrf.mxu0
          %v1472 = vadd.f32 %v1363, %v1471
          %v1473 = vpop.f32.mrf.mxu0
          %v1474 = vpop.f32.mrf.mxu0
          %v1475 = vadd.f32 %v1363, %v1474
          %v1476 = vpop.f32.mrf.mxu0
          %1477 = vmatprep.mubr.bf16.mxu0 0
          %1478 = vmatmul.mubr.bf16.gmra.mxu0 %v1330
          %v1479 = vpop.f32.mrf.mxu0
          %v1480 = vadd.f32 %v1363, %v1479
          %v1481 = vpop.f32.mrf.mxu0
          %v1482 = vpop.f32.mrf.mxu0
          %v1483 = vadd.f32 %v1363, %v1482
          %v1484 = vpop.f32.mrf.mxu0
          %1485 = vmatprep.mubr.bf16.mxu0 0
          %1486 = vmatmul.mubr.bf16.gmra.mxu0 %v1331
          %v1487 = vpop.f32.mrf.mxu0
          %v1488 = vadd.f32 %v1363, %v1487
          %v1489 = vpop.f32.mrf.mxu0
          %v1490 = vpop.f32.mrf.mxu0
          %v1491 = vadd.f32 %v1363, %v1490
          %v1492 = vpop.f32.mrf.mxu0
          %1493 = vmatprep.mubr.bf16.mxu0 0
          %1494 = vmatmul.mubr.bf16.gmra.mxu0 %v1332
          %v1495 = vpop.f32.mrf.mxu0
          %v1496 = vadd.f32 %v1363, %v1495
          %v1497 = vpop.f32.mrf.mxu0
          %v1498 = vpop.f32.mrf.mxu0
          %v1499 = vadd.f32 %v1363, %v1498
          %v1500 = vpop.f32.mrf.mxu0
          %1501 = vmatprep.mubr.bf16.mxu0 0
          %1502 = vmatmul.mubr.bf16.gmra.mxu0 %v1333
          %v1503 = vpop.f32.mrf.mxu0
          %v1504 = vadd.f32 %v1363, %v1503
          %v1505 = vpop.f32.mrf.mxu0
          %v1506 = vpop.f32.mrf.mxu0
          %v1507 = vadd.f32 %v1363, %v1506
          %v1508 = vpop.f32.mrf.mxu0
          %1509 = vmatprep.mubr.bf16.mxu0 0
          %1510 = vmatmul.mubr.bf16.gmra.mxu0 %v1334
          %v1511 = vpop.f32.mrf.mxu0
          %v1512 = vadd.f32 %v1363, %v1511
          %v1513 = vpop.f32.mrf.mxu0
          %v1514 = vpop.f32.mrf.mxu0
          %v1515 = vadd.f32 %v1363, %v1514
          %v1516 = vpop.f32.mrf.mxu0
          %1517 = vmatprep.mubr.bf16.mxu0 0
          %1518 = vmatmul.mubr.bf16.gmra.mxu0 %v1335
          %v1519 = vpop.f32.mrf.mxu0
          %v1520 = vadd.f32 %v1363, %v1519
          %v1521 = vpop.f32.mrf.mxu0
          %v1522 = vpop.f32.mrf.mxu0
          %v1523 = vadd.f32 %v1363, %v1522
          %v1524 = vpop.f32.mrf.mxu0
          %1525 = vmatprep.mubr.bf16.mxu0 0
          %1526 = vmatmul.mubr.bf16.gmra.mxu0 %v1336
          %v1527 = vpop.f32.mrf.mxu0
          %v1528 = vadd.f32 %v1363, %v1527
          %v1529 = vpop.f32.mrf.mxu0
          %v1530 = vpop.f32.mrf.mxu0
          %v1531 = vadd.f32 %v1363, %v1530
          %v1532 = vpop.f32.mrf.mxu0
          %1533 = vmatprep.mubr.bf16.mxu0 0
          %1534 = vmatmul.mubr.bf16.gmra.mxu0 %v1337
          %v1535 = vpop.f32.mrf.mxu0
          %v1536 = vadd.f32 %v1363, %v1535
          %v1537 = vpop.f32.mrf.mxu0
          %v1538 = vpop.f32.mrf.mxu0
          %v1539 = vadd.f32 %v1363, %v1538
          %v1540 = vpop.f32.mrf.mxu0
          %1541 = vmatprep.mubr.bf16.mxu0 0
          %1542 = vmatmul.mubr.bf16.gmra.mxu0 %v1338
          %v1543 = vpop.f32.mrf.mxu0
          %v1544 = vadd.f32 %v1363, %v1543
          %v1545 = vpop.f32.mrf.mxu0
          %v1546 = vpop.f32.mrf.mxu0
          %v1547 = vadd.f32 %v1363, %v1546
          %v1548 = vpop.f32.mrf.mxu0
          %1549 = vmatprep.mubr.bf16.mxu0 0
          %1550 = vmatmul.mubr.bf16.gmra.mxu0 %v1339
          %v1551 = vpop.f32.mrf.mxu0
          %v1552 = vadd.f32 %v1363, %v1551
          %v1553 = vpop.f32.mrf.mxu0
          %v1554 = vpop.f32.mrf.mxu0
          %v1555 = vadd.f32 %v1363, %v1554
          %v1556 = vpop.f32.mrf.mxu0
          %1557 = vmatprep.mubr.bf16.mxu0 0
          %1558 = vmatmul.mubr.bf16.gmra.mxu0 %v1340
          %v1559 = vpop.f32.mrf.mxu0
          %v1560 = vadd.f32 %v1363, %v1559
          %v1561 = vpop.f32.mrf.mxu0
          %v1562 = vpop.f32.mrf.mxu0
          %v1563 = vadd.f32 %v1363, %v1562
          %v1564 = vpop.f32.mrf.mxu0
          %1565 = vmatprep.mubr.bf16.mxu0 0
          %1566 = vmatmul.mubr.bf16.gmra.mxu0 %v1341
          %v1567 = vpop.f32.mrf.mxu0
          %v1568 = vadd.f32 %v1363, %v1567
          %v1569 = vpop.f32.mrf.mxu0
          %v1570 = vpop.f32.mrf.mxu0
          %v1571 = vadd.f32 %v1363, %v1570
          %v1572 = vpop.f32.mrf.mxu0
          %1573 = vdwg.mxu0
          %v1574 = vmax.f32 %v1448, 0.0
          %v1575 = vmax.f32 %v1451, 0.0
          %v1576 = vmax.f32 %v1456, 0.0
          %v1577 = vmax.f32 %v1459, 0.0
          %v1578 = vmax.f32 %v1464, 0.0
          %v1579 = vmax.f32 %v1467, 0.0
          %v1580 = vmax.f32 %v1472, 0.0
          %v1581 = vmax.f32 %v1475, 0.0
          %v1582 = vmax.f32 %v1480, 0.0
          %v1583 = vmax.f32 %v1483, 0.0
          %v1584 = vmax.f32 %v1488, 0.0
          %v1585 = vmax.f32 %v1491, 0.0
          %v1586 = vmax.f32 %v1496, 0.0
          %v1587 = vmax.f32 %v1499, 0.0
          %v1588 = vmax.f32 %v1504, 0.0
          %v1589 = vmax.f32 %v1507, 0.0
          %v1590 = vmax.f32 %v1512, 0.0
          %v1591 = vmax.f32 %v1515, 0.0
          %v1592 = vmax.f32 %v1520, 0.0
          %v1593 = vmax.f32 %v1523, 0.0
          %v1594 = vmax.f32 %v1528, 0.0
          %v1595 = vmax.f32 %v1531, 0.0
          %v1596 = vmax.f32 %v1536, 0.0
          %v1597 = vmax.f32 %v1539, 0.0
          %v1598 = vmax.f32 %v1544, 0.0
          %v1599 = vmax.f32 %v1547, 0.0
          %v1600 = vmax.f32 %v1552, 0.0
          %v1601 = vmax.f32 %v1555, 0.0
          %v1602 = vmax.f32 %v1560, 0.0
          %v1603 = vmax.f32 %v1563, 0.0
          %v1604 = vmax.f32 %v1568, 0.0
          %v1605 = vmax.f32 %v1571, 0.0
          %v1606 = vpack.c.bf16 %v1575, %v1574
          %v1607 = vpack.c.bf16 %v1577, %v1576
          %v1608 = vpack.c.bf16 %v1579, %v1578
          %v1609 = vpack.c.bf16 %v1581, %v1580
          %v1610 = vpack.c.bf16 %v1583, %v1582
          %v1611 = vpack.c.bf16 %v1585, %v1584
          %v1612 = vpack.c.bf16 %v1587, %v1586
          %v1613 = vpack.c.bf16 %v1589, %v1588
          %v1614 = vpack.c.bf16 %v1591, %v1590
          %v1615 = vpack.c.bf16 %v1593, %v1592
          %v1616 = vpack.c.bf16 %v1595, %v1594
          %v1617 = vpack.c.bf16 %v1597, %v1596
          %v1618 = vpack.c.bf16 %v1599, %v1598
          %v1619 = vpack.c.bf16 %v1601, %v1600
          %v1620 = vpack.c.bf16 %v1603, %v1602
          %v1621 = vpack.c.bf16 %v1605, %v1604
          %v1622 = vld [vmem:[#allocation11] sm:$0xf]
          %v1623 = vld [vmem:[#allocation11 + $0x4] sm:$0xf]
          %v1624 = vld [vmem:[#allocation11 + $0x8] sm:$0xf]
          %v1625 = vld [vmem:[#allocation11 + $0xc] sm:$0xf]
          %v1626 = vld [vmem:[#allocation11 + $0x10] sm:$0xf]
          %v1627 = vld [vmem:[#allocation11 + $0x14] sm:$0xf]
          %v1628 = vld [vmem:[#allocation11 + $0x18] sm:$0xf]
          %v1629 = vld [vmem:[#allocation11 + $0x1c] sm:$0xf]
          %v1630 = vld [vmem:[#allocation11 + $0x20] sm:$0xf]
          %v1631 = vld [vmem:[#allocation11 + $0x24] sm:$0xf]
          %v1632 = vld [vmem:[#allocation11 + $0x28] sm:$0xf]
          %v1633 = vld [vmem:[#allocation11 + $0x2c] sm:$0xf]
          %v1634 = vld [vmem:[#allocation11 + $0x30] sm:$0xf]
          %v1635 = vld [vmem:[#allocation11 + $0x34] sm:$0xf]
          %v1636 = vld [vmem:[#allocation11 + $0x38] sm:$0xf]
          %v1637 = vld [vmem:[#allocation11 + $0x3c] sm:$0xf]
          %v1638 = vld [vmem:[%s8] sm:$0x1]
          %v1640 = vlaneseq
          %v1641 = vshrl.u32 %v1640, 7
          %v1642 = vsub.s32 0, %v1641
          %v1643 = vrot.slane %v1638, %v1642
          %v1661 = vunpack.c.l.b16 %v1622
          %v1662 = vunpack.c.l.b16 %v1623
          %v1663 = vunpack.c.l.b16 %v1624
          %v1664 = vunpack.c.l.b16 %v1625
          %v1665 = vunpack.c.l.b16 %v1626
          %v1666 = vunpack.c.l.b16 %v1627
          %v1667 = vunpack.c.l.b16 %v1628
          %v1668 = vunpack.c.l.b16 %v1629
          %v1669 = vunpack.c.l.b16 %v1630
          %v1670 = vunpack.c.l.b16 %v1631
          %v1671 = vunpack.c.l.b16 %v1632
          %v1672 = vunpack.c.l.b16 %v1633
          %v1673 = vunpack.c.l.b16 %v1634
          %v1674 = vunpack.c.l.b16 %v1635
          %v1675 = vunpack.c.l.b16 %v1636
          %v1676 = vunpack.c.l.b16 %v1637
          %v1677 = vpack.c.b16 %v1662, %v1661
          %v1678 = vpack.c.b16 %v1664, %v1663
          %v1679 = vpack.c.b16 %v1666, %v1665
          %v1680 = vpack.c.b16 %v1668, %v1667
          %v1681 = vpack.c.b16 %v1670, %v1669
          %v1682 = vpack.c.b16 %v1672, %v1671
          %v1683 = vpack.c.b16 %v1674, %v1673
          %v1684 = vpack.c.b16 %v1676, %v1675
          %1693 = vmatprep.subr.bf16.mxu0 0
          %1694 = vmatpush1.bf16.msra.mxu0 %v1684
          %1695 = vmatprep.subr.bf16.mxu0 0
          %1696 = vmatpush1.bf16.msra.mxu0 %v1683
          %1697 = vmatprep.subr.bf16.mxu0 0
          %1698 = vmatpush1.bf16.msra.mxu0 %v1682
          %1699 = vmatprep.subr.bf16.mxu0 0
          %1700 = vmatpush1.bf16.msra.mxu0 %v1681
          %1701 = vmatprep.subr.bf16.mxu0 0
          %1702 = vmatpush1.bf16.msra.mxu0 %v1680
          %1703 = vmatprep.subr.bf16.mxu0 0
          %1704 = vmatpush1.bf16.msra.mxu0 %v1679
          %1705 = vmatprep.subr.bf16.mxu0 0
          %1706 = vmatpush1.bf16.msra.mxu0 %v1678
          %1707 = vmatprep.subr.bf16.mxu0 0
          %1708 = vmatpush1.bf16.msra.mxu0 %v1677
          %1709 = vmatprep.subr.bf16.mxu0 0
          %1710 = vmatpush2.bf16.msra.mxu0 0
          %1711 = vmatprep.subr.bf16.mxu0 0
          %1712 = vmatpush2.bf16.msra.mxu0 0
          %1713 = vmatprep.subr.bf16.mxu0 0
          %1714 = vmatpush2.bf16.msra.mxu0 0
          %1715 = vmatprep.subr.bf16.mxu0 0
          %1716 = vmatpush2.bf16.msra.mxu0 0
          %1717 = vmatprep.subr.bf16.mxu0 0
          %1718 = vmatpush2.bf16.msra.mxu0 0
          %1719 = vmatprep.subr.bf16.mxu0 0
          %1720 = vmatpush2.bf16.msra.mxu0 0
          %1721 = vmatprep.subr.bf16.mxu0 0
          %1722 = vmatpush2.bf16.msra.mxu0 0
          %1723 = vmatprep.subr.bf16.mxu0 0
          %1724 = vmatpush2.bf16.msra.mxu0 0
          %1725 = vmatprep.mubr.bf16.mxu0 0
          %1726 = vmatmul.mubr.bf16.gmra.mxu0 %v1606
          %v1727 = vpop.f32.mrf.mxu0
          %v1728 = vadd.f32 %v1643, %v1727
          %v1729 = vpop.f32.mrf.mxu0
          %v1730 = vpop.f32.mrf.mxu0
          %v1731 = vadd.f32 %v1643, %v1730
          %v1732 = vpop.f32.mrf.mxu0
          %1733 = vmatprep.mubr.bf16.mxu0 0
          %1734 = vmatmul.mubr.bf16.gmra.mxu0 %v1607
          %v1735 = vpop.f32.mrf.mxu0
          %v1736 = vadd.f32 %v1643, %v1735
          %v1737 = vpop.f32.mrf.mxu0
          %v1738 = vpop.f32.mrf.mxu0
          %v1739 = vadd.f32 %v1643, %v1738
          %v1740 = vpop.f32.mrf.mxu0
          %1741 = vmatprep.mubr.bf16.mxu0 0
          %1742 = vmatmul.mubr.bf16.gmra.mxu0 %v1608
          %v1743 = vpop.f32.mrf.mxu0
          %v1744 = vadd.f32 %v1643, %v1743
          %v1745 = vpop.f32.mrf.mxu0
          %v1746 = vpop.f32.mrf.mxu0
          %v1747 = vadd.f32 %v1643, %v1746
          %v1748 = vpop.f32.mrf.mxu0
          %1749 = vmatprep.mubr.bf16.mxu0 0
          %1750 = vmatmul.mubr.bf16.gmra.mxu0 %v1609
          %v1751 = vpop.f32.mrf.mxu0
          %v1752 = vadd.f32 %v1643, %v1751
          %v1753 = vpop.f32.mrf.mxu0
          %v1754 = vpop.f32.mrf.mxu0
          %v1755 = vadd.f32 %v1643, %v1754
          %v1756 = vpop.f32.mrf.mxu0
          %1757 = vmatprep.mubr.bf16.mxu0 0
          %1758 = vmatmul.mubr.bf16.gmra.mxu0 %v1610
          %v1759 = vpop.f32.mrf.mxu0
          %v1760 = vadd.f32 %v1643, %v1759
          %v1761 = vpop.f32.mrf.mxu0
          %v1762 = vpop.f32.mrf.mxu0
          %v1763 = vadd.f32 %v1643, %v1762
          %v1764 = vpop.f32.mrf.mxu0
          %1765 = vmatprep.mubr.bf16.mxu0 0
          %1766 = vmatmul.mubr.bf16.gmra.mxu0 %v1611
          %v1767 = vpop.f32.mrf.mxu0
          %v1768 = vadd.f32 %v1643, %v1767
          %v1769 = vpop.f32.mrf.mxu0
          %v1770 = vpop.f32.mrf.mxu0
          %v1771 = vadd.f32 %v1643, %v1770
          %v1772 = vpop.f32.mrf.mxu0
          %1773 = vmatprep.mubr.bf16.mxu0 0
          %1774 = vmatmul.mubr.bf16.gmra.mxu0 %v1612
          %v1775 = vpop.f32.mrf.mxu0
          %v1776 = vadd.f32 %v1643, %v1775
          %v1777 = vpop.f32.mrf.mxu0
          %v1778 = vpop.f32.mrf.mxu0
          %v1779 = vadd.f32 %v1643, %v1778
          %v1780 = vpop.f32.mrf.mxu0
          %1781 = vmatprep.mubr.bf16.mxu0 0
          %1782 = vmatmul.mubr.bf16.gmra.mxu0 %v1613
          %v1783 = vpop.f32.mrf.mxu0
          %v1784 = vadd.f32 %v1643, %v1783
          %v1785 = vpop.f32.mrf.mxu0
          %v1786 = vpop.f32.mrf.mxu0
          %v1787 = vadd.f32 %v1643, %v1786
          %v1788 = vpop.f32.mrf.mxu0
          %1789 = vmatprep.mubr.bf16.mxu0 0
          %1790 = vmatmul.mubr.bf16.gmra.mxu0 %v1614
          %v1791 = vpop.f32.mrf.mxu0
          %v1792 = vadd.f32 %v1643, %v1791
          %v1793 = vpop.f32.mrf.mxu0
          %v1794 = vpop.f32.mrf.mxu0
          %v1795 = vadd.f32 %v1643, %v1794
          %v1796 = vpop.f32.mrf.mxu0
          %1797 = vmatprep.mubr.bf16.mxu0 0
          %1798 = vmatmul.mubr.bf16.gmra.mxu0 %v1615
          %v1799 = vpop.f32.mrf.mxu0
          %v1800 = vadd.f32 %v1643, %v1799
          %v1801 = vpop.f32.mrf.mxu0
          %v1802 = vpop.f32.mrf.mxu0
          %v1803 = vadd.f32 %v1643, %v1802
          %v1804 = vpop.f32.mrf.mxu0
          %1805 = vmatprep.mubr.bf16.mxu0 0
          %1806 = vmatmul.mubr.bf16.gmra.mxu0 %v1616
          %v1807 = vpop.f32.mrf.mxu0
          %v1808 = vadd.f32 %v1643, %v1807
          %v1809 = vpop.f32.mrf.mxu0
          %v1810 = vpop.f32.mrf.mxu0
          %v1811 = vadd.f32 %v1643, %v1810
          %v1812 = vpop.f32.mrf.mxu0
          %1813 = vmatprep.mubr.bf16.mxu0 0
          %1814 = vmatmul.mubr.bf16.gmra.mxu0 %v1617
          %v1815 = vpop.f32.mrf.mxu0
          %v1816 = vadd.f32 %v1643, %v1815
          %v1817 = vpop.f32.mrf.mxu0
          %v1818 = vpop.f32.mrf.mxu0
          %v1819 = vadd.f32 %v1643, %v1818
          %v1820 = vpop.f32.mrf.mxu0
          %1821 = vmatprep.mubr.bf16.mxu0 0
          %1822 = vmatmul.mubr.bf16.gmra.mxu0 %v1618
          %v1823 = vpop.f32.mrf.mxu0
          %v1824 = vadd.f32 %v1643, %v1823
          %v1825 = vpop.f32.mrf.mxu0
          %v1826 = vpop.f32.mrf.mxu0
          %v1827 = vadd.f32 %v1643, %v1826
          %v1828 = vpop.f32.mrf.mxu0
          %1829 = vmatprep.mubr.bf16.mxu0 0
          %1830 = vmatmul.mubr.bf16.gmra.mxu0 %v1619
          %v1831 = vpop.f32.mrf.mxu0
          %v1832 = vadd.f32 %v1643, %v1831
          %v1833 = vpop.f32.mrf.mxu0
          %v1834 = vpop.f32.mrf.mxu0
          %v1835 = vadd.f32 %v1643, %v1834
          %v1836 = vpop.f32.mrf.mxu0
          %1837 = vmatprep.mubr.bf16.mxu0 0
          %1838 = vmatmul.mubr.bf16.gmra.mxu0 %v1620
          %v1839 = vpop.f32.mrf.mxu0
          %v1840 = vadd.f32 %v1643, %v1839
          %v1841 = vpop.f32.mrf.mxu0
          %v1842 = vpop.f32.mrf.mxu0
          %v1843 = vadd.f32 %v1643, %v1842
          %v1844 = vpop.f32.mrf.mxu0
          %1845 = vmatprep.mubr.bf16.mxu0 0
          %1846 = vmatmul.mubr.bf16.gmra.mxu0 %v1621
          %v1847 = vpop.f32.mrf.mxu0
          %v1848 = vadd.f32 %v1643, %v1847
          %v1849 = vpop.f32.mrf.mxu0
          %v1850 = vpop.f32.mrf.mxu0
          %v1851 = vadd.f32 %v1643, %v1850
          %v1852 = vpop.f32.mrf.mxu0
          %1853 = vdwg.mxu0
          %v1854 = vxor.u32 %v1728, 2147483648
          %v1855 = vxor.u32 %v1731, 2147483648
          %v1856 = vxor.u32 %v1736, 2147483648
          %v1857 = vxor.u32 %v1739, 2147483648
          %v1858 = vxor.u32 %v1744, 2147483648
          %v1859 = vxor.u32 %v1747, 2147483648
          %v1860 = vxor.u32 %v1752, 2147483648
          %v1861 = vxor.u32 %v1755, 2147483648
          %v1862 = vxor.u32 %v1760, 2147483648
          %v1863 = vxor.u32 %v1763, 2147483648
          %v1864 = vxor.u32 %v1768, 2147483648
          %v1865 = vxor.u32 %v1771, 2147483648
          %v1866 = vxor.u32 %v1776, 2147483648
          %v1867 = vxor.u32 %v1779, 2147483648
          %v1868 = vxor.u32 %v1784, 2147483648
          %v1869 = vxor.u32 %v1787, 2147483648
          %v1870 = vxor.u32 %v1792, 2147483648
          %v1871 = vxor.u32 %v1795, 2147483648
          %v1872 = vxor.u32 %v1800, 2147483648
          %v1873 = vxor.u32 %v1803, 2147483648
          %v1874 = vxor.u32 %v1808, 2147483648
          %v1875 = vxor.u32 %v1811, 2147483648
          %v1876 = vxor.u32 %v1816, 2147483648
          %v1877 = vxor.u32 %v1819, 2147483648
          %v1878 = vxor.u32 %v1824, 2147483648
          %v1879 = vxor.u32 %v1827, 2147483648
          %v1880 = vxor.u32 %v1832, 2147483648
          %v1881 = vxor.u32 %v1835, 2147483648
          %v1882 = vxor.u32 %v1840, 2147483648
          %v1883 = vxor.u32 %v1843, 2147483648
          %v1884 = vxor.u32 %v1848, 2147483648
          %v1885 = vxor.u32 %v1851, 2147483648
          %v1886 = vmul.f32 %v1854, 1.442695
          %v1887 = vpow.pop %v1886
          %v1888 = vmul.f32 %v1855, 1.442695
          %v1889 = vpow.pop %v1888
          %v1890 = vmul.f32 %v1856, 1.442695
          %v1891 = vpow.pop %v1890
          %v1892 = vmul.f32 %v1857, 1.442695
          %v1893 = vpow.pop %v1892
          %v1894 = vmul.f32 %v1858, 1.442695
          %v1895 = vpow.pop %v1894
          %v1896 = vmul.f32 %v1859, 1.442695
          %v1897 = vpow.pop %v1896
          %v1898 = vmul.f32 %v1860, 1.442695
          %v1899 = vpow.pop %v1898
          %v1900 = vmul.f32 %v1861, 1.442695
          %v1901 = vpow.pop %v1900
          %v1902 = vmul.f32 %v1862, 1.442695
          %v1903 = vpow.pop %v1902
          %v1904 = vmul.f32 %v1863, 1.442695
          %v1905 = vpow.pop %v1904
          %v1906 = vmul.f32 %v1864, 1.442695
          %v1907 = vpow.pop %v1906
          %v1908 = vmul.f32 %v1865, 1.442695
          %v1909 = vpow.pop %v1908
          %v1910 = vmul.f32 %v1866, 1.442695
          %v1911 = vpow.pop %v1910
          %v1912 = vmul.f32 %v1867, 1.442695
          %v1913 = vpow.pop %v1912
          %v1914 = vmul.f32 %v1868, 1.442695
          %v1915 = vpow.pop %v1914
          %v1916 = vmul.f32 %v1869, 1.442695
          %v1917 = vpow.pop %v1916
          %v1918 = vmul.f32 %v1870, 1.442695
          %v1919 = vpow.pop %v1918
          %v1920 = vmul.f32 %v1871, 1.442695
          %v1921 = vpow.pop %v1920
          %v1922 = vmul.f32 %v1872, 1.442695
          %v1923 = vpow.pop %v1922
          %v1924 = vmul.f32 %v1873, 1.442695
          %v1925 = vpow.pop %v1924
          %v1926 = vmul.f32 %v1874, 1.442695
          %v1927 = vpow.pop %v1926
          %v1928 = vmul.f32 %v1875, 1.442695
          %v1929 = vpow.pop %v1928
          %v1930 = vmul.f32 %v1876, 1.442695
          %v1931 = vpow.pop %v1930
          %v1932 = vmul.f32 %v1877, 1.442695
          %v1933 = vpow.pop %v1932
          %v1934 = vmul.f32 %v1878, 1.442695
          %v1935 = vpow.pop %v1934
          %v1936 = vmul.f32 %v1879, 1.442695
          %v1937 = vpow.pop %v1936
          %v1938 = vmul.f32 %v1880, 1.442695
          %v1939 = vpow.pop %v1938
          %v1940 = vmul.f32 %v1881, 1.442695
          %v1941 = vpow.pop %v1940
          %v1942 = vmul.f32 %v1882, 1.442695
          %v1943 = vpow.pop %v1942
          %v1944 = vmul.f32 %v1883, 1.442695
          %v1945 = vpow.pop %v1944
          %v1946 = vmul.f32 %v1884, 1.442695
          %v1947 = vpow.pop %v1946
          %v1948 = vmul.f32 %v1885, 1.442695
          %v1949 = vpow.pop %v1948
          %v1950 = vadd.f32 %v1887, 1.0
          %v1951 = vadd.f32 %v1889, 1.0
          %v1952 = vadd.f32 %v1891, 1.0
          %v1953 = vadd.f32 %v1893, 1.0
          %v1954 = vadd.f32 %v1895, 1.0
          %v1955 = vadd.f32 %v1897, 1.0
          %v1956 = vadd.f32 %v1899, 1.0
          %v1957 = vadd.f32 %v1901, 1.0
          %v1958 = vadd.f32 %v1903, 1.0
          %v1959 = vadd.f32 %v1905, 1.0
          %v1960 = vadd.f32 %v1907, 1.0
          %v1961 = vadd.f32 %v1909, 1.0
          %v1962 = vadd.f32 %v1911, 1.0
          %v1963 = vadd.f32 %v1913, 1.0
          %v1964 = vadd.f32 %v1915, 1.0
          %v1965 = vadd.f32 %v1917, 1.0
          %v1966 = vadd.f32 %v1919, 1.0
          %v1967 = vadd.f32 %v1921, 1.0
          %v1968 = vadd.f32 %v1923, 1.0
          %v1969 = vadd.f32 %v1925, 1.0
          %v1970 = vadd.f32 %v1927, 1.0
          %v1971 = vadd.f32 %v1929, 1.0
          %v1972 = vadd.f32 %v1931, 1.0
          %v1973 = vadd.f32 %v1933, 1.0
          %v1974 = vadd.f32 %v1935, 1.0
          %v1975 = vadd.f32 %v1937, 1.0
          %v1976 = vadd.f32 %v1939, 1.0
          %v1977 = vadd.f32 %v1941, 1.0
          %v1978 = vadd.f32 %v1943, 1.0
          %v1979 = vadd.f32 %v1945, 1.0
          %v1980 = vadd.f32 %v1947, 1.0
          %v1981 = vadd.f32 %v1949, 1.0
          %v1982 = vrcp.pop %v1950
          %v1983 = vmul.f32 1.0, %v1982
          %v1984 = vrcp.pop %v1951
          %v1985 = vmul.f32 1.0, %v1984
          %v1986 = vrcp.pop %v1952
          %v1987 = vmul.f32 1.0, %v1986
          %v1988 = vrcp.pop %v1953
          %v1989 = vmul.f32 1.0, %v1988
          %v1990 = vrcp.pop %v1954
          %v1991 = vmul.f32 1.0, %v1990
          %v1992 = vrcp.pop %v1955
          %v1993 = vmul.f32 1.0, %v1992
          %v1994 = vrcp.pop %v1956
          %v1995 = vmul.f32 1.0, %v1994
          %v1996 = vrcp.pop %v1957
          %v1997 = vmul.f32 1.0, %v1996
          %v1998 = vrcp.pop %v1958
          %v1999 = vmul.f32 1.0, %v1998
          %v2000 = vrcp.pop %v1959
          %v2001 = vmul.f32 1.0, %v2000
          %v2002 = vrcp.pop %v1960
          %v2003 = vmul.f32 1.0, %v2002
          %v2004 = vrcp.pop %v1961
          %v2005 = vmul.f32 1.0, %v2004
          %v2006 = vrcp.pop %v1962
          %v2007 = vmul.f32 1.0, %v2006
          %v2008 = vrcp.pop %v1963
          %v2009 = vmul.f32 1.0, %v2008
          %v2010 = vrcp.pop %v1964
          %v2011 = vmul.f32 1.0, %v2010
          %v2012 = vrcp.pop %v1965
          %v2013 = vmul.f32 1.0, %v2012
          %v2014 = vrcp.pop %v1966
          %v2015 = vmul.f32 1.0, %v2014
          %v2016 = vrcp.pop %v1967
          %v2017 = vmul.f32 1.0, %v2016
          %v2018 = vrcp.pop %v1968
          %v2019 = vmul.f32 1.0, %v2018
          %v2020 = vrcp.pop %v1969
          %v2021 = vmul.f32 1.0, %v2020
          %v2022 = vrcp.pop %v1970
          %v2023 = vmul.f32 1.0, %v2022
          %v2024 = vrcp.pop %v1971
          %v2025 = vmul.f32 1.0, %v2024
          %v2026 = vrcp.pop %v1972
          %v2027 = vmul.f32 1.0, %v2026
          %v2028 = vrcp.pop %v1973
          %v2029 = vmul.f32 1.0, %v2028
          %v2030 = vrcp.pop %v1974
          %v2031 = vmul.f32 1.0, %v2030
          %v2032 = vrcp.pop %v1975
          %v2033 = vmul.f32 1.0, %v2032
          %v2034 = vrcp.pop %v1976
          %v2035 = vmul.f32 1.0, %v2034
          %v2036 = vrcp.pop %v1977
          %v2037 = vmul.f32 1.0, %v2036
          %v2038 = vrcp.pop %v1978
          %v2039 = vmul.f32 1.0, %v2038
          %v2040 = vrcp.pop %v1979
          %v2041 = vmul.f32 1.0, %v2040
          %v2042 = vrcp.pop %v1980
          %v2043 = vmul.f32 1.0, %v2042
          %v2044 = vrcp.pop %v1981
          %v2045 = vmul.f32 1.0, %v2044
          %v2046 = vpack.c.bf16 %v1985, %v1983
          %v2047 = vpack.c.bf16 %v1989, %v1987
          %v2048 = vpack.c.bf16 %v1993, %v1991
          %v2049 = vpack.c.bf16 %v1997, %v1995
          %v2050 = vpack.c.bf16 %v2001, %v1999
          %v2051 = vpack.c.bf16 %v2005, %v2003
          %v2052 = vpack.c.bf16 %v2009, %v2007
          %v2053 = vpack.c.bf16 %v2013, %v2011
          %v2054 = vpack.c.bf16 %v2017, %v2015
          %v2055 = vpack.c.bf16 %v2021, %v2019
          %v2056 = vpack.c.bf16 %v2025, %v2023
          %v2057 = vpack.c.bf16 %v2029, %v2027
          %v2058 = vpack.c.bf16 %v2033, %v2031
          %v2059 = vpack.c.bf16 %v2037, %v2035
          %v2060 = vpack.c.bf16 %v2041, %v2039
          %v2061 = vpack.c.bf16 %v2045, %v2043
          %v2078 = vunpack.c.l.b16 %v2046
          %v2079 = vunpack.c.h.b16 %v2046
          %v2080 = vunpack.c.l.b16 %v2047
          %v2081 = vunpack.c.h.b16 %v2047
          %v2082 = vunpack.c.l.b16 %v2048
          %v2083 = vunpack.c.h.b16 %v2048
          %v2084 = vunpack.c.l.b16 %v2049
          %v2085 = vunpack.c.h.b16 %v2049
          %v2086 = vunpack.c.l.b16 %v2050
          %v2087 = vunpack.c.h.b16 %v2050
          %v2088 = vunpack.c.l.b16 %v2051
          %v2089 = vunpack.c.h.b16 %v2051
          %v2090 = vunpack.c.l.b16 %v2052
          %v2091 = vunpack.c.h.b16 %v2052
          %v2092 = vunpack.c.l.b16 %v2053
          %v2093 = vunpack.c.h.b16 %v2053
          %v2094 = vunpack.c.l.b16 %v2054
          %v2095 = vunpack.c.h.b16 %v2054
          %v2096 = vunpack.c.l.b16 %v2055
          %v2097 = vunpack.c.h.b16 %v2055
          %v2098 = vunpack.c.l.b16 %v2056
          %v2099 = vunpack.c.h.b16 %v2056
          %v2100 = vunpack.c.l.b16 %v2057
          %v2101 = vunpack.c.h.b16 %v2057
          %v2102 = vunpack.c.l.b16 %v2058
          %v2103 = vunpack.c.h.b16 %v2058
          %v2104 = vunpack.c.l.b16 %v2059
          %v2105 = vunpack.c.h.b16 %v2059
          %v2106 = vunpack.c.l.b16 %v2060
          %v2107 = vunpack.c.h.b16 %v2060
          %v2108 = vunpack.c.l.b16 %v2061
          %v2109 = vunpack.c.h.b16 %v2061
          %v2110 = vpack.c.b16 %v2078, %v2078
          %v2111 = vpack.c.b16 %v2079, %v2079
          %v2112 = vpack.c.b16 %v2080, %v2080
          %v2113 = vpack.c.b16 %v2081, %v2081
          %v2114 = vpack.c.b16 %v2082, %v2082
          %v2115 = vpack.c.b16 %v2083, %v2083
          %v2116 = vpack.c.b16 %v2084, %v2084
          %v2117 = vpack.c.b16 %v2085, %v2085
          %v2118 = vpack.c.b16 %v2086, %v2086
          %v2119 = vpack.c.b16 %v2087, %v2087
          %v2120 = vpack.c.b16 %v2088, %v2088
          %v2121 = vpack.c.b16 %v2089, %v2089
          %v2122 = vpack.c.b16 %v2090, %v2090
          %v2123 = vpack.c.b16 %v2091, %v2091
          %v2124 = vpack.c.b16 %v2092, %v2092
          %v2125 = vpack.c.b16 %v2093, %v2093
          %v2126 = vpack.c.b16 %v2094, %v2094
          %v2127 = vpack.c.b16 %v2095, %v2095
          %v2128 = vpack.c.b16 %v2096, %v2096
          %v2129 = vpack.c.b16 %v2097, %v2097
          %v2130 = vpack.c.b16 %v2098, %v2098
          %v2131 = vpack.c.b16 %v2099, %v2099
          %v2132 = vpack.c.b16 %v2100, %v2100
          %v2133 = vpack.c.b16 %v2101, %v2101
          %v2134 = vpack.c.b16 %v2102, %v2102
          %v2135 = vpack.c.b16 %v2103, %v2103
          %v2136 = vpack.c.b16 %v2104, %v2104
          %v2137 = vpack.c.b16 %v2105, %v2105
          %v2138 = vpack.c.b16 %v2106, %v2106
          %v2139 = vpack.c.b16 %v2107, %v2107
          %v2140 = vpack.c.b16 %v2108, %v2108
          %v2141 = vpack.c.b16 %v2109, %v2109
          %2174 = vst [vmem:[%s449] sm:$0xf] %v2110
          %2175 = vst [vmem:[%s449 + $0x4] sm:$0xf] %v2111
          %2176 = vst [vmem:[%s449 + $0x8] sm:$0xf] %v2112
          %2177 = vst [vmem:[%s449 + $0xc] sm:$0xf] %v2113
          %2178 = vst [vmem:[%s449 + $0x10] sm:$0xf] %v2114
          %2179 = vst [vmem:[%s449 + $0x14] sm:$0xf] %v2115
          %2180 = vst [vmem:[%s449 + $0x18] sm:$0xf] %v2116
          %2181 = vst [vmem:[%s449 + $0x1c] sm:$0xf] %v2117
          %2182 = vst [vmem:[%s449 + $0x20] sm:$0xf] %v2118
          %2183 = vst [vmem:[%s449 + $0x24] sm:$0xf] %v2119
          %2184 = vst [vmem:[%s449 + $0x28] sm:$0xf] %v2120
          %2185 = vst [vmem:[%s449 + $0x2c] sm:$0xf] %v2121
          %2186 = vst [vmem:[%s449 + $0x30] sm:$0xf] %v2122
          %2187 = vst [vmem:[%s449 + $0x34] sm:$0xf] %v2123
          %2188 = vst [vmem:[%s449 + $0x38] sm:$0xf] %v2124
          %2189 = vst [vmem:[%s449 + $0x3c] sm:$0xf] %v2125
          %2190 = vst [vmem:[%s449 + $0x40] sm:$0xf] %v2126
          %2191 = vst [vmem:[%s449 + $0x44] sm:$0xf] %v2127
          %2192 = vst [vmem:[%s449 + $0x48] sm:$0xf] %v2128
          %2193 = vst [vmem:[%s449 + $0x4c] sm:$0xf] %v2129
          %2194 = vst [vmem:[%s449 + $0x50] sm:$0xf] %v2130
          %2195 = vst [vmem:[%s449 + $0x54] sm:$0xf] %v2131
          %2196 = vst [vmem:[%s449 + $0x58] sm:$0xf] %v2132
          %2197 = vst [vmem:[%s449 + $0x5c] sm:$0xf] %v2133
          %2198 = vst [vmem:[%s449 + $0x60] sm:$0xf] %v2134
          %2199 = vst [vmem:[%s449 + $0x64] sm:$0xf] %v2135
          %2200 = vst [vmem:[%s449 + $0x68] sm:$0xf] %v2136
          %2201 = vst [vmem:[%s449 + $0x6c] sm:$0xf] %v2137
          %2202 = vst [vmem:[%s449 + $0x70] sm:$0xf] %v2138
          %2203 = vst [vmem:[%s449 + $0x74] sm:$0xf] %v2139
          %2204 = vst [vmem:[%s449 + $0x78] sm:$0xf] %v2140
          %2205 = vst [vmem:[%s449 + $0x7c] sm:$0xf] %v2141
        $region84: #{tpu_custom_call.1} parent=55 // pred_fallthru
          _
        %s2206 = sand.u32 %s251, 1
        %s2207 = scalar_lea.sflag [#allocation5], %s2206
        %s2208 = sand.u32 %s251, 1
        %s2209 = smul.addr %s2208, 128
        %s2210 = scalar_lea.vmem [#allocation12], %s2209
        // Predicated region
        $region85: #{tpu_custom_call.1} parent=55 // pred_check
          %p2211 = pneg %p261
        $region86: #{tpu_custom_call.1} parent=55 // pred_check_branch
          %2213 = sbr.rel (%p2211) target = $region88
        $region87: #{tpu_custom_call.1} parent=55 // pred_region
          %s2214 = smul.u32 32, %s34
          %s2216 = ssub.s32 2048, 2048
          %2217 = vsyncadd %s2207, %s2216
          %s2218 = smul.addr %s2214, 64
          %s2219 = scalar_lea.hbm %s9, %s2218
          %s2220 = sshll.u32 %s2210, 4
          %s2221 = int_to_ptr.vmem [resolvable:$true] %s2220
          %2226 = dma.vmem_to_hbm [thread:$0]  %s2221, 2048, %s2219, %s2207, 64, 64, 4
        $region88: #{tpu_custom_call.1} parent=55 // pred_fallthru
          _
      $region56: #{tpu_custom_call.1} parent=5 // pred_fallthru
        _
      %p2227 = scmp.le.s32.totalorder 2, %s25
      // Predicated region
      $region89: #{tpu_custom_call.1} parent=5 // pred_check
        %p2228 = pneg %p2227
      $region90: #{tpu_custom_call.1} parent=5 // pred_check_branch
        %2230 = sbr.rel (%p2228) target = $region92
      $region91: #{tpu_custom_call.1} parent=5 // pred_region
        %s2231 = ssub.s32 %s25, 2
        // Predicated region
        $region93: #{tpu_custom_call.1} parent=91 // pred_check
          %p2232 = pneg %p267
        $region94: #{tpu_custom_call.1} parent=91 // pred_check_branch
          %2234 = sbr.rel (%p2232) target = $region96
        $region95: #{tpu_custom_call.1} parent=91 // pred_region
          %s2235 = sand.u32 %s252, 1
          %s2236 = scalar_lea.sflag [#allocation5], %s2235
          %s2237 = sand.u32 %s252, 1
          %s2238 = smul.addr %s2237, 128
          %s2239 = scalar_lea.vmem [#allocation12], %s2238
          %2240 = dma.done %s2236, 2048
        $region96: #{tpu_custom_call.1} parent=91 // pred_fallthru
          _
      $region92: #{tpu_custom_call.1} parent=5 // pred_fallthru
        _
    $region6: #{tpu_custom_call.1} parent=1 // loop_footer
      %s29 = sadd.s32 1, %s25
    $region7: #{tpu_custom_call.1} parent=1 // loop_footer_branch
      %24 = sbr.rel target = $region3
    $region8: #{tpu_custom_call.1} parent=1 // loop_exit
      _
    %2241 = vsyncpa [#allocation4], 1
    %s2242 = scalar_lea.sflag [#allocation4], 1
    %2243 = vsyncpa %s2242, 1
    %2244 = vsyncpa [#allocation7], 1
    %s2245 = scalar_lea.sflag [#allocation7], 1
    %2246 = vsyncpa %s2245, 1
    %2247 = vsyncpa [#allocation10], 1
    %2248 = vsyncpa [#allocation5], 1
    %s2249 = scalar_lea.sflag [#allocation5], 1
    %2250 = vsyncpa %s2249, 1

</llo_original>
